<compile_context>
chip_gen: v7x
topology: tpu7x:2x2x1
jax: 0.10.0
libtpu: 0.0.40
codegen_flags: <defaults>
</compile_context>

<pallas_src>
from functools import partial

import jax
import jax.numpy as jnp
from jax import lax
from jax.experimental import pallas as pl
from jax.experimental.pallas import tpu as pltpu

EPS = 1e-5          # PyTorch InstanceNorm1d default eps
OUT_LANES = 128     # lane-dense output width (real result lives in lanes 0..8)


def _inorm_points(h3):
    """InstanceNorm over the point axis (axis=1) of (BT, N, F); single pass, f32."""
    n = h3.shape[1]
    inv_n = 1.0 / n
    s = jnp.sum(h3, axis=1, keepdims=True)
    ss = jnp.sum(h3 * h3, axis=1, keepdims=True)
    mean = s * inv_n
    var = jnp.maximum(ss * inv_n - mean * mean, 0.0)
    return (h3 - mean) * lax.rsqrt(var + EPS)


def _inorm_rows(h2):
    """Per-row InstanceNorm over the feature axis of (BT, F); single pass, f32."""
    n = h2.shape[-1]
    inv_n = 1.0 / n
    s = jnp.sum(h2, axis=-1, keepdims=True)
    ss = jnp.sum(h2 * h2, axis=-1, keepdims=True)
    mean = s * inv_n
    var = jnp.maximum(ss * inv_n - mean * mean, 0.0)
    return (h2 - mean) * lax.rsqrt(var + EPS)


def _stn3d_kernel(x_ref, w1, b1, w2, b2, w3, b3, w4, b4, w5, b5, w6, b6, out_ref):
    # x_ref: (BT, N, C) f32.  w1: (C, 64) f32; w2..w6: (K, F) bf16 (w6 padded to
    # 128 lanes); biases: (1, F) f32 (b6 padded).  out_ref: (BT, 128) f32.
    BT, N, C = x_ref.shape
    M = BT * N

    x = x_ref[...].reshape(M, C)                      # (M, C) f32

    # conv1: K = C (tiny) -> VPU broadcast FMAs instead of a padded MXU pass.
    w1f = w1[...]                                     # (C, 64) f32
    h = x[:, 0:1] * w1f[0:1, :] + b1[...]
    for c in range(1, C):
        h = h + x[:, c:c + 1] * w1f[c:c + 1, :]
    h = jnp.maximum(_inorm_points(h.reshape(BT, N, -1)), 0.0).reshape(M, -1)

    # conv2: (M, 64) @ (64, 128), bf16 MXU, f32 accumulation.
    h = jnp.dot(h.astype(jnp.bfloat16), w2[...],
                preferred_element_type=jnp.float32) + b2[...]
    h = jnp.maximum(_inorm_points(h.reshape(BT, N, -1)), 0.0).reshape(M, -1)

    # conv3: (M, 128) @ (128, 1024).
    h = jnp.dot(h.astype(jnp.bfloat16), w3[...],
                preferred_element_type=jnp.float32) + b3[...]
    h = jnp.maximum(_inorm_points(h.reshape(BT, N, -1)), 0.0)   # (BT, N, 1024)

    # torch.max(x, 2): global max pool over points, kept in f32.
    pooled = jnp.max(h, axis=1)                                  # (BT, 1024)

    # Batched FC stack (BT rows per matmul).
    f = jnp.dot(pooled.astype(jnp.bfloat16), w4[...],
                preferred_element_type=jnp.float32) + b4[...]    # (BT, 512)
    f = jnp.maximum(_inorm_rows(f), 0.0)
    f = jnp.dot(f.astype(jnp.bfloat16), w5[...],
                preferred_element_type=jnp.float32) + b5[...]    # (BT, 256)
    f = jnp.maximum(_inorm_rows(f), 0.0)
    o = jnp.dot(f.astype(jnp.bfloat16), w6[...],
                preferred_element_type=jnp.float32) + b6[...]    # (BT, 128)

    # Identity offset in lanes 0..8 ([1,0,0,0,1,0,0,0,1]); padded lanes stay 0.
    col = lax.broadcasted_iota(jnp.int32, o.shape, 1)
    iden = jnp.where((col < 9) & (col % 4 == 0), 1.0, 0.0)
    out_ref[...] = o + iden


def prepare_params(params):
    """One-time parameter prep: transpose to (C_in, C_out), cast MXU weights to
    bf16, pad fc3 to 128 output lanes so the kernel writes lane-dense tiles."""
    (W1, b1), (W2, b2), (W3, b3), (W4, b4), (W5, b5), (W6, b6) = params
    w1 = jnp.transpose(W1).astype(jnp.float32)              # used on the VPU
    w2 = jnp.transpose(W2).astype(jnp.bfloat16)
    w3 = jnp.transpose(W3).astype(jnp.bfloat16)
    w4 = jnp.transpose(W4).astype(jnp.bfloat16)
    w5 = jnp.transpose(W5).astype(jnp.bfloat16)
    w6 = jnp.zeros((W6.shape[1], OUT_LANES), jnp.float32)
    w6 = w6.at[:, : W6.shape[0]].set(jnp.transpose(W6)).astype(jnp.bfloat16)
    b1r, b2r, b3r, b4r, b5r = (b.reshape(1, -1).astype(jnp.float32)
                               for b in (b1, b2, b3, b4, b5))
    b6p = jnp.zeros((1, OUT_LANES), jnp.float32).at[0, : b6.shape[0]].set(b6)
    return (w1, b1r, w2, b2r, w3, b3r, w4, b4r, w5, b5r, w6, b6p)


def _choose_block_b(B, N):
    """Batch samples per grid step: target ~512 MXU rows (block_b * N), which
    also caps the f32 (block_b*N, 1024) conv3 activation at ~2 MiB (v7x-safe)."""
    bt = max(1, 512 // max(N, 1))
    if bt >= B:
        return B                      # single grid step, block == full batch
    if bt >= 8:
        bt = (bt // 8) * 8            # (8,128)-aligned output tiles
    return bt


@partial(jax.jit, static_argnames=("block_b",))
def _stn3d_call(x, prepared, block_b):
    B, C, N = x.shape
    x_nc = jnp.transpose(x, (0, 2, 1)).astype(jnp.float32)   # (B, N, C)
    n_blocks = -(-B // block_b)
    B_pad = n_blocks * block_b
    if B_pad != B:
        x_nc = jnp.pad(x_nc, ((0, B_pad - B), (0, 0), (0, 0)))

    args = [x_nc]
    in_specs = [pl.BlockSpec((block_b, N, C), lambda i: (i, 0, 0))]
    for p in prepared:                # weights/biases: whole array every step
        args.append(p)
        in_specs.append(pl.BlockSpec(p.shape, lambda i: (0, 0)))

    out = pl.pallas_call(
        _stn3d_kernel,
        out_shape=jax.ShapeDtypeStruct((B_pad, OUT_LANES), jnp.float32),
        grid=(n_blocks,),
        in_specs=in_specs,
        out_specs=pl.BlockSpec((block_b, OUT_LANES), lambda i: (i, 0)),
        compiler_params=pltpu.CompilerParams(
            dimension_semantics=("parallel",)),
    )(*args)
    return out[:B, :9].reshape(B, 3, 3)


def stn3d_forward(x, prepared):
    """x: (B, C, N) float32 (PyTorch NCL layout). Returns (B, 3, 3)."""
    B, _, N = x.shape
    return _stn3d_call(x, prepared, _choose_block_b(B, N))


def init_params(key, channel):
    """Deterministic synthetic params with PyTorch-like fan-in uniform init."""
    dims = [(64, channel), (128, 64), (1024, 128), (512, 1024), (256, 512), (9, 256)]
    params = []
    for i, (out_d, in_d) in enumerate(dims):
        kw, kb = jax.random.split(jax.random.fold_in(key, i))
        bound = 1.0 / (in_d ** 0.5)
        W = jax.random.uniform(kw, (out_d, in_d), jnp.float32, -bound, bound)
        b = jax.random.uniform(kb, (out_d,), jnp.float32, -bound, bound)
        params.append((W, b))
    return params


def stn3d_reference(x, params):
    """Pure-JAX f32 reference mirroring the PyTorch forward (sanity check)."""
    (W1, b1), (W2, b2), (W3, b3), (W4, b4), (W5, b5), (W6, b6) = params
    prec = lax.Precision.HIGHEST
    relu = lambda v: jnp.maximum(v, 0.0)

    def inorm3(v):  # (B, C, N) normalized over N
        m = v.mean(axis=2, keepdims=True)
        var = ((v - m) ** 2).mean(axis=2, keepdims=True)
        return (v - m) / jnp.sqrt(var + EPS)

    def inorm2(v):  # (B, F) normalized over F
        m = v.mean(axis=1, keepdims=True)
        var = ((v - m) ** 2).mean(axis=1, keepdims=True)
        return (v - m) / jnp.sqrt(var + EPS)

    h = jnp.einsum("oc,bcn->bon", W1, x, precision=prec) + b1[None, :, None]
    h = relu(inorm3(h))
    h = jnp.einsum("oc,bcn->bon", W2, h, precision=prec) + b2[None, :, None]
    h = relu(inorm3(h))
    h = jnp.einsum("oc,bcn->bon", W3, h, precision=prec) + b3[None, :, None]
    h = relu(inorm3(h))
    p = h.max(axis=2)  # (B, 1024)
    f = relu(inorm2(jnp.dot(p, W4.T, precision=prec) + b4))
    f = relu(inorm2(jnp.dot(f, W5.T, precision=prec) + b5))
    o = jnp.dot(f, W6.T, precision=prec) + b6
    iden = jnp.array([1, 0, 0, 0, 1, 0, 0, 0, 1], jnp.float32)
    return (o + iden).reshape(-1, 3, 3)


if __name__ == "__main__":
    key = jax.random.PRNGKey(0)
    B, C, N = 2, 3, 16  # batch=2, 3 input channels, 16 points
    kx, kp = jax.random.split(key)
    x = jax.random.normal(kx, (B, C, N), dtype=jnp.float32)
    params = init_params(kp, C)
    prepared = prepare_params(params)

    out = jax.block_until_ready(stn3d_forward(x, prepared))
    ref = stn3d_reference(x, params)

    assert out.shape == (B, 3, 3), out.shape
    assert bool(jnp.all(jnp.isfinite(out)))
    assert bool(jnp.allclose(out, ref, rtol=3e-2, atol=3e-2)), (
        jnp.max(jnp.abs(out - ref)))
    print("KERNEL_OK")
</pallas_src>

<mosaic_0001>
module attributes {stable_mosaic.version = 11 : i64} {
  func.func @_stn3d_kernel(%arg0: i32, %arg1: memref<2x16x3xf32, #tpu.memory_space<vmem>>, %arg2: memref<3x64xf32, #tpu.memory_space<vmem>>, %arg3: memref<1x64xf32, #tpu.memory_space<vmem>>, %arg4: memref<64x128xbf16, #tpu.memory_space<vmem>>, %arg5: memref<1x128xf32, #tpu.memory_space<vmem>>, %arg6: memref<128x1024xbf16, #tpu.memory_space<vmem>>, %arg7: memref<1x1024xf32, #tpu.memory_space<vmem>>, %arg8: memref<1024x512xbf16, #tpu.memory_space<vmem>>, %arg9: memref<1x512xf32, #tpu.memory_space<vmem>>, %arg10: memref<512x256xbf16, #tpu.memory_space<vmem>>, %arg11: memref<1x256xf32, #tpu.memory_space<vmem>>, %arg12: memref<256x128xbf16, #tpu.memory_space<vmem>>, %arg13: memref<1x128xf32, #tpu.memory_space<vmem>>, %arg14: memref<2x128xf32, #tpu.memory_space<vmem>>) attributes {dimension_semantics = [#tpu.dimension_semantics<parallel>], iteration_bounds = array<i64: 1>, scalar_prefetch = 0 : i64, scratch_operands = 0 : i64, tpu.core_type = #tpu.core_type<tc>, window_params = [{transform_indices = @transform_0, window_bounds = array<i64: 2, 16, 3>}, {pipeline_mode = #tpu.pipeline_mode<synchronous>, transform_indices = @transform_1, window_bounds = array<i64: 3, 64>}, {pipeline_mode = #tpu.pipeline_mode<synchronous>, transform_indices = @transform_2, window_bounds = array<i64: 1, 64>}, {pipeline_mode = #tpu.pipeline_mode<synchronous>, transform_indices = @transform_3, window_bounds = array<i64: 64, 128>}, {pipeline_mode = #tpu.pipeline_mode<synchronous>, transform_indices = @transform_4, window_bounds = array<i64: 1, 128>}, {pipeline_mode = #tpu.pipeline_mode<synchronous>, transform_indices = @transform_5, window_bounds = array<i64: 128, 1024>}, {pipeline_mode = #tpu.pipeline_mode<synchronous>, transform_indices = @transform_6, window_bounds = array<i64: 1, 1024>}, {pipeline_mode = #tpu.pipeline_mode<synchronous>, transform_indices = @transform_7, window_bounds = array<i64: 1024, 512>}, {pipeline_mode = #tpu.pipeline_mode<synchronous>, transform_indices = @transform_8, window_bounds = array<i64: 1, 512>}, {pipeline_mode = #tpu.pipeline_mode<synchronous>, transform_indices = @transform_9, window_bounds = array<i64: 512, 256>}, {pipeline_mode = #tpu.pipeline_mode<synchronous>, transform_indices = @transform_10, window_bounds = array<i64: 1, 256>}, {pipeline_mode = #tpu.pipeline_mode<synchronous>, transform_indices = @transform_11, window_bounds = array<i64: 256, 128>}, {pipeline_mode = #tpu.pipeline_mode<synchronous>, transform_indices = @transform_12, window_bounds = array<i64: 1, 128>}, {transform_indices = @transform_13, window_bounds = array<i64: 2, 128>}]} {
    %c0 = arith.constant 0 : index
    %c0_0 = arith.constant 0 : index
    %c0_1 = arith.constant 0 : index
    %0 = vector.load %arg1[%c0, %c0_0, %c0_1] : memref<2x16x3xf32, #tpu.memory_space<vmem>>, vector<2x16x3xf32>
    %1 = vector.shape_cast %0 : vector<2x16x3xf32> to vector<32x3xf32>
    %c0_2 = arith.constant 0 : index
    %c0_3 = arith.constant 0 : index
    %2 = vector.load %arg2[%c0_2, %c0_3] : memref<3x64xf32, #tpu.memory_space<vmem>>, vector<3x64xf32>
    %3 = vector.extract_strided_slice %1 {offsets = [0, 0], sizes = [32, 1], strides = [1, 1]} : vector<32x3xf32> to vector<32x1xf32>
    %4 = vector.extract_strided_slice %2 {offsets = [0, 0], sizes = [1, 64], strides = [1, 1]} : vector<3x64xf32> to vector<1x64xf32>
    %5 = vector.broadcast %3 : vector<32x1xf32> to vector<32x64xf32>
    %6 = vector.broadcast %4 : vector<1x64xf32> to vector<32x64xf32>
    %7 = arith.mulf %5, %6 : vector<32x64xf32>
    %c0_4 = arith.constant 0 : index
    %c0_5 = arith.constant 0 : index
    %8 = vector.load %arg3[%c0_4, %c0_5] : memref<1x64xf32, #tpu.memory_space<vmem>>, vector<1x64xf32>
    %9 = vector.broadcast %8 : vector<1x64xf32> to vector<32x64xf32>
    %10 = arith.addf %7, %9 : vector<32x64xf32>
    %11 = vector.extract_strided_slice %1 {offsets = [0, 1], sizes = [32, 1], strides = [1, 1]} : vector<32x3xf32> to vector<32x1xf32>
    %12 = vector.extract_strided_slice %2 {offsets = [1, 0], sizes = [1, 64], strides = [1, 1]} : vector<3x64xf32> to vector<1x64xf32>
    %13 = vector.broadcast %11 : vector<32x1xf32> to vector<32x64xf32>
    %14 = vector.broadcast %12 : vector<1x64xf32> to vector<32x64xf32>
    %15 = arith.mulf %13, %14 : vector<32x64xf32>
    %16 = arith.addf %10, %15 : vector<32x64xf32>
    %17 = vector.extract_strided_slice %1 {offsets = [0, 2], sizes = [32, 1], strides = [1, 1]} : vector<32x3xf32> to vector<32x1xf32>
    %18 = vector.extract_strided_slice %2 {offsets = [2, 0], sizes = [1, 64], strides = [1, 1]} : vector<3x64xf32> to vector<1x64xf32>
    %19 = vector.broadcast %17 : vector<32x1xf32> to vector<32x64xf32>
    %20 = vector.broadcast %18 : vector<1x64xf32> to vector<32x64xf32>
    %21 = arith.mulf %19, %20 : vector<32x64xf32>
    %22 = arith.addf %16, %21 : vector<32x64xf32>
    %23 = vector.shape_cast %22 : vector<32x64xf32> to vector<2x16x64xf32>
    %cst = arith.constant dense<0.000000e+00> : vector<2x64xf32>
    %24 = vector.multi_reduction <add>, %23, %cst [1] : vector<2x16x64xf32> to vector<2x64xf32>
    %25 = vector.shape_cast %24 : vector<2x64xf32> to vector<2x1x64xf32>
    %26 = arith.mulf %23, %23 : vector<2x16x64xf32>
    %cst_6 = arith.constant dense<0.000000e+00> : vector<2x64xf32>
    %27 = vector.multi_reduction <add>, %26, %cst_6 [1] : vector<2x16x64xf32> to vector<2x64xf32>
    %28 = vector.shape_cast %27 : vector<2x64xf32> to vector<2x1x64xf32>
    %cst_7 = arith.constant 6.250000e-02 : f32
    %29 = vector.broadcast %cst_7 : f32 to vector<2x1x64xf32>
    %30 = arith.mulf %25, %29 : vector<2x1x64xf32>
    %cst_8 = arith.constant 6.250000e-02 : f32
    %31 = vector.broadcast %cst_8 : f32 to vector<2x1x64xf32>
    %32 = arith.mulf %28, %31 : vector<2x1x64xf32>
    %33 = arith.mulf %30, %30 : vector<2x1x64xf32>
    %34 = arith.subf %32, %33 : vector<2x1x64xf32>
    %cst_9 = arith.constant 0.000000e+00 : f32
    %35 = vector.broadcast %cst_9 : f32 to vector<2x1x64xf32>
    %36 = arith.maximumf %34, %35 : vector<2x1x64xf32>
    %37 = vector.broadcast %30 : vector<2x1x64xf32> to vector<2x16x64xf32>
    %38 = arith.subf %23, %37 : vector<2x16x64xf32>
    %cst_10 = arith.constant 9.99999974E-6 : f32
    %39 = vector.broadcast %cst_10 : f32 to vector<2x1x64xf32>
    %40 = arith.addf %36, %39 : vector<2x1x64xf32>
    %41 = math.rsqrt %40 : vector<2x1x64xf32>
    %42 = vector.broadcast %41 : vector<2x1x64xf32> to vector<2x16x64xf32>
    %43 = arith.mulf %38, %42 : vector<2x16x64xf32>
    %cst_11 = arith.constant 0.000000e+00 : f32
    %44 = vector.broadcast %cst_11 : f32 to vector<2x16x64xf32>
    %45 = arith.maximumf %43, %44 : vector<2x16x64xf32>
    %46 = vector.shape_cast %45 : vector<2x16x64xf32> to vector<32x64xf32>
    %47 = arith.truncf %46 : vector<32x64xf32> to vector<32x64xbf16>
    %c0_12 = arith.constant 0 : index
    %c0_13 = arith.constant 0 : index
    %48 = vector.load %arg4[%c0_12, %c0_13] : memref<64x128xbf16, #tpu.memory_space<vmem>>, vector<64x128xbf16>
    %cst_14 = arith.constant dense<0.000000e+00> : vector<32x128xf32>
    %49 = tpu.matmul %47, %48, %cst_14 {dimension_numbers = #tpu.dot_dimension_numbers<[1], [0], [0], [1], [0, 0, 1, 1], [], []>} : vector<32x64xbf16>, vector<64x128xbf16>, vector<32x128xf32> -> vector<32x128xf32>
    %c0_15 = arith.constant 0 : index
    %c0_16 = arith.constant 0 : index
    %50 = vector.load %arg5[%c0_15, %c0_16] : memref<1x128xf32, #tpu.memory_space<vmem>>, vector<1x128xf32>
    %51 = vector.broadcast %50 : vector<1x128xf32> to vector<32x128xf32>
    %52 = arith.addf %49, %51 : vector<32x128xf32>
    %53 = vector.shape_cast %52 : vector<32x128xf32> to vector<2x16x128xf32>
    %cst_17 = arith.constant dense<0.000000e+00> : vector<2x128xf32>
    %54 = vector.multi_reduction <add>, %53, %cst_17 [1] : vector<2x16x128xf32> to vector<2x128xf32>
    %55 = vector.shape_cast %54 : vector<2x128xf32> to vector<2x1x128xf32>
    %56 = arith.mulf %53, %53 : vector<2x16x128xf32>
    %cst_18 = arith.constant dense<0.000000e+00> : vector<2x128xf32>
    %57 = vector.multi_reduction <add>, %56, %cst_18 [1] : vector<2x16x128xf32> to vector<2x128xf32>
    %58 = vector.shape_cast %57 : vector<2x128xf32> to vector<2x1x128xf32>
    %cst_19 = arith.constant 6.250000e-02 : f32
    %59 = vector.broadcast %cst_19 : f32 to vector<2x1x128xf32>
    %60 = arith.mulf %55, %59 : vector<2x1x128xf32>
    %cst_20 = arith.constant 6.250000e-02 : f32
    %61 = vector.broadcast %cst_20 : f32 to vector<2x1x128xf32>
    %62 = arith.mulf %58, %61 : vector<2x1x128xf32>
    %63 = arith.mulf %60, %60 : vector<2x1x128xf32>
    %64 = arith.subf %62, %63 : vector<2x1x128xf32>
    %cst_21 = arith.constant 0.000000e+00 : f32
    %65 = vector.broadcast %cst_21 : f32 to vector<2x1x128xf32>
    %66 = arith.maximumf %64, %65 : vector<2x1x128xf32>
    %67 = vector.broadcast %60 : vector<2x1x128xf32> to vector<2x16x128xf32>
    %68 = arith.subf %53, %67 : vector<2x16x128xf32>
    %cst_22 = arith.constant 9.99999974E-6 : f32
    %69 = vector.broadcast %cst_22 : f32 to vector<2x1x128xf32>
    %70 = arith.addf %66, %69 : vector<2x1x128xf32>
    %71 = math.rsqrt %70 : vector<2x1x128xf32>
    %72 = vector.broadcast %71 : vector<2x1x128xf32> to vector<2x16x128xf32>
    %73 = arith.mulf %68, %72 : vector<2x16x128xf32>
    %cst_23 = arith.constant 0.000000e+00 : f32
    %74 = vector.broadcast %cst_23 : f32 to vector<2x16x128xf32>
    %75 = arith.maximumf %73, %74 : vector<2x16x128xf32>
    %76 = vector.shape_cast %75 : vector<2x16x128xf32> to vector<32x128xf32>
    %77 = arith.truncf %76 : vector<32x128xf32> to vector<32x128xbf16>
    %c0_24 = arith.constant 0 : index
    %c0_25 = arith.constant 0 : index
    %78 = vector.load %arg6[%c0_24, %c0_25] : memref<128x1024xbf16, #tpu.memory_space<vmem>>, vector<128x1024xbf16>
    %cst_26 = arith.constant dense<0.000000e+00> : vector<32x1024xf32>
    %79 = tpu.matmul %77, %78, %cst_26 {dimension_numbers = #tpu.dot_dimension_numbers<[1], [0], [0], [1], [0, 0, 1, 1], [], []>} : vector<32x128xbf16>, vector<128x1024xbf16>, vector<32x1024xf32> -> vector<32x1024xf32>
    %c0_27 = arith.constant 0 : index
    %c0_28 = arith.constant 0 : index
    %80 = vector.load %arg7[%c0_27, %c0_28] : memref<1x1024xf32, #tpu.memory_space<vmem>>, vector<1x1024xf32>
    %81 = vector.broadcast %80 : vector<1x1024xf32> to vector<32x1024xf32>
    %82 = arith.addf %79, %81 : vector<32x1024xf32>
    %83 = vector.shape_cast %82 : vector<32x1024xf32> to vector<2x16x1024xf32>
    %cst_29 = arith.constant dense<0.000000e+00> : vector<2x1024xf32>
    %84 = vector.multi_reduction <add>, %83, %cst_29 [1] : vector<2x16x1024xf32> to vector<2x1024xf32>
    %85 = vector.shape_cast %84 : vector<2x1024xf32> to vector<2x1x1024xf32>
    %86 = arith.mulf %83, %83 : vector<2x16x1024xf32>
    %cst_30 = arith.constant dense<0.000000e+00> : vector<2x1024xf32>
    %87 = vector.multi_reduction <add>, %86, %cst_30 [1] : vector<2x16x1024xf32> to vector<2x1024xf32>
    %88 = vector.shape_cast %87 : vector<2x1024xf32> to vector<2x1x1024xf32>
    %cst_31 = arith.constant 6.250000e-02 : f32
    %89 = vector.broadcast %cst_31 : f32 to vector<2x1x1024xf32>
    %90 = arith.mulf %85, %89 : vector<2x1x1024xf32>
    %cst_32 = arith.constant 6.250000e-02 : f32
    %91 = vector.broadcast %cst_32 : f32 to vector<2x1x1024xf32>
    %92 = arith.mulf %88, %91 : vector<2x1x1024xf32>
    %93 = arith.mulf %90, %90 : vector<2x1x1024xf32>
    %94 = arith.subf %92, %93 : vector<2x1x1024xf32>
    %cst_33 = arith.constant 0.000000e+00 : f32
    %95 = vector.broadcast %cst_33 : f32 to vector<2x1x1024xf32>
    %96 = arith.maximumf %94, %95 : vector<2x1x1024xf32>
    %97 = vector.broadcast %90 : vector<2x1x1024xf32> to vector<2x16x1024xf32>
    %98 = arith.subf %83, %97 : vector<2x16x1024xf32>
    %cst_34 = arith.constant 9.99999974E-6 : f32
    %99 = vector.broadcast %cst_34 : f32 to vector<2x1x1024xf32>
    %100 = arith.addf %96, %99 : vector<2x1x1024xf32>
    %101 = math.rsqrt %100 : vector<2x1x1024xf32>
    %102 = vector.broadcast %101 : vector<2x1x1024xf32> to vector<2x16x1024xf32>
    %103 = arith.mulf %98, %102 : vector<2x16x1024xf32>
    %cst_35 = arith.constant 0.000000e+00 : f32
    %104 = vector.broadcast %cst_35 : f32 to vector<2x16x1024xf32>
    %105 = arith.maximumf %103, %104 : vector<2x16x1024xf32>
    %cst_36 = arith.constant dense<0xFF800000> : vector<2x1024xf32>
    %106 = vector.multi_reduction <maximumf>, %105, %cst_36 [1] : vector<2x16x1024xf32> to vector<2x1024xf32>
    %107 = arith.truncf %106 : vector<2x1024xf32> to vector<2x1024xbf16>
    %c0_37 = arith.constant 0 : index
    %c0_38 = arith.constant 0 : index
    %108 = vector.load %arg8[%c0_37, %c0_38] : memref<1024x512xbf16, #tpu.memory_space<vmem>>, vector<1024x512xbf16>
    %cst_39 = arith.constant dense<0.000000e+00> : vector<2x512xf32>
    %109 = tpu.matmul %107, %108, %cst_39 {dimension_numbers = #tpu.dot_dimension_numbers<[1], [0], [0], [1], [0, 0, 1, 1], [], []>} : vector<2x1024xbf16>, vector<1024x512xbf16>, vector<2x512xf32> -> vector<2x512xf32>
    %c0_40 = arith.constant 0 : index
    %c0_41 = arith.constant 0 : index
    %110 = vector.load %arg9[%c0_40, %c0_41] : memref<1x512xf32, #tpu.memory_space<vmem>>, vector<1x512xf32>
    %111 = vector.broadcast %110 : vector<1x512xf32> to vector<2x512xf32>
    %112 = arith.addf %109, %111 : vector<2x512xf32>
    %cst_42 = arith.constant dense<0.000000e+00> : vector<2xf32>
    %113 = vector.multi_reduction <add>, %112, %cst_42 [1] : vector<2x512xf32> to vector<2xf32>
    %114 = vector.shape_cast %113 : vector<2xf32> to vector<2x1xf32>
    %115 = arith.mulf %112, %112 : vector<2x512xf32>
    %cst_43 = arith.constant dense<0.000000e+00> : vector<2xf32>
    %116 = vector.multi_reduction <add>, %115, %cst_43 [1] : vector<2x512xf32> to vector<2xf32>
    %117 = vector.shape_cast %116 : vector<2xf32> to vector<2x1xf32>
    %cst_44 = arith.constant 0.001953125 : f32
    %118 = vector.broadcast %cst_44 : f32 to vector<2x1xf32>
    %119 = arith.mulf %114, %118 : vector<2x1xf32>
    %cst_45 = arith.constant 0.001953125 : f32
    %120 = vector.broadcast %cst_45 : f32 to vector<2x1xf32>
    %121 = arith.mulf %117, %120 : vector<2x1xf32>
    %122 = arith.mulf %119, %119 : vector<2x1xf32>
    %123 = arith.subf %121, %122 : vector<2x1xf32>
    %cst_46 = arith.constant 0.000000e+00 : f32
    %124 = vector.broadcast %cst_46 : f32 to vector<2x1xf32>
    %125 = arith.maximumf %123, %124 : vector<2x1xf32>
    %126 = vector.broadcast %119 : vector<2x1xf32> to vector<2x512xf32>
    %127 = arith.subf %112, %126 : vector<2x512xf32>
    %cst_47 = arith.constant 9.99999974E-6 : f32
    %128 = vector.broadcast %cst_47 : f32 to vector<2x1xf32>
    %129 = arith.addf %125, %128 : vector<2x1xf32>
    %130 = math.rsqrt %129 : vector<2x1xf32>
    %131 = vector.broadcast %130 : vector<2x1xf32> to vector<2x512xf32>
    %132 = arith.mulf %127, %131 : vector<2x512xf32>
    %cst_48 = arith.constant 0.000000e+00 : f32
    %133 = vector.broadcast %cst_48 : f32 to vector<2x512xf32>
    %134 = arith.maximumf %132, %133 : vector<2x512xf32>
    %135 = arith.truncf %134 : vector<2x512xf32> to vector<2x512xbf16>
    %c0_49 = arith.constant 0 : index
    %c0_50 = arith.constant 0 : index
    %136 = vector.load %arg10[%c0_49, %c0_50] : memref<512x256xbf16, #tpu.memory_space<vmem>>, vector<512x256xbf16>
    %cst_51 = arith.constant dense<0.000000e+00> : vector<2x256xf32>
    %137 = tpu.matmul %135, %136, %cst_51 {dimension_numbers = #tpu.dot_dimension_numbers<[1], [0], [0], [1], [0, 0, 1, 1], [], []>} : vector<2x512xbf16>, vector<512x256xbf16>, vector<2x256xf32> -> vector<2x256xf32>
    %c0_52 = arith.constant 0 : index
    %c0_53 = arith.constant 0 : index
    %138 = vector.load %arg11[%c0_52, %c0_53] : memref<1x256xf32, #tpu.memory_space<vmem>>, vector<1x256xf32>
    %139 = vector.broadcast %138 : vector<1x256xf32> to vector<2x256xf32>
    %140 = arith.addf %137, %139 : vector<2x256xf32>
    %cst_54 = arith.constant dense<0.000000e+00> : vector<2xf32>
    %141 = vector.multi_reduction <add>, %140, %cst_54 [1] : vector<2x256xf32> to vector<2xf32>
    %142 = vector.shape_cast %141 : vector<2xf32> to vector<2x1xf32>
    %143 = arith.mulf %140, %140 : vector<2x256xf32>
    %cst_55 = arith.constant dense<0.000000e+00> : vector<2xf32>
    %144 = vector.multi_reduction <add>, %143, %cst_55 [1] : vector<2x256xf32> to vector<2xf32>
    %145 = vector.shape_cast %144 : vector<2xf32> to vector<2x1xf32>
    %cst_56 = arith.constant 3.906250e-03 : f32
    %146 = vector.broadcast %cst_56 : f32 to vector<2x1xf32>
    %147 = arith.mulf %142, %146 : vector<2x1xf32>
    %cst_57 = arith.constant 3.906250e-03 : f32
    %148 = vector.broadcast %cst_57 : f32 to vector<2x1xf32>
    %149 = arith.mulf %145, %148 : vector<2x1xf32>
    %150 = arith.mulf %147, %147 : vector<2x1xf32>
    %151 = arith.subf %149, %150 : vector<2x1xf32>
    %cst_58 = arith.constant 0.000000e+00 : f32
    %152 = vector.broadcast %cst_58 : f32 to vector<2x1xf32>
    %153 = arith.maximumf %151, %152 : vector<2x1xf32>
    %154 = vector.broadcast %147 : vector<2x1xf32> to vector<2x256xf32>
    %155 = arith.subf %140, %154 : vector<2x256xf32>
    %cst_59 = arith.constant 9.99999974E-6 : f32
    %156 = vector.broadcast %cst_59 : f32 to vector<2x1xf32>
    %157 = arith.addf %153, %156 : vector<2x1xf32>
    %158 = math.rsqrt %157 : vector<2x1xf32>
    %159 = vector.broadcast %158 : vector<2x1xf32> to vector<2x256xf32>
    %160 = arith.mulf %155, %159 : vector<2x256xf32>
    %cst_60 = arith.constant 0.000000e+00 : f32
    %161 = vector.broadcast %cst_60 : f32 to vector<2x256xf32>
    %162 = arith.maximumf %160, %161 : vector<2x256xf32>
    %163 = arith.truncf %162 : vector<2x256xf32> to vector<2x256xbf16>
    %c0_61 = arith.constant 0 : index
    %c0_62 = arith.constant 0 : index
    %164 = vector.load %arg12[%c0_61, %c0_62] : memref<256x128xbf16, #tpu.memory_space<vmem>>, vector<256x128xbf16>
    %cst_63 = arith.constant dense<0.000000e+00> : vector<2x128xf32>
    %165 = tpu.matmul %163, %164, %cst_63 {dimension_numbers = #tpu.dot_dimension_numbers<[1], [0], [0], [1], [0, 0, 1, 1], [], []>} : vector<2x256xbf16>, vector<256x128xbf16>, vector<2x128xf32> -> vector<2x128xf32>
    %c0_64 = arith.constant 0 : index
    %c0_65 = arith.constant 0 : index
    %166 = vector.load %arg13[%c0_64, %c0_65] : memref<1x128xf32, #tpu.memory_space<vmem>>, vector<1x128xf32>
    %167 = vector.broadcast %166 : vector<1x128xf32> to vector<2x128xf32>
    %168 = arith.addf %165, %167 : vector<2x128xf32>
    %169 = tpu.iota {dimensions = array<i32: 1>} : vector<2x128xi32>
    %c9_i32 = arith.constant 9 : i32
    %170 = vector.broadcast %c9_i32 : i32 to vector<2x128xi32>
    %171 = arith.cmpi slt, %169, %170 : vector<2x128xi32>
    %c4_i32 = arith.constant 4 : i32
    %c0_i32 = arith.constant 0 : i32
    %172 = arith.cmpi eq, %c4_i32, %c0_i32 : i32
    %c1_i32 = arith.constant 1 : i32
    %173 = arith.select %172, %c1_i32, %c4_i32 : i32
    %174 = vector.broadcast %173 : i32 to vector<2x128xi32>
    %175 = arith.remsi %169, %174 : vector<2x128xi32>
    %c0_i32_66 = arith.constant 0 : i32
    %176 = vector.broadcast %c0_i32_66 : i32 to vector<2x128xi32>
    %177 = arith.cmpi ne, %175, %176 : vector<2x128xi32>
    %c0_i32_67 = arith.constant 0 : i32
    %178 = vector.broadcast %c0_i32_67 : i32 to vector<2x128xi32>
    %179 = arith.cmpi slt, %175, %178 : vector<2x128xi32>
    %c0_i32_68 = arith.constant 0 : i32
    %180 = arith.cmpi slt, %173, %c0_i32_68 : i32
    %181 = vector.broadcast %180 : i1 to vector<2x128xi1>
    %182 = vector.broadcast %181 : vector<2x128xi1> to vector<2x128xi1>
    %183 = arith.xori %179, %182 : vector<2x128xi1>
    %184 = arith.andi %183, %177 : vector<2x128xi1>
    %185 = vector.broadcast %173 : i32 to vector<2x128xi32>
    %186 = arith.addi %175, %185 : vector<2x128xi32>
    %187 = arith.select %184, %186, %175 : vector<2x128xi1>, vector<2x128xi32>
    %c0_i32_69 = arith.constant 0 : i32
    %188 = vector.broadcast %c0_i32_69 : i32 to vector<2x128xi32>
    %189 = arith.cmpi eq, %187, %188 : vector<2x128xi32>
    %190 = arith.andi %171, %189 : vector<2x128xi1>
    %cst_70 = arith.constant 1.000000e+00 : f32
    %cst_71 = arith.constant 0.000000e+00 : f32
    %191 = vector.broadcast %cst_70 : f32 to vector<2x128xf32>
    %192 = vector.broadcast %cst_71 : f32 to vector<2x128xf32>
    %193 = arith.select %190, %191, %192 : vector<2x128xi1>, vector<2x128xf32>
    %194 = arith.addf %168, %193 : vector<2x128xf32>
    %c0_72 = arith.constant 0 : index
    %c0_73 = arith.constant 0 : index
    %195 = vector.load %arg14[%c0_72, %c0_73] : memref<2x128xf32, #tpu.memory_space<vmem>>, vector<2x128xf32>
    tpu.vector_store %arg14[%c0_72, %c0_73], %194 {strides = array<i32>} : memref<2x128xf32, #tpu.memory_space<vmem>>, vector<2x128xf32>,
    return
  }
  func.func @transform_0(%arg0: i32) -> (i32, i32, i32) {
    %c0_i32 = arith.constant 0 : i32
    %c0_i32_0 = arith.constant 0 : i32
    %c0_i32_1 = arith.constant 0 : i32
    return %arg0, %c0_i32, %c0_i32_0 : i32, i32, i32
  }
  func.func @transform_1(%arg0: i32) -> (i32, i32) {
    %c0_i32 = arith.constant 0 : i32
    %c0_i32_0 = arith.constant 0 : i32
    %c0_i32_1 = arith.constant 0 : i32
    return %c0_i32, %c0_i32_0 : i32, i32
  }
  func.func @transform_2(%arg0: i32) -> (i32, i32) {
    %c0_i32 = arith.constant 0 : i32
    %c0_i32_0 = arith.constant 0 : i32
    %c0_i32_1 = arith.constant 0 : i32
    return %c0_i32, %c0_i32_0 : i32, i32
  }
  func.func @transform_3(%arg0: i32) -> (i32, i32) {
    %c0_i32 = arith.constant 0 : i32
    %c0_i32_0 = arith.constant 0 : i32
    %c0_i32_1 = arith.constant 0 : i32
    return %c0_i32, %c0_i32_0 : i32, i32
  }
  func.func @transform_4(%arg0: i32) -> (i32, i32) {
    %c0_i32 = arith.constant 0 : i32
    %c0_i32_0 = arith.constant 0 : i32
    %c0_i32_1 = arith.constant 0 : i32
    return %c0_i32, %c0_i32_0 : i32, i32
  }
  func.func @transform_5(%arg0: i32) -> (i32, i32) {
    %c0_i32 = arith.constant 0 : i32
    %c0_i32_0 = arith.constant 0 : i32
    %c0_i32_1 = arith.constant 0 : i32
    return %c0_i32, %c0_i32_0 : i32, i32
  }
  func.func @transform_6(%arg0: i32) -> (i32, i32) {
    %c0_i32 = arith.constant 0 : i32
    %c0_i32_0 = arith.constant 0 : i32
    %c0_i32_1 = arith.constant 0 : i32
    return %c0_i32, %c0_i32_0 : i32, i32
  }
  func.func @transform_7(%arg0: i32) -> (i32, i32) {
    %c0_i32 = arith.constant 0 : i32
    %c0_i32_0 = arith.constant 0 : i32
    %c0_i32_1 = arith.constant 0 : i32
    return %c0_i32, %c0_i32_0 : i32, i32
  }
  func.func @transform_8(%arg0: i32) -> (i32, i32) {
    %c0_i32 = arith.constant 0 : i32
    %c0_i32_0 = arith.constant 0 : i32
    %c0_i32_1 = arith.constant 0 : i32
    return %c0_i32, %c0_i32_0 : i32, i32
  }
  func.func @transform_9(%arg0: i32) -> (i32, i32) {
    %c0_i32 = arith.constant 0 : i32
    %c0_i32_0 = arith.constant 0 : i32
    %c0_i32_1 = arith.constant 0 : i32
    return %c0_i32, %c0_i32_0 : i32, i32
  }
  func.func @transform_10(%arg0: i32) -> (i32, i32) {
    %c0_i32 = arith.constant 0 : i32
    %c0_i32_0 = arith.constant 0 : i32
    %c0_i32_1 = arith.constant 0 : i32
    return %c0_i32, %c0_i32_0 : i32, i32
  }
  func.func @transform_11(%arg0: i32) -> (i32, i32) {
    %c0_i32 = arith.constant 0 : i32
    %c0_i32_0 = arith.constant 0 : i32
    %c0_i32_1 = arith.constant 0 : i32
    return %c0_i32, %c0_i32_0 : i32, i32
  }
  func.func @transform_12(%arg0: i32) -> (i32, i32) {
    %c0_i32 = arith.constant 0 : i32
    %c0_i32_0 = arith.constant 0 : i32
    %c0_i32_1 = arith.constant 0 : i32
    return %c0_i32, %c0_i32_0 : i32, i32
  }
  func.func @transform_13(%arg0: i32) -> (i32, i32) {
    %c0_i32 = arith.constant 0 : i32
    %c0_i32_0 = arith.constant 0 : i32
    return %arg0, %c0_i32 : i32, i32
  }
}

</mosaic_0001>

<llo_original>
// kernel: _stn3d_call.1
$region0: #{_stn3d_call.1}
  #allocation0 [shape = 'u32[]', space=smem, size = 0x4, offset = 0x4, fixed_abs, tag = 'smem constant byte address 0x4 - core index']
  #allocation1 [shape = 'u32[144,128]{1,0:T(1,128)}', space=vmem, size = 0x12000, scoped, tag = 'internal scratch']
  %s0 = inlined_call_operand.vmem [shape: f32[2,16,3], index: 0, kind: input, shape index: {}]
  %s1 = inlined_call_operand.vmem [shape: f32[3,64], index: 1, kind: input, shape index: {}]
  %s2 = inlined_call_operand.vmem [shape: f32[1,64], index: 2, kind: input, shape index: {}]
  %s3 = inlined_call_operand.vmem [shape: bf16[64,128], index: 3, kind: input, shape index: {}]
  %s4 = inlined_call_operand.vmem [shape: f32[1,128], index: 4, kind: input, shape index: {}]
  %s5 = inlined_call_operand.hbm [shape: bf16[128,1024], index: 5, kind: input, shape index: {}]
  %s6 = inlined_call_operand.vmem [shape: f32[1,1024], index: 6, kind: input, shape index: {}]
  %s7 = inlined_call_operand.hbm [shape: bf16[1024,512], index: 7, kind: input, shape index: {}]
  %s8 = inlined_call_operand.vmem [shape: f32[1,512], index: 8, kind: input, shape index: {}]
  %s9 = inlined_call_operand.hbm [shape: bf16[512,256], index: 9, kind: input, shape index: {}]
  %s10 = inlined_call_operand.vmem [shape: f32[1,256], index: 10, kind: input, shape index: {}]
  %s11 = inlined_call_operand.hbm [shape: bf16[256,128], index: 11, kind: input, shape index: {}]
  %s12 = inlined_call_operand.vmem [shape: f32[1,128], index: 12, kind: input, shape index: {}]
  %s13 = inlined_call_operand.vmem [shape: f32[2,128], index: 13, kind: output, shape index: {}]
  %s14 = sld [smem:[#allocation0]]
  $region78: #{_stn3d_call.1} parent=0
    _
  %s16 = ssub.s32 1, %s14
  %s17 = scalar_select 0, %s16, %s14
  $region1: #{_stn3d_call.1} parent=0
    #allocation2 [shape = 'u8[262144]{0}', space=vmem, size = 0x40000, scoped, tag = 'input window, operand 5, single buffered']
    #allocation3 [shape = 's32[1]{0}', space=sflag, size = 0x4, scoped, tag = 'scoped memory for _stn3d_call.1']
    #allocation4 [shape = 'u8[1048576]{0}', space=vmem, size = 0x100000, scoped, tag = 'input window, operand 7, single buffered']
    #allocation5 [shape = 's32[1]{0}', space=sflag, size = 0x4, scoped, tag = 'scoped memory for _stn3d_call.1']
    #allocation6 [shape = 'u8[262144]{0}', space=vmem, size = 0x40000, scoped, tag = 'input window, operand 9, single buffered']
    #allocation7 [shape = 'u8[65536]{0}', space=vmem, size = 0x10000, scoped, tag = 'input window, operand 11, single buffered']
    #allocation8 [shape = 's32[1]{0}', space=sflag, size = 0x4, scoped, tag = 'scoped memory for _stn3d_call.1']
    %18 = vsyncpa [#allocation3], 0
    %19 = vsyncpa [#allocation5], 0
    %20 = vsyncpa [#allocation8], 0
    // Predicated region
    $region2: #{_stn3d_call.1} parent=1 // pred_check
      _
    $region3: #{_stn3d_call.1} parent=1 // pred_check_branch
      %22 = sbr.rel (0) target = $region5
    $region4: #{_stn3d_call.1} parent=1 // pred_region
      _
    $region5: #{_stn3d_call.1} parent=1 // pred_fallthru
      _
    // Predicated region
    $region6: #{_stn3d_call.1} parent=1 // pred_check
      _
    $region7: #{_stn3d_call.1} parent=1 // pred_check_branch
      %24 = sbr.rel (0) target = $region9
    $region8: #{_stn3d_call.1} parent=1 // pred_region
      _
    $region9: #{_stn3d_call.1} parent=1 // pred_fallthru
      _
    // Predicated region
    $region10: #{_stn3d_call.1} parent=1 // pred_check
      _
    $region11: #{_stn3d_call.1} parent=1 // pred_check_branch
      %26 = sbr.rel (0) target = $region13
    $region12: #{_stn3d_call.1} parent=1 // pred_region
      _
    $region13: #{_stn3d_call.1} parent=1 // pred_fallthru
      _
    // Predicated region
    $region14: #{_stn3d_call.1} parent=1 // pred_check
      _
    $region15: #{_stn3d_call.1} parent=1 // pred_check_branch
      %28 = sbr.rel (0) target = $region17
    $region16: #{_stn3d_call.1} parent=1 // pred_region
      _
    $region17: #{_stn3d_call.1} parent=1 // pred_fallthru
      _
    // Predicated region
    $region18: #{_stn3d_call.1} parent=1 // pred_check
      _
    $region19: #{_stn3d_call.1} parent=1 // pred_check_branch
      %30 = sbr.rel (0) target = $region21
    $region20: #{_stn3d_call.1} parent=1 // pred_region
      _
    $region21: #{_stn3d_call.1} parent=1 // pred_fallthru
      _
    // Predicated region
    $region22: #{_stn3d_call.1} parent=1 // pred_check
      _
    $region23: #{_stn3d_call.1} parent=1 // pred_check_branch
      %32 = sbr.rel (0) target = $region25
    $region24: #{_stn3d_call.1} parent=1 // pred_region
      %s34 = ssub.s32 8192, 8192
      %35 = vsyncadd [#allocation3], %s34
      %s36 = sshll.u32 [#allocation2], 4
      %s37 = int_to_ptr.vmem [resolvable:$true] %s36
      %42 = dma.hbm_to_vmem [thread:$0]  %s5, 8192, %s37, [#allocation3], 512, 512, 32
    $region25: #{_stn3d_call.1} parent=1 // pred_fallthru
      _
    // Predicated region
    $region26: #{_stn3d_call.1} parent=1 // pred_check
      _
    $region27: #{_stn3d_call.1} parent=1 // pred_check_branch
      %44 = sbr.rel (0) target = $region29
    $region28: #{_stn3d_call.1} parent=1 // pred_region
      _
    $region29: #{_stn3d_call.1} parent=1 // pred_fallthru
      _
    // Predicated region
    $region30: #{_stn3d_call.1} parent=1 // pred_check
      _
    $region31: #{_stn3d_call.1} parent=1 // pred_check_branch
      %46 = sbr.rel (0) target = $region33
    $region32: #{_stn3d_call.1} parent=1 // pred_region
      %s48 = ssub.s32 32768, 32768
      %49 = vsyncadd [#allocation5], %s48
      %s50 = sshll.u32 [#allocation4], 4
      %s51 = int_to_ptr.vmem [resolvable:$true] %s50
      %56 = dma.hbm_to_vmem [thread:$0]  %s7, 32768, %s51, [#allocation5], 256, 256, 16
    $region33: #{_stn3d_call.1} parent=1 // pred_fallthru
      _
    // Predicated region
    $region34: #{_stn3d_call.1} parent=1 // pred_check
      _
    $region35: #{_stn3d_call.1} parent=1 // pred_check_branch
      %58 = sbr.rel (0) target = $region37
    $region36: #{_stn3d_call.1} parent=1 // pred_region
      _
    $region37: #{_stn3d_call.1} parent=1 // pred_fallthru
      _
    // Predicated region
    $region38: #{_stn3d_call.1} parent=1 // pred_check
      _
    $region39: #{_stn3d_call.1} parent=1 // pred_check_branch
      %60 = sbr.rel (0) target = $region41
    $region40: #{_stn3d_call.1} parent=1 // pred_region
      %s62 = ssub.s32 8192, 8192
      %63 = vsyncadd [#allocation5], %s62
      %s64 = sshll.u32 [#allocation6], 4
      %s65 = int_to_ptr.vmem [resolvable:$true] %s64
      %70 = dma.hbm_to_vmem [thread:$0]  %s9, 8192, %s65, [#allocation5], 128, 128, 8
    $region41: #{_stn3d_call.1} parent=1 // pred_fallthru
      _
    // Predicated region
    $region42: #{_stn3d_call.1} parent=1 // pred_check
      _
    $region43: #{_stn3d_call.1} parent=1 // pred_check_branch
      %72 = sbr.rel (0) target = $region45
    $region44: #{_stn3d_call.1} parent=1 // pred_region
      _
    $region45: #{_stn3d_call.1} parent=1 // pred_fallthru
      _
    // Predicated region
    $region46: #{_stn3d_call.1} parent=1 // pred_check
      _
    $region47: #{_stn3d_call.1} parent=1 // pred_check_branch
      %74 = sbr.rel (0) target = $region49
    $region48: #{_stn3d_call.1} parent=1 // pred_region
      %s76 = ssub.s32 2048, 2048
      %77 = vsyncadd [#allocation8], %s76
      %s78 = sshll.u32 [#allocation7], 4
      %s79 = int_to_ptr.vmem [resolvable:$true] %s78
      %84 = dma.hbm_to_vmem [thread:$0]  %s11, 2048, %s79, [#allocation8], 64, 64, 4
    $region49: #{_stn3d_call.1} parent=1 // pred_fallthru
      _
    // Predicated region
    $region50: #{_stn3d_call.1} parent=1 // pred_check
      _
    $region51: #{_stn3d_call.1} parent=1 // pred_check_branch
      %86 = sbr.rel (0) target = $region53
    $region52: #{_stn3d_call.1} parent=1 // pred_region
      _
    $region53: #{_stn3d_call.1} parent=1 // pred_fallthru
      _
    // Predicated region
    $region54: #{_stn3d_call.1} parent=1 // pred_check
      _
    $region55: #{_stn3d_call.1} parent=1 // pred_check_branch
      %88 = sbr.rel (0) target = $region57
    $region56: #{_stn3d_call.1} parent=1 // pred_region
      %89 = dma.done [#allocation3], 8192
    $region57: #{_stn3d_call.1} parent=1 // pred_fallthru
      _
    // Predicated region
    $region58: #{_stn3d_call.1} parent=1 // pred_check
      _
    $region59: #{_stn3d_call.1} parent=1 // pred_check_branch
      %91 = sbr.rel (0) target = $region61
    $region60: #{_stn3d_call.1} parent=1 // pred_region
      %92 = dma.done [#allocation5], 32768
    $region61: #{_stn3d_call.1} parent=1 // pred_fallthru
      _
    // Predicated region
    $region62: #{_stn3d_call.1} parent=1 // pred_check
      _
    $region63: #{_stn3d_call.1} parent=1 // pred_check_branch
      %94 = sbr.rel (0) target = $region65
    $region64: #{_stn3d_call.1} parent=1 // pred_region
      %95 = dma.done [#allocation5], 8192
    $region65: #{_stn3d_call.1} parent=1 // pred_fallthru
      _
    // Predicated region
    $region66: #{_stn3d_call.1} parent=1 // pred_check
      _
    $region67: #{_stn3d_call.1} parent=1 // pred_check_branch
      %97 = sbr.rel (0) target = $region69
    $region68: #{_stn3d_call.1} parent=1 // pred_region
      %98 = dma.done [#allocation8], 2048
    $region69: #{_stn3d_call.1} parent=1 // pred_fallthru
      _
    %v100 = vld [vmem:[%s0] sm:$0xff]
    %v101 = vld [vmem:[%s0 + $0x8] sm:$0xff]
    %v102 = vld [vmem:[%s0 + $0x10] sm:$0xff]
    %v103 = vld [vmem:[%s0 + $0x18] sm:$0xff]
    %v104 = vld [vmem:[%s1] sm:$0x7]
    %106 = vset.pattern.permute.xlu0 0
    %107 = vperm.xlu0 %106, %v100
    %v108 = vpop.permute.xlu0 %107
    %111 = vset.pattern.permute.xlu0 0
    %112 = vperm.xlu0 %111, %v101
    %v113 = vpop.permute.xlu0 %112
    %116 = vset.pattern.permute.xlu0 0
    %117 = vperm.xlu0 %116, %v102
    %v118 = vpop.permute.xlu0 %117
    %121 = vset.pattern.permute.xlu0 0
    %122 = vperm.xlu0 %121, %v103
    %v123 = vpop.permute.xlu0 %122
    %v125 = vlaneseq
    %v126 = vshrl.u32 %v125, 7
    %v127 = vsub.s32 0, %v126
    %v128 = vrot.slane %v104, %v127
    %v129 = vmul.f32 %v108, %v128
    %v130 = vmul.f32 %v113, %v128
    %v131 = vmul.f32 %v118, %v128
    %v132 = vmul.f32 %v123, %v128
    %v133 = vld [vmem:[%s2] sm:$0x1]
    %v135 = vlaneseq
    %v136 = vshrl.u32 %v135, 7
    %v137 = vsub.s32 0, %v136
    %v138 = vrot.slane %v133, %v137
    %v140 = vadd.f32 %v129, %v138
    %v141 = vadd.f32 %v130, %v138
    %v142 = vadd.f32 %v131, %v138
    %v143 = vadd.f32 %v132, %v138
    %144 = vset.pattern.permute.xlu0 1
    %145 = vperm.xlu0 %144, %v100
    %v146 = vpop.permute.xlu0 %145
    %148 = vset.pattern.permute.xlu0 1
    %149 = vperm.xlu0 %148, %v101
    %v150 = vpop.permute.xlu0 %149
    %152 = vset.pattern.permute.xlu0 1
    %153 = vperm.xlu0 %152, %v102
    %v154 = vpop.permute.xlu0 %153
    %156 = vset.pattern.permute.xlu0 1
    %157 = vperm.xlu0 %156, %v103
    %v158 = vpop.permute.xlu0 %157
    %v160 = vlaneseq
    %v161 = vshrl.u32 %v160, 7
    %v162 = vsub.s32 1, %v161
    %v163 = vrot.slane %v104, %v162
    %v164 = vmul.f32 %v146, %v163
    %v165 = vmul.f32 %v150, %v163
    %v166 = vmul.f32 %v154, %v163
    %v167 = vmul.f32 %v158, %v163
    %v168 = vadd.f32 %v140, %v164
    %v169 = vadd.f32 %v141, %v165
    %v170 = vadd.f32 %v142, %v166
    %v171 = vadd.f32 %v143, %v167
    %172 = vset.pattern.permute.xlu0 2
    %173 = vperm.xlu0 %172, %v100
    %v174 = vpop.permute.xlu0 %173
    %176 = vset.pattern.permute.xlu0 2
    %177 = vperm.xlu0 %176, %v101
    %v178 = vpop.permute.xlu0 %177
    %180 = vset.pattern.permute.xlu0 2
    %181 = vperm.xlu0 %180, %v102
    %v182 = vpop.permute.xlu0 %181
    %184 = vset.pattern.permute.xlu0 2
    %185 = vperm.xlu0 %184, %v103
    %v186 = vpop.permute.xlu0 %185
    %v188 = vlaneseq
    %v189 = vshrl.u32 %v188, 7
    %v190 = vsub.s32 2, %v189
    %v191 = vrot.slane %v104, %v190
    %v192 = vmul.f32 %v174, %v191
    %v193 = vmul.f32 %v178, %v191
    %v194 = vmul.f32 %v182, %v191
    %v195 = vmul.f32 %v186, %v191
    %v196 = vadd.f32 %v168, %v192
    %v197 = vadd.f32 %v169, %v193
    %v198 = vadd.f32 %v170, %v194
    %v199 = vadd.f32 %v171, %v195
    %vm200 = vcmask 523264
    %v201 = vsel %vm200, %v196, 0.0
    %v202 = vsel %vm200, %v197, 0.0
    %v203 = vadd.f32 %v201, %v202
    %v204 = vrot.slane %v203, 4
    %v205 = vadd.f32 %v203, %v204
    %v206 = vrot.slane %v205, 2
    %v207 = vadd.f32 %v205, %v206
    %v208 = vrot.slane %v207, 1
    %v209 = vadd.f32 %v207, %v208
    %v210 = vsel %vm200, %v198, 0.0
    %v211 = vsel %vm200, %v199, 0.0
    %v212 = vadd.f32 %v210, %v211
    %v213 = vrot.slane %v212, 4
    %v214 = vadd.f32 %v212, %v213
    %v215 = vrot.slane %v214, 2
    %v216 = vadd.f32 %v214, %v215
    %v217 = vrot.slane %v216, 1
    %v218 = vadd.f32 %v216, %v217
    %v219 = vmul.f32 %v196, %v196
    %v220 = vmul.f32 %v197, %v197
    %v221 = vmul.f32 %v198, %v198
    %v222 = vmul.f32 %v199, %v199
    %v223 = vsel %vm200, %v219, 0.0
    %v224 = vsel %vm200, %v220, 0.0
    %v225 = vadd.f32 %v223, %v224
    %v226 = vrot.slane %v225, 4
    %v227 = vadd.f32 %v225, %v226
    %v228 = vrot.slane %v227, 2
    %v229 = vadd.f32 %v227, %v228
    %v230 = vrot.slane %v229, 1
    %v231 = vadd.f32 %v229, %v230
    %v232 = vsel %vm200, %v221, 0.0
    %v233 = vsel %vm200, %v222, 0.0
    %v234 = vadd.f32 %v232, %v233
    %v235 = vrot.slane %v234, 4
    %v236 = vadd.f32 %v234, %v235
    %v237 = vrot.slane %v236, 2
    %v238 = vadd.f32 %v236, %v237
    %v239 = vrot.slane %v238, 1
    %v240 = vadd.f32 %v238, %v239
    %v241 = vmul.f32 %v209, 0.0625
    %v242 = vmul.f32 %v218, 0.0625
    %v243 = vmul.f32 %v231, 0.0625
    %v244 = vmul.f32 %v240, 0.0625
    %v245 = vmul.f32 %v241, %v241
    %v246 = vmul.f32 %v242, %v242
    %v247 = vsub.f32 %v243, %v245
    %v248 = vsub.f32 %v244, %v246
    %v249 = vmax.f32 %v247, 0.0
    %v250 = vmax.f32 %v248, 0.0
    %v251 = vsub.f32 %v196, %v241
    %v252 = vsub.f32 %v197, %v241
    %v253 = vsub.f32 %v198, %v242
    %v254 = vsub.f32 %v199, %v242
    %v255 = vadd.f32 %v249, 1e-05
    %v256 = vadd.f32 %v250, 1e-05
    %v257 = vrsqrt.pop %v255
    %v258 = vrsqrt.pop %v256
    %v259 = vmul.f32 %v251, %v257
    %v260 = vmul.f32 %v252, %v257
    %v261 = vmul.f32 %v253, %v258
    %v262 = vmul.f32 %v254, %v258
    %v263 = vmax.f32 %v259, 0.0
    %v264 = vmax.f32 %v260, 0.0
    %v265 = vmax.f32 %v261, 0.0
    %v266 = vmax.f32 %v262, 0.0
    %v267 = vpack.c.bf16 %v264, %v263
    %v268 = vpack.c.bf16 %v266, %v265
    %v269 = vld [vmem:[%s3] sm:$0xf]
    %v270 = vld [vmem:[%s3 + $0x4] sm:$0xf]
    %v271 = vld [vmem:[%s3 + $0x8] sm:$0xf]
    %v272 = vld [vmem:[%s3 + $0xc] sm:$0xf]
    %v273 = vld [vmem:[%s3 + $0x10] sm:$0xf]
    %v274 = vld [vmem:[%s3 + $0x14] sm:$0xf]
    %v275 = vld [vmem:[%s3 + $0x18] sm:$0xf]
    %v276 = vld [vmem:[%s3 + $0x1c] sm:$0xf]
    %v277 = vld [vmem:[%s4] sm:$0x1]
    %v279 = vlaneseq
    %v280 = vshrl.u32 %v279, 7
    %v281 = vsub.s32 0, %v280
    %v282 = vrot.slane %v277, %v281
    %v292 = vunpack.c.l.b16 %v269
    %v293 = vunpack.c.l.b16 %v270
    %v294 = vunpack.c.l.b16 %v271
    %v295 = vunpack.c.l.b16 %v272
    %v296 = vunpack.c.l.b16 %v273
    %v297 = vunpack.c.l.b16 %v274
    %v298 = vunpack.c.l.b16 %v275
    %v299 = vunpack.c.l.b16 %v276
    %v300 = vpack.c.b16 %v293, %v292
    %v301 = vpack.c.b16 %v295, %v294
    %v302 = vpack.c.b16 %v297, %v296
    %v303 = vpack.c.b16 %v299, %v298
    %v309 = vsel %vm200, %v267, 0
    %v312 = vsel %vm200, %v268, 0
    %314 = vmatprep.subr.bf16.mxu0 0
    %315 = vmatpush1.bf16.msra.mxu0 %v300
    %316 = vmatprep.subr.bf16.mxu0 0
    %317 = vmatpush1.bf16.msra.mxu0 %v301
    %318 = vmatprep.subr.bf16.mxu0 0
    %319 = vmatpush1.bf16.msra.mxu0 %v302
    %320 = vmatprep.subr.bf16.mxu0 0
    %321 = vmatpush1.bf16.msra.mxu0 %v303
    %322 = vmatprep.subr.bf16.mxu0 0
    %323 = vmatpush1.bf16.msra.mxu0 0
    %324 = vmatprep.subr.bf16.mxu0 0
    %325 = vmatpush1.bf16.msra.mxu0 0
    %326 = vmatprep.subr.bf16.mxu0 0
    %327 = vmatpush1.bf16.msra.mxu0 0
    %328 = vmatprep.subr.bf16.mxu0 0
    %329 = vmatpush1.bf16.msra.mxu0 0
    %330 = vmatprep.subr.bf16.mxu0 0
    %331 = vmatpush1.bf16.msra.mxu0 0
    %332 = vmatprep.subr.bf16.mxu0 0
    %333 = vmatpush1.bf16.msra.mxu0 0
    %334 = vmatprep.subr.bf16.mxu0 0
    %335 = vmatpush1.bf16.msra.mxu0 0
    %336 = vmatprep.subr.bf16.mxu0 0
    %337 = vmatpush1.bf16.msra.mxu0 0
    %338 = vmatprep.subr.bf16.mxu0 0
    %339 = vmatpush1.bf16.msra.mxu0 0
    %340 = vmatprep.subr.bf16.mxu0 0
    %341 = vmatpush1.bf16.msra.mxu0 0
    %342 = vmatprep.subr.bf16.mxu0 0
    %343 = vmatpush1.bf16.msra.mxu0 0
    %344 = vmatprep.subr.bf16.mxu0 0
    %345 = vmatpush1.bf16.msra.mxu0 0
    %346 = vmatprep.mubr.bf16.mxu0 0
    %347 = vmatmul.mubr.bf16.gmra.mrb[0].mxu0 %v309
    %v348 = vpop.f32.mrb[0].mxu0
    %v349 = vadd.f32 %v282, %v348
    %v350 = vpop.f32.mrb[0].mxu0
    %v351 = vpop.f32.mrb[0].mxu0
    %v352 = vadd.f32 %v282, %v351
    %v353 = vpop.f32.mrb[0].mxu0
    %354 = vmatprep.mubr.bf16.mxu0 0
    %355 = vmatmul.mubr.bf16.gmra.mrb[0].mxu0 %v312
    %v356 = vpop.f32.mrb[0].mxu0
    %v357 = vadd.f32 %v282, %v356
    %v358 = vpop.f32.mrb[0].mxu0
    %v359 = vpop.f32.mrb[0].mxu0
    %v360 = vadd.f32 %v282, %v359
    %v361 = vpop.f32.mrb[0].mxu0
    %362 = vdwg.mxu0
    %v363 = vadd.f32 %v349, %v352
    %v364 = vrot.slane %v363, 4
    %v365 = vadd.f32 %v363, %v364
    %v366 = vrot.slane %v365, 2
    %v367 = vadd.f32 %v365, %v366
    %v368 = vrot.slane %v367, 1
    %v369 = vadd.f32 %v367, %v368
    %v370 = vadd.f32 %v357, %v360
    %v371 = vrot.slane %v370, 4
    %v372 = vadd.f32 %v370, %v371
    %v373 = vrot.slane %v372, 2
    %v374 = vadd.f32 %v372, %v373
    %v375 = vrot.slane %v374, 1
    %v376 = vadd.f32 %v374, %v375
    %v377 = vmul.f32 %v349, %v349
    %v378 = vmul.f32 %v352, %v352
    %v379 = vmul.f32 %v357, %v357
    %v380 = vmul.f32 %v360, %v360
    %v381 = vadd.f32 %v377, %v378
    %v382 = vrot.slane %v381, 4
    %v383 = vadd.f32 %v381, %v382
    %v384 = vrot.slane %v383, 2
    %v385 = vadd.f32 %v383, %v384
    %v386 = vrot.slane %v385, 1
    %v387 = vadd.f32 %v385, %v386
    %v388 = vadd.f32 %v379, %v380
    %v389 = vrot.slane %v388, 4
    %v390 = vadd.f32 %v388, %v389
    %v391 = vrot.slane %v390, 2
    %v392 = vadd.f32 %v390, %v391
    %v393 = vrot.slane %v392, 1
    %v394 = vadd.f32 %v392, %v393
    %v395 = vmul.f32 %v369, 0.0625
    %v396 = vmul.f32 %v376, 0.0625
    %v397 = vmul.f32 %v387, 0.0625
    %v398 = vmul.f32 %v394, 0.0625
    %v399 = vmul.f32 %v395, %v395
    %v400 = vmul.f32 %v396, %v396
    %v401 = vsub.f32 %v397, %v399
    %v402 = vsub.f32 %v398, %v400
    %v403 = vmax.f32 %v401, 0.0
    %v404 = vmax.f32 %v402, 0.0
    %v405 = vsub.f32 %v349, %v395
    %v406 = vsub.f32 %v352, %v395
    %v407 = vsub.f32 %v357, %v396
    %v408 = vsub.f32 %v360, %v396
    %v409 = vadd.f32 %v403, 1e-05
    %v410 = vadd.f32 %v404, 1e-05
    %v411 = vrsqrt.pop %v409
    %v412 = vrsqrt.pop %v410
    %v413 = vmul.f32 %v405, %v411
    %v414 = vmul.f32 %v406, %v411
    %v415 = vmul.f32 %v407, %v412
    %v416 = vmul.f32 %v408, %v412
    %v417 = vmax.f32 %v413, 0.0
    %v418 = vmax.f32 %v414, 0.0
    %v419 = vmax.f32 %v415, 0.0
    %v420 = vmax.f32 %v416, 0.0
    %v421 = vpack.c.bf16 %v418, %v417
    %v422 = vpack.c.bf16 %v420, %v419
    %v423 = vld [vmem:[#allocation2] sm:$0xff]
    %v424 = vld [vmem:[#allocation2 + $0x8] sm:$0xff]
    %v425 = vld [vmem:[#allocation2 + $0x10] sm:$0xff]
    %v426 = vld [vmem:[#allocation2 + $0x18] sm:$0xff]
    %v427 = vld [vmem:[#allocation2 + $0x20] sm:$0xff]
    %v428 = vld [vmem:[#allocation2 + $0x28] sm:$0xff]
    %v429 = vld [vmem:[#allocation2 + $0x30] sm:$0xff]
    %v430 = vld [vmem:[#allocation2 + $0x38] sm:$0xff]
    %v431 = vld [vmem:[#allocation2 + $0x40] sm:$0xff]
    %v432 = vld [vmem:[#allocation2 + $0x48] sm:$0xff]
    %v433 = vld [vmem:[#allocation2 + $0x50] sm:$0xff]
    %v434 = vld [vmem:[#allocation2 + $0x58] sm:$0xff]
    %v435 = vld [vmem:[#allocation2 + $0x60] sm:$0xff]
    %v436 = vld [vmem:[#allocation2 + $0x68] sm:$0xff]
    %v437 = vld [vmem:[#allocation2 + $0x70] sm:$0xff]
    %v438 = vld [vmem:[#allocation2 + $0x78] sm:$0xff]
    %v439 = vld [vmem:[#allocation2 + $0x80] sm:$0xff]
    %v440 = vld [vmem:[#allocation2 + $0x88] sm:$0xff]
    %v441 = vld [vmem:[#allocation2 + $0x90] sm:$0xff]
    %v442 = vld [vmem:[#allocation2 + $0x98] sm:$0xff]
    %v443 = vld [vmem:[#allocation2 + $0xa0] sm:$0xff]
    %v444 = vld [vmem:[#allocation2 + $0xa8] sm:$0xff]
    %v445 = vld [vmem:[#allocation2 + $0xb0] sm:$0xff]
    %v446 = vld [vmem:[#allocation2 + $0xb8] sm:$0xff]
    %v447 = vld [vmem:[#allocation2 + $0xc0] sm:$0xff]
    %v448 = vld [vmem:[#allocation2 + $0xc8] sm:$0xff]
    %v449 = vld [vmem:[#allocation2 + $0xd0] sm:$0xff]
    %v450 = vld [vmem:[#allocation2 + $0xd8] sm:$0xff]
    %v451 = vld [vmem:[#allocation2 + $0xe0] sm:$0xff]
    %v452 = vld [vmem:[#allocation2 + $0xe8] sm:$0xff]
    %v453 = vld [vmem:[#allocation2 + $0xf0] sm:$0xff]
    %v454 = vld [vmem:[#allocation2 + $0xf8] sm:$0xff]
    %v455 = vld [vmem:[#allocation2 + $0x100] sm:$0xff]
    %v456 = vld [vmem:[#allocation2 + $0x108] sm:$0xff]
    %v457 = vld [vmem:[#allocation2 + $0x110] sm:$0xff]
    %v458 = vld [vmem:[#allocation2 + $0x118] sm:$0xff]
    %v459 = vld [vmem:[#allocation2 + $0x120] sm:$0xff]
    %v460 = vld [vmem:[#allocation2 + $0x128] sm:$0xff]
    %v461 = vld [vmem:[#allocation2 + $0x130] sm:$0xff]
    %v462 = vld [vmem:[#allocation2 + $0x138] sm:$0xff]
    %v463 = vld [vmem:[#allocation2 + $0x140] sm:$0xff]
    %v464 = vld [vmem:[#allocation2 + $0x148] sm:$0xff]
    %v465 = vld [vmem:[#allocation2 + $0x150] sm:$0xff]
    %v466 = vld [vmem:[#allocation2 + $0x158] sm:$0xff]
    %v467 = vld [vmem:[#allocation2 + $0x160] sm:$0xff]
    %v468 = vld [vmem:[#allocation2 + $0x168] sm:$0xff]
    %v469 = vld [vmem:[#allocation2 + $0x170] sm:$0xff]
    %v470 = vld [vmem:[#allocation2 + $0x178] sm:$0xff]
    %v471 = vld [vmem:[#allocation2 + $0x180] sm:$0xff]
    %v472 = vld [vmem:[#allocation2 + $0x188] sm:$0xff]
    %v473 = vld [vmem:[#allocation2 + $0x190] sm:$0xff]
    %v474 = vld [vmem:[#allocation2 + $0x198] sm:$0xff]
    %v475 = vld [vmem:[#allocation2 + $0x1a0] sm:$0xff]
    %v476 = vld [vmem:[#allocation2 + $0x1a8] sm:$0xff]
    %v477 = vld [vmem:[#allocation2 + $0x1b0] sm:$0xff]
    %v478 = vld [vmem:[#allocation2 + $0x1b8] sm:$0xff]
    %v479 = vld [vmem:[#allocation2 + $0x1c0] sm:$0xff]
    %v480 = vld [vmem:[#allocation2 + $0x1c8] sm:$0xff]
    %v481 = vld [vmem:[#allocation2 + $0x1d0] sm:$0xff]
    %v482 = vld [vmem:[#allocation2 + $0x1d8] sm:$0xff]
    %v483 = vld [vmem:[#allocation2 + $0x1e0] sm:$0xff]
    %v484 = vld [vmem:[#allocation2 + $0x1e8] sm:$0xff]
    %v485 = vld [vmem:[#allocation2 + $0x1f0] sm:$0xff]
    %v486 = vld [vmem:[#allocation2 + $0x1f8] sm:$0xff]
    %v487 = vld [vmem:[%s6] sm:$0xff]
    %v489 = vlaneseq
    %v490 = vshrl.u32 %v489, 7
    %v491 = vsub.s32 0, %v490
    %v492 = vrot.slane %v487, %v491
    %v493 = vlaneseq
    %v494 = vshrl.u32 %v493, 7
    %v495 = vsub.s32 1, %v494
    %v496 = vrot.slane %v487, %v495
    %v497 = vlaneseq
    %v498 = vshrl.u32 %v497, 7
    %v499 = vsub.s32 2, %v498
    %v500 = vrot.slane %v487, %v499
    %v501 = vlaneseq
    %v502 = vshrl.u32 %v501, 7
    %v503 = vsub.s32 3, %v502
    %v504 = vrot.slane %v487, %v503
    %v505 = vlaneseq
    %v506 = vshrl.u32 %v505, 7
    %v507 = vsub.s32 4, %v506
    %v508 = vrot.slane %v487, %v507
    %v509 = vlaneseq
    %v510 = vshrl.u32 %v509, 7
    %v511 = vsub.s32 5, %v510
    %v512 = vrot.slane %v487, %v511
    %v513 = vlaneseq
    %v514 = vshrl.u32 %v513, 7
    %v515 = vsub.s32 6, %v514
    %v516 = vrot.slane %v487, %v515
    %v517 = vlaneseq
    %v518 = vshrl.u32 %v517, 7
    %v519 = vsub.s32 7, %v518
    %v520 = vrot.slane %v487, %v519
    %v593 = vunpack.c.l.b16 %v423
    %v594 = vunpack.c.h.b16 %v423
    %v595 = vunpack.c.l.b16 %v424
    %v596 = vunpack.c.h.b16 %v424
    %v597 = vunpack.c.l.b16 %v425
    %v598 = vunpack.c.h.b16 %v425
    %v599 = vunpack.c.l.b16 %v426
    %v600 = vunpack.c.h.b16 %v426
    %v601 = vunpack.c.l.b16 %v427
    %v602 = vunpack.c.h.b16 %v427
    %v603 = vunpack.c.l.b16 %v428
    %v604 = vunpack.c.h.b16 %v428
    %v605 = vunpack.c.l.b16 %v429
    %v606 = vunpack.c.h.b16 %v429
    %v607 = vunpack.c.l.b16 %v430
    %v608 = vunpack.c.h.b16 %v430
    %v609 = vunpack.c.l.b16 %v431
    %v610 = vunpack.c.h.b16 %v431
    %v611 = vunpack.c.l.b16 %v432
    %v612 = vunpack.c.h.b16 %v432
    %v613 = vunpack.c.l.b16 %v433
    %v614 = vunpack.c.h.b16 %v433
    %v615 = vunpack.c.l.b16 %v434
    %v616 = vunpack.c.h.b16 %v434
    %v617 = vunpack.c.l.b16 %v435
    %v618 = vunpack.c.h.b16 %v435
    %v619 = vunpack.c.l.b16 %v436
    %v620 = vunpack.c.h.b16 %v436
    %v621 = vunpack.c.l.b16 %v437
    %v622 = vunpack.c.h.b16 %v437
    %v623 = vunpack.c.l.b16 %v438
    %v624 = vunpack.c.h.b16 %v438
    %v625 = vunpack.c.l.b16 %v439
    %v626 = vunpack.c.h.b16 %v439
    %v627 = vunpack.c.l.b16 %v440
    %v628 = vunpack.c.h.b16 %v440
    %v629 = vunpack.c.l.b16 %v441
    %v630 = vunpack.c.h.b16 %v441
    %v631 = vunpack.c.l.b16 %v442
    %v632 = vunpack.c.h.b16 %v442
    %v633 = vunpack.c.l.b16 %v443
    %v634 = vunpack.c.h.b16 %v443
    %v635 = vunpack.c.l.b16 %v444
    %v636 = vunpack.c.h.b16 %v444
    %v637 = vunpack.c.l.b16 %v445
    %v638 = vunpack.c.h.b16 %v445
    %v639 = vunpack.c.l.b16 %v446
    %v640 = vunpack.c.h.b16 %v446
    %v641 = vunpack.c.l.b16 %v447
    %v642 = vunpack.c.h.b16 %v447
    %v643 = vunpack.c.l.b16 %v448
    %v644 = vunpack.c.h.b16 %v448
    %v645 = vunpack.c.l.b16 %v449
    %v646 = vunpack.c.h.b16 %v449
    %v647 = vunpack.c.l.b16 %v450
    %v648 = vunpack.c.h.b16 %v450
    %v649 = vunpack.c.l.b16 %v451
    %v650 = vunpack.c.h.b16 %v451
    %v651 = vunpack.c.l.b16 %v452
    %v652 = vunpack.c.h.b16 %v452
    %v653 = vunpack.c.l.b16 %v453
    %v654 = vunpack.c.h.b16 %v453
    %v655 = vunpack.c.l.b16 %v454
    %v656 = vunpack.c.h.b16 %v454
    %v657 = vunpack.c.l.b16 %v455
    %v658 = vunpack.c.h.b16 %v455
    %v659 = vunpack.c.l.b16 %v456
    %v660 = vunpack.c.h.b16 %v456
    %v661 = vunpack.c.l.b16 %v457
    %v662 = vunpack.c.h.b16 %v457
    %v663 = vunpack.c.l.b16 %v458
    %v664 = vunpack.c.h.b16 %v458
    %v665 = vunpack.c.l.b16 %v459
    %v666 = vunpack.c.h.b16 %v459
    %v667 = vunpack.c.l.b16 %v460
    %v668 = vunpack.c.h.b16 %v460
    %v669 = vunpack.c.l.b16 %v461
    %v670 = vunpack.c.h.b16 %v461
    %v671 = vunpack.c.l.b16 %v462
    %v672 = vunpack.c.h.b16 %v462
    %v673 = vunpack.c.l.b16 %v463
    %v674 = vunpack.c.h.b16 %v463
    %v675 = vunpack.c.l.b16 %v464
    %v676 = vunpack.c.h.b16 %v464
    %v677 = vunpack.c.l.b16 %v465
    %v678 = vunpack.c.h.b16 %v465
    %v679 = vunpack.c.l.b16 %v466
    %v680 = vunpack.c.h.b16 %v466
    %v681 = vunpack.c.l.b16 %v467
    %v682 = vunpack.c.h.b16 %v467
    %v683 = vunpack.c.l.b16 %v468
    %v684 = vunpack.c.h.b16 %v468
    %v685 = vunpack.c.l.b16 %v469
    %v686 = vunpack.c.h.b16 %v469
    %v687 = vunpack.c.l.b16 %v470
    %v688 = vunpack.c.h.b16 %v470
    %v689 = vunpack.c.l.b16 %v471
    %v690 = vunpack.c.h.b16 %v471
    %v691 = vunpack.c.l.b16 %v472
    %v692 = vunpack.c.h.b16 %v472
    %v693 = vunpack.c.l.b16 %v473
    %v694 = vunpack.c.h.b16 %v473
    %v695 = vunpack.c.l.b16 %v474
    %v696 = vunpack.c.h.b16 %v474
    %v697 = vunpack.c.l.b16 %v475
    %v698 = vunpack.c.h.b16 %v475
    %v699 = vunpack.c.l.b16 %v476
    %v700 = vunpack.c.h.b16 %v476
    %v701 = vunpack.c.l.b16 %v477
    %v702 = vunpack.c.h.b16 %v477
    %v703 = vunpack.c.l.b16 %v478
    %v704 = vunpack.c.h.b16 %v478
    %v705 = vunpack.c.l.b16 %v479
    %v706 = vunpack.c.h.b16 %v479
    %v707 = vunpack.c.l.b16 %v480
    %v708 = vunpack.c.h.b16 %v480
    %v709 = vunpack.c.l.b16 %v481
    %v710 = vunpack.c.h.b16 %v481
    %v711 = vunpack.c.l.b16 %v482
    %v712 = vunpack.c.h.b16 %v482
    %v713 = vunpack.c.l.b16 %v483
    %v714 = vunpack.c.h.b16 %v483
    %v715 = vunpack.c.l.b16 %v484
    %v716 = vunpack.c.h.b16 %v484
    %v717 = vunpack.c.l.b16 %v485
    %v718 = vunpack.c.h.b16 %v485
    %v719 = vunpack.c.l.b16 %v486
    %v720 = vunpack.c.h.b16 %v486
    %v721 = vpack.c.b16 %v601, %v593
    %v722 = vpack.c.b16 %v602, %v594
    %v723 = vpack.c.b16 %v603, %v595
    %v724 = vpack.c.b16 %v604, %v596
    %v725 = vpack.c.b16 %v605, %v597
    %v726 = vpack.c.b16 %v606, %v598
    %v727 = vpack.c.b16 %v607, %v599
    %v728 = vpack.c.b16 %v608, %v600
    %v729 = vpack.c.b16 %v617, %v609
    %v730 = vpack.c.b16 %v618, %v610
    %v731 = vpack.c.b16 %v619, %v611
    %v732 = vpack.c.b16 %v620, %v612
    %v733 = vpack.c.b16 %v621, %v613
    %v734 = vpack.c.b16 %v622, %v614
    %v735 = vpack.c.b16 %v623, %v615
    %v736 = vpack.c.b16 %v624, %v616
    %v737 = vpack.c.b16 %v633, %v625
    %v738 = vpack.c.b16 %v634, %v626
    %v739 = vpack.c.b16 %v635, %v627
    %v740 = vpack.c.b16 %v636, %v628
    %v741 = vpack.c.b16 %v637, %v629
    %v742 = vpack.c.b16 %v638, %v630
    %v743 = vpack.c.b16 %v639, %v631
    %v744 = vpack.c.b16 %v640, %v632
    %v745 = vpack.c.b16 %v649, %v641
    %v746 = vpack.c.b16 %v650, %v642
    %v747 = vpack.c.b16 %v651, %v643
    %v748 = vpack.c.b16 %v652, %v644
    %v749 = vpack.c.b16 %v653, %v645
    %v750 = vpack.c.b16 %v654, %v646
    %v751 = vpack.c.b16 %v655, %v647
    %v752 = vpack.c.b16 %v656, %v648
    %v753 = vpack.c.b16 %v665, %v657
    %v754 = vpack.c.b16 %v666, %v658
    %v755 = vpack.c.b16 %v667, %v659
    %v756 = vpack.c.b16 %v668, %v660
    %v757 = vpack.c.b16 %v669, %v661
    %v758 = vpack.c.b16 %v670, %v662
    %v759 = vpack.c.b16 %v671, %v663
    %v760 = vpack.c.b16 %v672, %v664
    %v761 = vpack.c.b16 %v681, %v673
    %v762 = vpack.c.b16 %v682, %v674
    %v763 = vpack.c.b16 %v683, %v675
    %v764 = vpack.c.b16 %v684, %v676
    %v765 = vpack.c.b16 %v685, %v677
    %v766 = vpack.c.b16 %v686, %v678
    %v767 = vpack.c.b16 %v687, %v679
    %v768 = vpack.c.b16 %v688, %v680
    %v769 = vpack.c.b16 %v697, %v689
    %v770 = vpack.c.b16 %v698, %v690
    %v771 = vpack.c.b16 %v699, %v691
    %v772 = vpack.c.b16 %v700, %v692
    %v773 = vpack.c.b16 %v701, %v693
    %v774 = vpack.c.b16 %v702, %v694
    %v775 = vpack.c.b16 %v703, %v695
    %v776 = vpack.c.b16 %v704, %v696
    %v777 = vpack.c.b16 %v713, %v705
    %v778 = vpack.c.b16 %v714, %v706
    %v779 = vpack.c.b16 %v715, %v707
    %v780 = vpack.c.b16 %v716, %v708
    %v781 = vpack.c.b16 %v717, %v709
    %v782 = vpack.c.b16 %v718, %v710
    %v783 = vpack.c.b16 %v719, %v711
    %v784 = vpack.c.b16 %v720, %v712
    %849 = vmatprep.subr.bf16.mxu0 %v722
    %850 = vmatpush1.bf16.msra.mxu0 %v721
    %851 = vmatprep.subr.bf16.mxu0 %v730
    %852 = vmatpush1.bf16.msra.mxu0 %v729
    %853 = vmatprep.subr.bf16.mxu0 %v738
    %854 = vmatpush1.bf16.msra.mxu0 %v737
    %855 = vmatprep.subr.bf16.mxu0 %v746
    %856 = vmatpush1.bf16.msra.mxu0 %v745
    %857 = vmatprep.subr.bf16.mxu0 %v754
    %858 = vmatpush1.bf16.msra.mxu0 %v753
    %859 = vmatprep.subr.bf16.mxu0 %v762
    %860 = vmatpush1.bf16.msra.mxu0 %v761
    %861 = vmatprep.subr.bf16.mxu0 %v770
    %862 = vmatpush1.bf16.msra.mxu0 %v769
    %863 = vmatprep.subr.bf16.mxu0 %v778
    %864 = vmatpush1.bf16.msra.mxu0 %v777
    %865 = vmatprep.subr.bf16.mxu0 0
    %866 = vmatpush1.bf16.msra.mxu0 0
    %867 = vmatprep.subr.bf16.mxu0 0
    %868 = vmatpush1.bf16.msra.mxu0 0
    %869 = vmatprep.subr.bf16.mxu0 0
    %870 = vmatpush1.bf16.msra.mxu0 0
    %871 = vmatprep.subr.bf16.mxu0 0
    %872 = vmatpush1.bf16.msra.mxu0 0
    %873 = vmatprep.subr.bf16.mxu0 0
    %874 = vmatpush1.bf16.msra.mxu0 0
    %875 = vmatprep.subr.bf16.mxu0 0
    %876 = vmatpush1.bf16.msra.mxu0 0
    %877 = vmatprep.subr.bf16.mxu0 0
    %878 = vmatpush1.bf16.msra.mxu0 0
    %879 = vmatprep.subr.bf16.mxu0 0
    %880 = vmatpush1.bf16.msra.mxu0 0
    %881 = vmatprep.mubr.bf16.mxu0 0
    %882 = vmatmul.mubr.bf16.gmra.mrb[0].mxu0 %v421
    %v883 = vpop.f32.mrb[0].mxu0
    %v884 = vadd.f32 %v492, %v883
    %v885 = vpop.f32.mrb[0].mxu0
    %v886 = vadd.f32 %v496, %v885
    %v887 = vpop.f32.mrb[0].mxu0
    %v888 = vadd.f32 %v492, %v887
    %v889 = vpop.f32.mrb[0].mxu0
    %v890 = vadd.f32 %v496, %v889
    %891 = vmatprep.mubr.bf16.mxu0 0
    %892 = vmatmul.mubr.bf16.gmra.mrb[0].mxu0 %v422
    %v893 = vpop.f32.mrb[0].mxu0
    %v894 = vadd.f32 %v492, %v893
    %v895 = vpop.f32.mrb[0].mxu0
    %v896 = vadd.f32 %v496, %v895
    %v897 = vpop.f32.mrb[0].mxu0
    %v898 = vadd.f32 %v492, %v897
    %v899 = vpop.f32.mrb[0].mxu0
    %v900 = vadd.f32 %v496, %v899
    %901 = vdwg.mxu0
    %902 = vmatprep.subr.bf16.mxu0 %v724
    %903 = vmatpush1.bf16.msra.mxu0 %v723
    %904 = vmatprep.subr.bf16.mxu0 %v732
    %905 = vmatpush1.bf16.msra.mxu0 %v731
    %906 = vmatprep.subr.bf16.mxu0 %v740
    %907 = vmatpush1.bf16.msra.mxu0 %v739
    %908 = vmatprep.subr.bf16.mxu0 %v748
    %909 = vmatpush1.bf16.msra.mxu0 %v747
    %910 = vmatprep.subr.bf16.mxu0 %v756
    %911 = vmatpush1.bf16.msra.mxu0 %v755
    %912 = vmatprep.subr.bf16.mxu0 %v764
    %913 = vmatpush1.bf16.msra.mxu0 %v763
    %914 = vmatprep.subr.bf16.mxu0 %v772
    %915 = vmatpush1.bf16.msra.mxu0 %v771
    %916 = vmatprep.subr.bf16.mxu0 %v780
    %917 = vmatpush1.bf16.msra.mxu0 %v779
    %918 = vmatprep.subr.bf16.mxu0 0
    %919 = vmatpush1.bf16.msra.mxu0 0
    %920 = vmatprep.subr.bf16.mxu0 0
    %921 = vmatpush1.bf16.msra.mxu0 0
    %922 = vmatprep.subr.bf16.mxu0 0
    %923 = vmatpush1.bf16.msra.mxu0 0
    %924 = vmatprep.subr.bf16.mxu0 0
    %925 = vmatpush1.bf16.msra.mxu0 0
    %926 = vmatprep.subr.bf16.mxu0 0
    %927 = vmatpush1.bf16.msra.mxu0 0
    %928 = vmatprep.subr.bf16.mxu0 0
    %929 = vmatpush1.bf16.msra.mxu0 0
    %930 = vmatprep.subr.bf16.mxu0 0
    %931 = vmatpush1.bf16.msra.mxu0 0
    %932 = vmatprep.subr.bf16.mxu0 0
    %933 = vmatpush1.bf16.msra.mxu0 0
    %934 = vmatprep.mubr.bf16.mxu0 0
    %935 = vmatmul.mubr.bf16.gmra.mrb[0].mxu0 %v421
    %v936 = vpop.f32.mrb[0].mxu0
    %v937 = vadd.f32 %v500, %v936
    %v938 = vpop.f32.mrb[0].mxu0
    %v939 = vadd.f32 %v504, %v938
    %v940 = vpop.f32.mrb[0].mxu0
    %v941 = vadd.f32 %v500, %v940
    %v942 = vpop.f32.mrb[0].mxu0
    %v943 = vadd.f32 %v504, %v942
    %944 = vmatprep.mubr.bf16.mxu0 0
    %945 = vmatmul.mubr.bf16.gmra.mrb[0].mxu0 %v422
    %v946 = vpop.f32.mrb[0].mxu0
    %v947 = vadd.f32 %v500, %v946
    %v948 = vpop.f32.mrb[0].mxu0
    %v949 = vadd.f32 %v504, %v948
    %v950 = vpop.f32.mrb[0].mxu0
    %v951 = vadd.f32 %v500, %v950
    %v952 = vpop.f32.mrb[0].mxu0
    %v953 = vadd.f32 %v504, %v952
    %954 = vdwg.mxu0
    %955 = vmatprep.subr.bf16.mxu0 %v726
    %956 = vmatpush1.bf16.msra.mxu0 %v725
    %957 = vmatprep.subr.bf16.mxu0 %v734
    %958 = vmatpush1.bf16.msra.mxu0 %v733
    %959 = vmatprep.subr.bf16.mxu0 %v742
    %960 = vmatpush1.bf16.msra.mxu0 %v741
    %961 = vmatprep.subr.bf16.mxu0 %v750
    %962 = vmatpush1.bf16.msra.mxu0 %v749
    %963 = vmatprep.subr.bf16.mxu0 %v758
    %964 = vmatpush1.bf16.msra.mxu0 %v757
    %965 = vmatprep.subr.bf16.mxu0 %v766
    %966 = vmatpush1.bf16.msra.mxu0 %v765
    %967 = vmatprep.subr.bf16.mxu0 %v774
    %968 = vmatpush1.bf16.msra.mxu0 %v773
    %969 = vmatprep.subr.bf16.mxu0 %v782
    %970 = vmatpush1.bf16.msra.mxu0 %v781
    %971 = vmatprep.subr.bf16.mxu0 0
    %972 = vmatpush1.bf16.msra.mxu0 0
    %973 = vmatprep.subr.bf16.mxu0 0
    %974 = vmatpush1.bf16.msra.mxu0 0
    %975 = vmatprep.subr.bf16.mxu0 0
    %976 = vmatpush1.bf16.msra.mxu0 0
    %977 = vmatprep.subr.bf16.mxu0 0
    %978 = vmatpush1.bf16.msra.mxu0 0
    %979 = vmatprep.subr.bf16.mxu0 0
    %980 = vmatpush1.bf16.msra.mxu0 0
    %981 = vmatprep.subr.bf16.mxu0 0
    %982 = vmatpush1.bf16.msra.mxu0 0
    %983 = vmatprep.subr.bf16.mxu0 0
    %984 = vmatpush1.bf16.msra.mxu0 0
    %985 = vmatprep.subr.bf16.mxu0 0
    %986 = vmatpush1.bf16.msra.mxu0 0
    %987 = vmatprep.mubr.bf16.mxu0 0
    %988 = vmatmul.mubr.bf16.gmra.mrb[0].mxu0 %v421
    %v989 = vpop.f32.mrb[0].mxu0
    %v990 = vadd.f32 %v508, %v989
    %v991 = vpop.f32.mrb[0].mxu0
    %v992 = vadd.f32 %v512, %v991
    %v993 = vpop.f32.mrb[0].mxu0
    %v994 = vadd.f32 %v508, %v993
    %v995 = vpop.f32.mrb[0].mxu0
    %v996 = vadd.f32 %v512, %v995
    %997 = vmatprep.mubr.bf16.mxu0 0
    %998 = vmatmul.mubr.bf16.gmra.mrb[0].mxu0 %v422
    %v999 = vpop.f32.mrb[0].mxu0
    %v1000 = vadd.f32 %v508, %v999
    %v1001 = vpop.f32.mrb[0].mxu0
    %v1002 = vadd.f32 %v512, %v1001
    %v1003 = vpop.f32.mrb[0].mxu0
    %v1004 = vadd.f32 %v508, %v1003
    %v1005 = vpop.f32.mrb[0].mxu0
    %v1006 = vadd.f32 %v512, %v1005
    %1007 = vdwg.mxu0
    %1008 = vmatprep.subr.bf16.mxu0 %v728
    %1009 = vmatpush1.bf16.msra.mxu0 %v727
    %1010 = vmatprep.subr.bf16.mxu0 %v736
    %1011 = vmatpush1.bf16.msra.mxu0 %v735
    %1012 = vmatprep.subr.bf16.mxu0 %v744
    %1013 = vmatpush1.bf16.msra.mxu0 %v743
    %1014 = vmatprep.subr.bf16.mxu0 %v752
    %1015 = vmatpush1.bf16.msra.mxu0 %v751
    %1016 = vmatprep.subr.bf16.mxu0 %v760
    %1017 = vmatpush1.bf16.msra.mxu0 %v759
    %1018 = vmatprep.subr.bf16.mxu0 %v768
    %1019 = vmatpush1.bf16.msra.mxu0 %v767
    %1020 = vmatprep.subr.bf16.mxu0 %v776
    %1021 = vmatpush1.bf16.msra.mxu0 %v775
    %1022 = vmatprep.subr.bf16.mxu0 %v784
    %1023 = vmatpush1.bf16.msra.mxu0 %v783
    %1024 = vmatprep.subr.bf16.mxu0 0
    %1025 = vmatpush1.bf16.msra.mxu0 0
    %1026 = vmatprep.subr.bf16.mxu0 0
    %1027 = vmatpush1.bf16.msra.mxu0 0
    %1028 = vmatprep.subr.bf16.mxu0 0
    %1029 = vmatpush1.bf16.msra.mxu0 0
    %1030 = vmatprep.subr.bf16.mxu0 0
    %1031 = vmatpush1.bf16.msra.mxu0 0
    %1032 = vmatprep.subr.bf16.mxu0 0
    %1033 = vmatpush1.bf16.msra.mxu0 0
    %1034 = vmatprep.subr.bf16.mxu0 0
    %1035 = vmatpush1.bf16.msra.mxu0 0
    %1036 = vmatprep.subr.bf16.mxu0 0
    %1037 = vmatpush1.bf16.msra.mxu0 0
    %1038 = vmatprep.subr.bf16.mxu0 0
    %1039 = vmatpush1.bf16.msra.mxu0 0
    %1040 = vmatprep.mubr.bf16.mxu0 0
    %1041 = vmatmul.mubr.bf16.gmra.mrb[0].mxu0 %v421
    %v1042 = vpop.f32.mrb[0].mxu0
    %v1043 = vadd.f32 %v516, %v1042
    %v1044 = vpop.f32.mrb[0].mxu0
    %v1045 = vadd.f32 %v520, %v1044
    %v1046 = vpop.f32.mrb[0].mxu0
    %v1047 = vadd.f32 %v516, %v1046
    %v1048 = vpop.f32.mrb[0].mxu0
    %v1049 = vadd.f32 %v520, %v1048
    %1050 = vmatprep.mubr.bf16.mxu0 0
    %1051 = vmatmul.mubr.bf16.gmra.mrb[0].mxu0 %v422
    %v1052 = vpop.f32.mrb[0].mxu0
    %v1053 = vadd.f32 %v516, %v1052
    %v1054 = vpop.f32.mrb[0].mxu0
    %v1055 = vadd.f32 %v520, %v1054
    %v1056 = vpop.f32.mrb[0].mxu0
    %v1057 = vadd.f32 %v516, %v1056
    %v1058 = vpop.f32.mrb[0].mxu0
    %v1059 = vadd.f32 %v520, %v1058
    %1060 = vdwg.mxu0
    %v1061 = vadd.f32 %v884, %v888
    %v1062 = vrot.slane %v1061, 4
    %v1063 = vadd.f32 %v1061, %v1062
    %v1064 = vrot.slane %v1063, 2
    %v1065 = vadd.f32 %v1063, %v1064
    %v1066 = vrot.slane %v1065, 1
    %v1067 = vadd.f32 %v1065, %v1066
    %v1068 = vadd.f32 %v886, %v890
    %v1069 = vrot.slane %v1068, 4
    %v1070 = vadd.f32 %v1068, %v1069
    %v1071 = vrot.slane %v1070, 2
    %v1072 = vadd.f32 %v1070, %v1071
    %v1073 = vrot.slane %v1072, 1
    %v1074 = vadd.f32 %v1072, %v1073
    %v1075 = vadd.f32 %v937, %v941
    %v1076 = vrot.slane %v1075, 4
    %v1077 = vadd.f32 %v1075, %v1076
    %v1078 = vrot.slane %v1077, 2
    %v1079 = vadd.f32 %v1077, %v1078
    %v1080 = vrot.slane %v1079, 1
    %v1081 = vadd.f32 %v1079, %v1080
    %v1082 = vadd.f32 %v939, %v943
    %v1083 = vrot.slane %v1082, 4
    %v1084 = vadd.f32 %v1082, %v1083
    %v1085 = vrot.slane %v1084, 2
    %v1086 = vadd.f32 %v1084, %v1085
    %v1087 = vrot.slane %v1086, 1
    %v1088 = vadd.f32 %v1086, %v1087
    %v1089 = vadd.f32 %v990, %v994
    %v1090 = vrot.slane %v1089, 4
    %v1091 = vadd.f32 %v1089, %v1090
    %v1092 = vrot.slane %v1091, 2
    %v1093 = vadd.f32 %v1091, %v1092
    %v1094 = vrot.slane %v1093, 1
    %v1095 = vadd.f32 %v1093, %v1094
    %v1096 = vadd.f32 %v992, %v996
    %v1097 = vrot.slane %v1096, 4
    %v1098 = vadd.f32 %v1096, %v1097
    %v1099 = vrot.slane %v1098, 2
    %v1100 = vadd.f32 %v1098, %v1099
    %v1101 = vrot.slane %v1100, 1
    %v1102 = vadd.f32 %v1100, %v1101
    %v1103 = vadd.f32 %v1043, %v1047
    %v1104 = vrot.slane %v1103, 4
    %v1105 = vadd.f32 %v1103, %v1104
    %v1106 = vrot.slane %v1105, 2
    %v1107 = vadd.f32 %v1105, %v1106
    %v1108 = vrot.slane %v1107, 1
    %v1109 = vadd.f32 %v1107, %v1108
    %v1110 = vadd.f32 %v1045, %v1049
    %v1111 = vrot.slane %v1110, 4
    %v1112 = vadd.f32 %v1110, %v1111
    %v1113 = vrot.slane %v1112, 2
    %v1114 = vadd.f32 %v1112, %v1113
    %v1115 = vrot.slane %v1114, 1
    %v1116 = vadd.f32 %v1114, %v1115
    %v1117 = vadd.f32 %v894, %v898
    %v1118 = vrot.slane %v1117, 4
    %v1119 = vadd.f32 %v1117, %v1118
    %v1120 = vrot.slane %v1119, 2
    %v1121 = vadd.f32 %v1119, %v1120
    %v1122 = vrot.slane %v1121, 1
    %v1123 = vadd.f32 %v1121, %v1122
    %v1124 = vadd.f32 %v896, %v900
    %v1125 = vrot.slane %v1124, 4
    %v1126 = vadd.f32 %v1124, %v1125
    %v1127 = vrot.slane %v1126, 2
    %v1128 = vadd.f32 %v1126, %v1127
    %v1129 = vrot.slane %v1128, 1
    %v1130 = vadd.f32 %v1128, %v1129
    %v1131 = vadd.f32 %v947, %v951
    %v1132 = vrot.slane %v1131, 4
    %v1133 = vadd.f32 %v1131, %v1132
    %v1134 = vrot.slane %v1133, 2
    %v1135 = vadd.f32 %v1133, %v1134
    %v1136 = vrot.slane %v1135, 1
    %v1137 = vadd.f32 %v1135, %v1136
    %v1138 = vadd.f32 %v949, %v953
    %v1139 = vrot.slane %v1138, 4
    %v1140 = vadd.f32 %v1138, %v1139
    %v1141 = vrot.slane %v1140, 2
    %v1142 = vadd.f32 %v1140, %v1141
    %v1143 = vrot.slane %v1142, 1
    %v1144 = vadd.f32 %v1142, %v1143
    %v1145 = vadd.f32 %v1000, %v1004
    %v1146 = vrot.slane %v1145, 4
    %v1147 = vadd.f32 %v1145, %v1146
    %v1148 = vrot.slane %v1147, 2
    %v1149 = vadd.f32 %v1147, %v1148
    %v1150 = vrot.slane %v1149, 1
    %v1151 = vadd.f32 %v1149, %v1150
    %v1152 = vadd.f32 %v1002, %v1006
    %v1153 = vrot.slane %v1152, 4
    %v1154 = vadd.f32 %v1152, %v1153
    %v1155 = vrot.slane %v1154, 2
    %v1156 = vadd.f32 %v1154, %v1155
    %v1157 = vrot.slane %v1156, 1
    %v1158 = vadd.f32 %v1156, %v1157
    %v1159 = vadd.f32 %v1053, %v1057
    %v1160 = vrot.slane %v1159, 4
    %v1161 = vadd.f32 %v1159, %v1160
    %v1162 = vrot.slane %v1161, 2
    %v1163 = vadd.f32 %v1161, %v1162
    %v1164 = vrot.slane %v1163, 1
    %v1165 = vadd.f32 %v1163, %v1164
    %v1166 = vadd.f32 %v1055, %v1059
    %v1167 = vrot.slane %v1166, 4
    %v1168 = vadd.f32 %v1166, %v1167
    %v1169 = vrot.slane %v1168, 2
    %v1170 = vadd.f32 %v1168, %v1169
    %v1171 = vrot.slane %v1170, 1
    %v1172 = vadd.f32 %v1170, %v1171
    %v1173 = vmul.f32 %v884, %v884
    %v1174 = vmul.f32 %v886, %v886
    %v1175 = vmul.f32 %v937, %v937
    %v1176 = vmul.f32 %v939, %v939
    %v1177 = vmul.f32 %v990, %v990
    %v1178 = vmul.f32 %v992, %v992
    %v1179 = vmul.f32 %v1043, %v1043
    %v1180 = vmul.f32 %v1045, %v1045
    %v1181 = vmul.f32 %v888, %v888
    %v1182 = vmul.f32 %v890, %v890
    %v1183 = vmul.f32 %v941, %v941
    %v1184 = vmul.f32 %v943, %v943
    %v1185 = vmul.f32 %v994, %v994
    %v1186 = vmul.f32 %v996, %v996
    %v1187 = vmul.f32 %v1047, %v1047
    %v1188 = vmul.f32 %v1049, %v1049
    %v1189 = vmul.f32 %v894, %v894
    %v1190 = vmul.f32 %v896, %v896
    %v1191 = vmul.f32 %v947, %v947
    %v1192 = vmul.f32 %v949, %v949
    %v1193 = vmul.f32 %v1000, %v1000
    %v1194 = vmul.f32 %v1002, %v1002
    %v1195 = vmul.f32 %v1053, %v1053
    %v1196 = vmul.f32 %v1055, %v1055
    %v1197 = vmul.f32 %v898, %v898
    %v1198 = vmul.f32 %v900, %v900
    %v1199 = vmul.f32 %v951, %v951
    %v1200 = vmul.f32 %v953, %v953
    %v1201 = vmul.f32 %v1004, %v1004
    %v1202 = vmul.f32 %v1006, %v1006
    %v1203 = vmul.f32 %v1057, %v1057
    %v1204 = vmul.f32 %v1059, %v1059
    %v1205 = vadd.f32 %v1173, %v1181
    %v1206 = vrot.slane %v1205, 4
    %v1207 = vadd.f32 %v1205, %v1206
    %v1208 = vrot.slane %v1207, 2
    %v1209 = vadd.f32 %v1207, %v1208
    %v1210 = vrot.slane %v1209, 1
    %v1211 = vadd.f32 %v1209, %v1210
    %v1212 = vadd.f32 %v1174, %v1182
    %v1213 = vrot.slane %v1212, 4
    %v1214 = vadd.f32 %v1212, %v1213
    %v1215 = vrot.slane %v1214, 2
    %v1216 = vadd.f32 %v1214, %v1215
    %v1217 = vrot.slane %v1216, 1
    %v1218 = vadd.f32 %v1216, %v1217
    %v1219 = vadd.f32 %v1175, %v1183
    %v1220 = vrot.slane %v1219, 4
    %v1221 = vadd.f32 %v1219, %v1220
    %v1222 = vrot.slane %v1221, 2
    %v1223 = vadd.f32 %v1221, %v1222
    %v1224 = vrot.slane %v1223, 1
    %v1225 = vadd.f32 %v1223, %v1224
    %v1226 = vadd.f32 %v1176, %v1184
    %v1227 = vrot.slane %v1226, 4
    %v1228 = vadd.f32 %v1226, %v1227
    %v1229 = vrot.slane %v1228, 2
    %v1230 = vadd.f32 %v1228, %v1229
    %v1231 = vrot.slane %v1230, 1
    %v1232 = vadd.f32 %v1230, %v1231
    %v1233 = vadd.f32 %v1177, %v1185
    %v1234 = vrot.slane %v1233, 4
    %v1235 = vadd.f32 %v1233, %v1234
    %v1236 = vrot.slane %v1235, 2
    %v1237 = vadd.f32 %v1235, %v1236
    %v1238 = vrot.slane %v1237, 1
    %v1239 = vadd.f32 %v1237, %v1238
    %v1240 = vadd.f32 %v1178, %v1186
    %v1241 = vrot.slane %v1240, 4
    %v1242 = vadd.f32 %v1240, %v1241
    %v1243 = vrot.slane %v1242, 2
    %v1244 = vadd.f32 %v1242, %v1243
    %v1245 = vrot.slane %v1244, 1
    %v1246 = vadd.f32 %v1244, %v1245
    %v1247 = vadd.f32 %v1179, %v1187
    %v1248 = vrot.slane %v1247, 4
    %v1249 = vadd.f32 %v1247, %v1248
    %v1250 = vrot.slane %v1249, 2
    %v1251 = vadd.f32 %v1249, %v1250
    %v1252 = vrot.slane %v1251, 1
    %v1253 = vadd.f32 %v1251, %v1252
    %v1254 = vadd.f32 %v1180, %v1188
    %v1255 = vrot.slane %v1254, 4
    %v1256 = vadd.f32 %v1254, %v1255
    %v1257 = vrot.slane %v1256, 2
    %v1258 = vadd.f32 %v1256, %v1257
    %v1259 = vrot.slane %v1258, 1
    %v1260 = vadd.f32 %v1258, %v1259
    %v1261 = vadd.f32 %v1189, %v1197
    %v1262 = vrot.slane %v1261, 4
    %v1263 = vadd.f32 %v1261, %v1262
    %v1264 = vrot.slane %v1263, 2
    %v1265 = vadd.f32 %v1263, %v1264
    %v1266 = vrot.slane %v1265, 1
    %v1267 = vadd.f32 %v1265, %v1266
    %v1268 = vadd.f32 %v1190, %v1198
    %v1269 = vrot.slane %v1268, 4
    %v1270 = vadd.f32 %v1268, %v1269
    %v1271 = vrot.slane %v1270, 2
    %v1272 = vadd.f32 %v1270, %v1271
    %v1273 = vrot.slane %v1272, 1
    %v1274 = vadd.f32 %v1272, %v1273
    %v1275 = vadd.f32 %v1191, %v1199
    %v1276 = vrot.slane %v1275, 4
    %v1277 = vadd.f32 %v1275, %v1276
    %v1278 = vrot.slane %v1277, 2
    %v1279 = vadd.f32 %v1277, %v1278
    %v1280 = vrot.slane %v1279, 1
    %v1281 = vadd.f32 %v1279, %v1280
    %v1282 = vadd.f32 %v1192, %v1200
    %v1283 = vrot.slane %v1282, 4
    %v1284 = vadd.f32 %v1282, %v1283
    %v1285 = vrot.slane %v1284, 2
    %v1286 = vadd.f32 %v1284, %v1285
    %v1287 = vrot.slane %v1286, 1
    %v1288 = vadd.f32 %v1286, %v1287
    %v1289 = vadd.f32 %v1193, %v1201
    %v1290 = vrot.slane %v1289, 4
    %v1291 = vadd.f32 %v1289, %v1290
    %v1292 = vrot.slane %v1291, 2
    %v1293 = vadd.f32 %v1291, %v1292
    %v1294 = vrot.slane %v1293, 1
    %v1295 = vadd.f32 %v1293, %v1294
    %v1296 = vadd.f32 %v1194, %v1202
    %v1297 = vrot.slane %v1296, 4
    %v1298 = vadd.f32 %v1296, %v1297
    %v1299 = vrot.slane %v1298, 2
    %v1300 = vadd.f32 %v1298, %v1299
    %v1301 = vrot.slane %v1300, 1
    %v1302 = vadd.f32 %v1300, %v1301
    %v1303 = vadd.f32 %v1195, %v1203
    %v1304 = vrot.slane %v1303, 4
    %v1305 = vadd.f32 %v1303, %v1304
    %v1306 = vrot.slane %v1305, 2
    %v1307 = vadd.f32 %v1305, %v1306
    %v1308 = vrot.slane %v1307, 1
    %v1309 = vadd.f32 %v1307, %v1308
    %v1310 = vadd.f32 %v1196, %v1204
    %v1311 = vrot.slane %v1310, 4
    %v1312 = vadd.f32 %v1310, %v1311
    %v1313 = vrot.slane %v1312, 2
    %v1314 = vadd.f32 %v1312, %v1313
    %v1315 = vrot.slane %v1314, 1
    %v1316 = vadd.f32 %v1314, %v1315
    %v1317 = vmul.f32 %v1067, 0.0625
    %v1318 = vmul.f32 %v1074, 0.0625
    %v1319 = vmul.f32 %v1081, 0.0625
    %v1320 = vmul.f32 %v1088, 0.0625
    %v1321 = vmul.f32 %v1095, 0.0625
    %v1322 = vmul.f32 %v1102, 0.0625
    %v1323 = vmul.f32 %v1109, 0.0625
    %v1324 = vmul.f32 %v1116, 0.0625
    %v1325 = vmul.f32 %v1123, 0.0625
    %v1326 = vmul.f32 %v1130, 0.0625
    %v1327 = vmul.f32 %v1137, 0.0625
    %v1328 = vmul.f32 %v1144, 0.0625
    %v1329 = vmul.f32 %v1151, 0.0625
    %v1330 = vmul.f32 %v1158, 0.0625
    %v1331 = vmul.f32 %v1165, 0.0625
    %v1332 = vmul.f32 %v1172, 0.0625
    %v1333 = vmul.f32 %v1211, 0.0625
    %v1334 = vmul.f32 %v1218, 0.0625
    %v1335 = vmul.f32 %v1225, 0.0625
    %v1336 = vmul.f32 %v1232, 0.0625
    %v1337 = vmul.f32 %v1239, 0.0625
    %v1338 = vmul.f32 %v1246, 0.0625
    %v1339 = vmul.f32 %v1253, 0.0625
    %v1340 = vmul.f32 %v1260, 0.0625
    %v1341 = vmul.f32 %v1267, 0.0625
    %v1342 = vmul.f32 %v1274, 0.0625
    %v1343 = vmul.f32 %v1281, 0.0625
    %v1344 = vmul.f32 %v1288, 0.0625
    %v1345 = vmul.f32 %v1295, 0.0625
    %v1346 = vmul.f32 %v1302, 0.0625
    %v1347 = vmul.f32 %v1309, 0.0625
    %v1348 = vmul.f32 %v1316, 0.0625
    %v1349 = vmul.f32 %v1317, %v1317
    %v1350 = vmul.f32 %v1318, %v1318
    %v1351 = vmul.f32 %v1319, %v1319
    %v1352 = vmul.f32 %v1320, %v1320
    %v1353 = vmul.f32 %v1321, %v1321
    %v1354 = vmul.f32 %v1322, %v1322
    %v1355 = vmul.f32 %v1323, %v1323
    %v1356 = vmul.f32 %v1324, %v1324
    %v1357 = vmul.f32 %v1325, %v1325
    %v1358 = vmul.f32 %v1326, %v1326
    %v1359 = vmul.f32 %v1327, %v1327
    %v1360 = vmul.f32 %v1328, %v1328
    %v1361 = vmul.f32 %v1329, %v1329
    %v1362 = vmul.f32 %v1330, %v1330
    %v1363 = vmul.f32 %v1331, %v1331
    %v1364 = vmul.f32 %v1332, %v1332
    %v1365 = vsub.f32 %v1333, %v1349
    %v1366 = vsub.f32 %v1334, %v1350
    %v1367 = vsub.f32 %v1335, %v1351
    %v1368 = vsub.f32 %v1336, %v1352
    %v1369 = vsub.f32 %v1337, %v1353
    %v1370 = vsub.f32 %v1338, %v1354
    %v1371 = vsub.f32 %v1339, %v1355
    %v1372 = vsub.f32 %v1340, %v1356
    %v1373 = vsub.f32 %v1341, %v1357
    %v1374 = vsub.f32 %v1342, %v1358
    %v1375 = vsub.f32 %v1343, %v1359
    %v1376 = vsub.f32 %v1344, %v1360
    %v1377 = vsub.f32 %v1345, %v1361
    %v1378 = vsub.f32 %v1346, %v1362
    %v1379 = vsub.f32 %v1347, %v1363
    %v1380 = vsub.f32 %v1348, %v1364
    %v1381 = vmax.f32 %v1365, 0.0
    %v1382 = vmax.f32 %v1366, 0.0
    %v1383 = vmax.f32 %v1367, 0.0
    %v1384 = vmax.f32 %v1368, 0.0
    %v1385 = vmax.f32 %v1369, 0.0
    %v1386 = vmax.f32 %v1370, 0.0
    %v1387 = vmax.f32 %v1371, 0.0
    %v1388 = vmax.f32 %v1372, 0.0
    %v1389 = vmax.f32 %v1373, 0.0
    %v1390 = vmax.f32 %v1374, 0.0
    %v1391 = vmax.f32 %v1375, 0.0
    %v1392 = vmax.f32 %v1376, 0.0
    %v1393 = vmax.f32 %v1377, 0.0
    %v1394 = vmax.f32 %v1378, 0.0
    %v1395 = vmax.f32 %v1379, 0.0
    %v1396 = vmax.f32 %v1380, 0.0
    %v1397 = vsub.f32 %v884, %v1317
    %v1398 = vsub.f32 %v886, %v1318
    %v1399 = vsub.f32 %v937, %v1319
    %v1400 = vsub.f32 %v939, %v1320
    %v1401 = vsub.f32 %v990, %v1321
    %v1402 = vsub.f32 %v992, %v1322
    %v1403 = vsub.f32 %v1043, %v1323
    %v1404 = vsub.f32 %v1045, %v1324
    %v1405 = vsub.f32 %v888, %v1317
    %v1406 = vsub.f32 %v890, %v1318
    %v1407 = vsub.f32 %v941, %v1319
    %v1408 = vsub.f32 %v943, %v1320
    %v1409 = vsub.f32 %v994, %v1321
    %v1410 = vsub.f32 %v996, %v1322
    %v1411 = vsub.f32 %v1047, %v1323
    %v1412 = vsub.f32 %v1049, %v1324
    %v1413 = vsub.f32 %v894, %v1325
    %v1414 = vsub.f32 %v896, %v1326
    %v1415 = vsub.f32 %v947, %v1327
    %v1416 = vsub.f32 %v949, %v1328
    %v1417 = vsub.f32 %v1000, %v1329
    %v1418 = vsub.f32 %v1002, %v1330
    %v1419 = vsub.f32 %v1053, %v1331
    %v1420 = vsub.f32 %v1055, %v1332
    %v1421 = vsub.f32 %v898, %v1325
    %v1422 = vsub.f32 %v900, %v1326
    %v1423 = vsub.f32 %v951, %v1327
    %v1424 = vsub.f32 %v953, %v1328
    %v1425 = vsub.f32 %v1004, %v1329
    %v1426 = vsub.f32 %v1006, %v1330
    %v1427 = vsub.f32 %v1057, %v1331
    %v1428 = vsub.f32 %v1059, %v1332
    %v1429 = vadd.f32 %v1381, 1e-05
    %v1430 = vadd.f32 %v1382, 1e-05
    %v1431 = vadd.f32 %v1383, 1e-05
    %v1432 = vadd.f32 %v1384, 1e-05
    %v1433 = vadd.f32 %v1385, 1e-05
    %v1434 = vadd.f32 %v1386, 1e-05
    %v1435 = vadd.f32 %v1387, 1e-05
    %v1436 = vadd.f32 %v1388, 1e-05
    %v1437 = vadd.f32 %v1389, 1e-05
    %v1438 = vadd.f32 %v1390, 1e-05
    %v1439 = vadd.f32 %v1391, 1e-05
    %v1440 = vadd.f32 %v1392, 1e-05
    %v1441 = vadd.f32 %v1393, 1e-05
    %v1442 = vadd.f32 %v1394, 1e-05
    %v1443 = vadd.f32 %v1395, 1e-05
    %v1444 = vadd.f32 %v1396, 1e-05
    %v1445 = vrsqrt.pop %v1429
    %v1446 = vrsqrt.pop %v1430
    %v1447 = vrsqrt.pop %v1431
    %v1448 = vrsqrt.pop %v1432
    %v1449 = vrsqrt.pop %v1433
    %v1450 = vrsqrt.pop %v1434
    %v1451 = vrsqrt.pop %v1435
    %v1452 = vrsqrt.pop %v1436
    %v1453 = vrsqrt.pop %v1437
    %v1454 = vrsqrt.pop %v1438
    %v1455 = vrsqrt.pop %v1439
    %v1456 = vrsqrt.pop %v1440
    %v1457 = vrsqrt.pop %v1441
    %v1458 = vrsqrt.pop %v1442
    %v1459 = vrsqrt.pop %v1443
    %v1460 = vrsqrt.pop %v1444
    %v1461 = vmul.f32 %v1397, %v1445
    %v1462 = vmul.f32 %v1398, %v1446
    %v1463 = vmul.f32 %v1399, %v1447
    %v1464 = vmul.f32 %v1400, %v1448
    %v1465 = vmul.f32 %v1401, %v1449
    %v1466 = vmul.f32 %v1402, %v1450
    %v1467 = vmul.f32 %v1403, %v1451
    %v1468 = vmul.f32 %v1404, %v1452
    %v1469 = vmul.f32 %v1405, %v1445
    %v1470 = vmul.f32 %v1406, %v1446
    %v1471 = vmul.f32 %v1407, %v1447
    %v1472 = vmul.f32 %v1408, %v1448
    %v1473 = vmul.f32 %v1409, %v1449
    %v1474 = vmul.f32 %v1410, %v1450
    %v1475 = vmul.f32 %v1411, %v1451
    %v1476 = vmul.f32 %v1412, %v1452
    %v1477 = vmul.f32 %v1413, %v1453
    %v1478 = vmul.f32 %v1414, %v1454
    %v1479 = vmul.f32 %v1415, %v1455
    %v1480 = vmul.f32 %v1416, %v1456
    %v1481 = vmul.f32 %v1417, %v1457
    %v1482 = vmul.f32 %v1418, %v1458
    %v1483 = vmul.f32 %v1419, %v1459
    %v1484 = vmul.f32 %v1420, %v1460
    %v1485 = vmul.f32 %v1421, %v1453
    %v1486 = vmul.f32 %v1422, %v1454
    %v1487 = vmul.f32 %v1423, %v1455
    %v1488 = vmul.f32 %v1424, %v1456
    %v1489 = vmul.f32 %v1425, %v1457
    %v1490 = vmul.f32 %v1426, %v1458
    %v1491 = vmul.f32 %v1427, %v1459
    %v1492 = vmul.f32 %v1428, %v1460
    %v1493 = vmax.f32 %v1461, 0.0
    %v1494 = vmax.f32 %v1462, 0.0
    %v1495 = vmax.f32 %v1463, 0.0
    %v1496 = vmax.f32 %v1464, 0.0
    %v1497 = vmax.f32 %v1465, 0.0
    %v1498 = vmax.f32 %v1466, 0.0
    %v1499 = vmax.f32 %v1467, 0.0
    %v1500 = vmax.f32 %v1468, 0.0
    %v1501 = vmax.f32 %v1469, 0.0
    %v1502 = vmax.f32 %v1470, 0.0
    %v1503 = vmax.f32 %v1471, 0.0
    %v1504 = vmax.f32 %v1472, 0.0
    %v1505 = vmax.f32 %v1473, 0.0
    %v1506 = vmax.f32 %v1474, 0.0
    %v1507 = vmax.f32 %v1475, 0.0
    %v1508 = vmax.f32 %v1476, 0.0
    %v1509 = vmax.f32 %v1477, 0.0
    %v1510 = vmax.f32 %v1478, 0.0
    %v1511 = vmax.f32 %v1479, 0.0
    %v1512 = vmax.f32 %v1480, 0.0
    %v1513 = vmax.f32 %v1481, 0.0
    %v1514 = vmax.f32 %v1482, 0.0
    %v1515 = vmax.f32 %v1483, 0.0
    %v1516 = vmax.f32 %v1484, 0.0
    %v1517 = vmax.f32 %v1485, 0.0
    %v1518 = vmax.f32 %v1486, 0.0
    %v1519 = vmax.f32 %v1487, 0.0
    %v1520 = vmax.f32 %v1488, 0.0
    %v1521 = vmax.f32 %v1489, 0.0
    %v1522 = vmax.f32 %v1490, 0.0
    %v1523 = vmax.f32 %v1491, 0.0
    %v1524 = vmax.f32 %v1492, 0.0
    %v1525 = vmax.f32 %v1493, %v1501
    %v1526 = vrot.slane %v1525, 4
    %v1527 = vmax.f32 %v1525, %v1526
    %v1528 = vrot.slane %v1527, 2
    %v1529 = vmax.f32 %v1527, %v1528
    %v1530 = vrot.slane %v1529, 1
    %v1531 = vmax.f32 %v1529, %v1530
    %v1532 = vmax.f32 %v1494, %v1502
    %v1533 = vrot.slane %v1532, 4
    %v1534 = vmax.f32 %v1532, %v1533
    %v1535 = vrot.slane %v1534, 2
    %v1536 = vmax.f32 %v1534, %v1535
    %v1537 = vrot.slane %v1536, 1
    %v1538 = vmax.f32 %v1536, %v1537
    %v1539 = vmax.f32 %v1495, %v1503
    %v1540 = vrot.slane %v1539, 4
    %v1541 = vmax.f32 %v1539, %v1540
    %v1542 = vrot.slane %v1541, 2
    %v1543 = vmax.f32 %v1541, %v1542
    %v1544 = vrot.slane %v1543, 1
    %v1545 = vmax.f32 %v1543, %v1544
    %v1546 = vmax.f32 %v1496, %v1504
    %v1547 = vrot.slane %v1546, 4
    %v1548 = vmax.f32 %v1546, %v1547
    %v1549 = vrot.slane %v1548, 2
    %v1550 = vmax.f32 %v1548, %v1549
    %v1551 = vrot.slane %v1550, 1
    %v1552 = vmax.f32 %v1550, %v1551
    %v1553 = vmax.f32 %v1497, %v1505
    %v1554 = vrot.slane %v1553, 4
    %v1555 = vmax.f32 %v1553, %v1554
    %v1556 = vrot.slane %v1555, 2
    %v1557 = vmax.f32 %v1555, %v1556
    %v1558 = vrot.slane %v1557, 1
    %v1559 = vmax.f32 %v1557, %v1558
    %v1560 = vmax.f32 %v1498, %v1506
    %v1561 = vrot.slane %v1560, 4
    %v1562 = vmax.f32 %v1560, %v1561
    %v1563 = vrot.slane %v1562, 2
    %v1564 = vmax.f32 %v1562, %v1563
    %v1565 = vrot.slane %v1564, 1
    %v1566 = vmax.f32 %v1564, %v1565
    %v1567 = vmax.f32 %v1499, %v1507
    %v1568 = vrot.slane %v1567, 4
    %v1569 = vmax.f32 %v1567, %v1568
    %v1570 = vrot.slane %v1569, 2
    %v1571 = vmax.f32 %v1569, %v1570
    %v1572 = vrot.slane %v1571, 1
    %v1573 = vmax.f32 %v1571, %v1572
    %v1574 = vmax.f32 %v1500, %v1508
    %v1575 = vrot.slane %v1574, 4
    %v1576 = vmax.f32 %v1574, %v1575
    %v1577 = vrot.slane %v1576, 2
    %v1578 = vmax.f32 %v1576, %v1577
    %v1579 = vrot.slane %v1578, 1
    %v1580 = vmax.f32 %v1578, %v1579
    %v1581 = vmax.f32 %v1509, %v1517
    %v1582 = vrot.slane %v1581, 4
    %v1583 = vmax.f32 %v1581, %v1582
    %v1584 = vrot.slane %v1583, 2
    %v1585 = vmax.f32 %v1583, %v1584
    %v1586 = vrot.slane %v1585, 1
    %v1587 = vmax.f32 %v1585, %v1586
    %v1588 = vmax.f32 %v1510, %v1518
    %v1589 = vrot.slane %v1588, 4
    %v1590 = vmax.f32 %v1588, %v1589
    %v1591 = vrot.slane %v1590, 2
    %v1592 = vmax.f32 %v1590, %v1591
    %v1593 = vrot.slane %v1592, 1
    %v1594 = vmax.f32 %v1592, %v1593
    %v1595 = vmax.f32 %v1511, %v1519
    %v1596 = vrot.slane %v1595, 4
    %v1597 = vmax.f32 %v1595, %v1596
    %v1598 = vrot.slane %v1597, 2
    %v1599 = vmax.f32 %v1597, %v1598
    %v1600 = vrot.slane %v1599, 1
    %v1601 = vmax.f32 %v1599, %v1600
    %v1602 = vmax.f32 %v1512, %v1520
    %v1603 = vrot.slane %v1602, 4
    %v1604 = vmax.f32 %v1602, %v1603
    %v1605 = vrot.slane %v1604, 2
    %v1606 = vmax.f32 %v1604, %v1605
    %v1607 = vrot.slane %v1606, 1
    %v1608 = vmax.f32 %v1606, %v1607
    %v1609 = vmax.f32 %v1513, %v1521
    %v1610 = vrot.slane %v1609, 4
    %v1611 = vmax.f32 %v1609, %v1610
    %v1612 = vrot.slane %v1611, 2
    %v1613 = vmax.f32 %v1611, %v1612
    %v1614 = vrot.slane %v1613, 1
    %v1615 = vmax.f32 %v1613, %v1614
    %v1616 = vmax.f32 %v1514, %v1522
    %v1617 = vrot.slane %v1616, 4
    %v1618 = vmax.f32 %v1616, %v1617
    %v1619 = vrot.slane %v1618, 2
    %v1620 = vmax.f32 %v1618, %v1619
    %v1621 = vrot.slane %v1620, 1
    %v1622 = vmax.f32 %v1620, %v1621
    %v1623 = vmax.f32 %v1515, %v1523
    %v1624 = vrot.slane %v1623, 4
    %v1625 = vmax.f32 %v1623, %v1624
    %v1626 = vrot.slane %v1625, 2
    %v1627 = vmax.f32 %v1625, %v1626
    %v1628 = vrot.slane %v1627, 1
    %v1629 = vmax.f32 %v1627, %v1628
    %v1630 = vmax.f32 %v1516, %v1524
    %v1631 = vrot.slane %v1630, 4
    %v1632 = vmax.f32 %v1630, %v1631
    %v1633 = vrot.slane %v1632, 2
    %v1634 = vmax.f32 %v1632, %v1633
    %v1635 = vrot.slane %v1634, 1
    %v1636 = vmax.f32 %v1634, %v1635
    %v1637 = vpack.c.bf16 %v1531, %v1531
    %v1638 = vpack.c.bf16 %v1538, %v1538
    %v1639 = vpack.c.bf16 %v1545, %v1545
    %v1640 = vpack.c.bf16 %v1552, %v1552
    %v1641 = vpack.c.bf16 %v1559, %v1559
    %v1642 = vpack.c.bf16 %v1566, %v1566
    %v1643 = vpack.c.bf16 %v1573, %v1573
    %v1644 = vpack.c.bf16 %v1580, %v1580
    %v1645 = vpack.c.bf16 %v1587, %v1587
    %v1646 = vpack.c.bf16 %v1594, %v1594
    %v1647 = vpack.c.bf16 %v1601, %v1601
    %v1648 = vpack.c.bf16 %v1608, %v1608
    %v1649 = vpack.c.bf16 %v1615, %v1615
    %v1650 = vpack.c.bf16 %v1622, %v1622
    %v1651 = vpack.c.bf16 %v1629, %v1629
    %v1652 = vpack.c.bf16 %v1636, %v1636
    %v1653 = vld [vmem:[#allocation4] sm:$0xff]
    %v1654 = vld [vmem:[#allocation4 + $0x8] sm:$0xff]
    %v1655 = vld [vmem:[#allocation4 + $0x10] sm:$0xff]
    %v1656 = vld [vmem:[#allocation4 + $0x18] sm:$0xff]
    %v1657 = vld [vmem:[#allocation4 + $0x20] sm:$0xff]
    %v1658 = vld [vmem:[#allocation4 + $0x28] sm:$0xff]
    %v1659 = vld [vmem:[#allocation4 + $0x30] sm:$0xff]
    %v1660 = vld [vmem:[#allocation4 + $0x38] sm:$0xff]
    %v1661 = vld [vmem:[#allocation4 + $0x40] sm:$0xff]
    %v1662 = vld [vmem:[#allocation4 + $0x48] sm:$0xff]
    %v1663 = vld [vmem:[#allocation4 + $0x50] sm:$0xff]
    %v1664 = vld [vmem:[#allocation4 + $0x58] sm:$0xff]
    %v1665 = vld [vmem:[#allocation4 + $0x60] sm:$0xff]
    %v1666 = vld [vmem:[#allocation4 + $0x68] sm:$0xff]
    %v1667 = vld [vmem:[#allocation4 + $0x70] sm:$0xff]
    %v1668 = vld [vmem:[#allocation4 + $0x78] sm:$0xff]
    %v1669 = vld [vmem:[#allocation4 + $0x80] sm:$0xff]
    %v1670 = vld [vmem:[#allocation4 + $0x88] sm:$0xff]
    %v1671 = vld [vmem:[#allocation4 + $0x90] sm:$0xff]
    %v1672 = vld [vmem:[#allocation4 + $0x98] sm:$0xff]
    %v1673 = vld [vmem:[#allocation4 + $0xa0] sm:$0xff]
    %v1674 = vld [vmem:[#allocation4 + $0xa8] sm:$0xff]
    %v1675 = vld [vmem:[#allocation4 + $0xb0] sm:$0xff]
    %v1676 = vld [vmem:[#allocation4 + $0xb8] sm:$0xff]
    %v1677 = vld [vmem:[#allocation4 + $0xc0] sm:$0xff]
    %v1678 = vld [vmem:[#allocation4 + $0xc8] sm:$0xff]
    %v1679 = vld [vmem:[#allocation4 + $0xd0] sm:$0xff]
    %v1680 = vld [vmem:[#allocation4 + $0xd8] sm:$0xff]
    %v1681 = vld [vmem:[#allocation4 + $0xe0] sm:$0xff]
    %v1682 = vld [vmem:[#allocation4 + $0xe8] sm:$0xff]
    %v1683 = vld [vmem:[#allocation4 + $0xf0] sm:$0xff]
    %v1684 = vld [vmem:[#allocation4 + $0xf8] sm:$0xff]
    %v1685 = vld [vmem:[#allocation4 + $0x100] sm:$0xff]
    %v1686 = vld [vmem:[#allocation4 + $0x108] sm:$0xff]
    %v1687 = vld [vmem:[#allocation4 + $0x110] sm:$0xff]
    %v1688 = vld [vmem:[#allocation4 + $0x118] sm:$0xff]
    %v1689 = vld [vmem:[#allocation4 + $0x120] sm:$0xff]
    %v1690 = vld [vmem:[#allocation4 + $0x128] sm:$0xff]
    %v1691 = vld [vmem:[#allocation4 + $0x130] sm:$0xff]
    %v1692 = vld [vmem:[#allocation4 + $0x138] sm:$0xff]
    %v1693 = vld [vmem:[#allocation4 + $0x140] sm:$0xff]
    %v1694 = vld [vmem:[#allocation4 + $0x148] sm:$0xff]
    %v1695 = vld [vmem:[#allocation4 + $0x150] sm:$0xff]
    %v1696 = vld [vmem:[#allocation4 + $0x158] sm:$0xff]
    %v1697 = vld [vmem:[#allocation4 + $0x160] sm:$0xff]
    %v1698 = vld [vmem:[#allocation4 + $0x168] sm:$0xff]
    %v1699 = vld [vmem:[#allocation4 + $0x170] sm:$0xff]
    %v1700 = vld [vmem:[#allocation4 + $0x178] sm:$0xff]
    %v1701 = vld [vmem:[#allocation4 + $0x180] sm:$0xff]
    %v1702 = vld [vmem:[#allocation4 + $0x188] sm:$0xff]
    %v1703 = vld [vmem:[#allocation4 + $0x190] sm:$0xff]
    %v1704 = vld [vmem:[#allocation4 + $0x198] sm:$0xff]
    %v1705 = vld [vmem:[#allocation4 + $0x1a0] sm:$0xff]
    %v1706 = vld [vmem:[#allocation4 + $0x1a8] sm:$0xff]
    %v1707 = vld [vmem:[#allocation4 + $0x1b0] sm:$0xff]
    %v1708 = vld [vmem:[#allocation4 + $0x1b8] sm:$0xff]
    %v1709 = vld [vmem:[#allocation4 + $0x1c0] sm:$0xff]
    %v1710 = vld [vmem:[#allocation4 + $0x1c8] sm:$0xff]
    %v1711 = vld [vmem:[#allocation4 + $0x1d0] sm:$0xff]
    %v1712 = vld [vmem:[#allocation4 + $0x1d8] sm:$0xff]
    %v1713 = vld [vmem:[#allocation4 + $0x1e0] sm:$0xff]
    %v1714 = vld [vmem:[#allocation4 + $0x1e8] sm:$0xff]
    %v1715 = vld [vmem:[#allocation4 + $0x1f0] sm:$0xff]
    %v1716 = vld [vmem:[#allocation4 + $0x1f8] sm:$0xff]
    %v1717 = vld [vmem:[#allocation4 + $0x200] sm:$0xff]
    %v1718 = vld [vmem:[#allocation4 + $0x208] sm:$0xff]
    %v1719 = vld [vmem:[#allocation4 + $0x210] sm:$0xff]
    %v1720 = vld [vmem:[#allocation4 + $0x218] sm:$0xff]
    %v1721 = vld [vmem:[#allocation4 + $0x220] sm:$0xff]
    %v1722 = vld [vmem:[#allocation4 + $0x228] sm:$0xff]
    %v1723 = vld [vmem:[#allocation4 + $0x230] sm:$0xff]
    %v1724 = vld [vmem:[#allocation4 + $0x238] sm:$0xff]
    %v1725 = vld [vmem:[#allocation4 + $0x240] sm:$0xff]
    %v1726 = vld [vmem:[#allocation4 + $0x248] sm:$0xff]
    %v1727 = vld [vmem:[#allocation4 + $0x250] sm:$0xff]
    %v1728 = vld [vmem:[#allocation4 + $0x258] sm:$0xff]
    %v1729 = vld [vmem:[#allocation4 + $0x260] sm:$0xff]
    %v1730 = vld [vmem:[#allocation4 + $0x268] sm:$0xff]
    %v1731 = vld [vmem:[#allocation4 + $0x270] sm:$0xff]
    %v1732 = vld [vmem:[#allocation4 + $0x278] sm:$0xff]
    %v1733 = vld [vmem:[#allocation4 + $0x280] sm:$0xff]
    %v1734 = vld [vmem:[#allocation4 + $0x288] sm:$0xff]
    %v1735 = vld [vmem:[#allocation4 + $0x290] sm:$0xff]
    %v1736 = vld [vmem:[#allocation4 + $0x298] sm:$0xff]
    %v1737 = vld [vmem:[#allocation4 + $0x2a0] sm:$0xff]
    %v1738 = vld [vmem:[#allocation4 + $0x2a8] sm:$0xff]
    %v1739 = vld [vmem:[#allocation4 + $0x2b0] sm:$0xff]
    %v1740 = vld [vmem:[#allocation4 + $0x2b8] sm:$0xff]
    %v1741 = vld [vmem:[#allocation4 + $0x2c0] sm:$0xff]
    %v1742 = vld [vmem:[#allocation4 + $0x2c8] sm:$0xff]
    %v1743 = vld [vmem:[#allocation4 + $0x2d0] sm:$0xff]
    %v1744 = vld [vmem:[#allocation4 + $0x2d8] sm:$0xff]
    %v1745 = vld [vmem:[#allocation4 + $0x2e0] sm:$0xff]
    %v1746 = vld [vmem:[#allocation4 + $0x2e8] sm:$0xff]
    %v1747 = vld [vmem:[#allocation4 + $0x2f0] sm:$0xff]
    %v1748 = vld [vmem:[#allocation4 + $0x2f8] sm:$0xff]
    %v1749 = vld [vmem:[#allocation4 + $0x300] sm:$0xff]
    %v1750 = vld [vmem:[#allocation4 + $0x308] sm:$0xff]
    %v1751 = vld [vmem:[#allocation4 + $0x310] sm:$0xff]
    %v1752 = vld [vmem:[#allocation4 + $0x318] sm:$0xff]
    %v1753 = vld [vmem:[#allocation4 + $0x320] sm:$0xff]
    %v1754 = vld [vmem:[#allocation4 + $0x328] sm:$0xff]
    %v1755 = vld [vmem:[#allocation4 + $0x330] sm:$0xff]
    %v1756 = vld [vmem:[#allocation4 + $0x338] sm:$0xff]
    %v1757 = vld [vmem:[#allocation4 + $0x340] sm:$0xff]
    %v1758 = vld [vmem:[#allocation4 + $0x348] sm:$0xff]
    %v1759 = vld [vmem:[#allocation4 + $0x350] sm:$0xff]
    %v1760 = vld [vmem:[#allocation4 + $0x358] sm:$0xff]
    %v1761 = vld [vmem:[#allocation4 + $0x360] sm:$0xff]
    %v1762 = vld [vmem:[#allocation4 + $0x368] sm:$0xff]
    %v1763 = vld [vmem:[#allocation4 + $0x370] sm:$0xff]
    %v1764 = vld [vmem:[#allocation4 + $0x378] sm:$0xff]
    %v1765 = vld [vmem:[#allocation4 + $0x380] sm:$0xff]
    %v1766 = vld [vmem:[#allocation4 + $0x388] sm:$0xff]
    %v1767 = vld [vmem:[#allocation4 + $0x390] sm:$0xff]
    %v1768 = vld [vmem:[#allocation4 + $0x398] sm:$0xff]
    %v1769 = vld [vmem:[#allocation4 + $0x3a0] sm:$0xff]
    %v1770 = vld [vmem:[#allocation4 + $0x3a8] sm:$0xff]
    %v1771 = vld [vmem:[#allocation4 + $0x3b0] sm:$0xff]
    %v1772 = vld [vmem:[#allocation4 + $0x3b8] sm:$0xff]
    %v1773 = vld [vmem:[#allocation4 + $0x3c0] sm:$0xff]
    %v1774 = vld [vmem:[#allocation4 + $0x3c8] sm:$0xff]
    %v1775 = vld [vmem:[#allocation4 + $0x3d0] sm:$0xff]
    %v1776 = vld [vmem:[#allocation4 + $0x3d8] sm:$0xff]
    %v1777 = vld [vmem:[#allocation4 + $0x3e0] sm:$0xff]
    %v1778 = vld [vmem:[#allocation4 + $0x3e8] sm:$0xff]
    %v1779 = vld [vmem:[#allocation4 + $0x3f0] sm:$0xff]
    %v1780 = vld [vmem:[#allocation4 + $0x3f8] sm:$0xff]
    %v1781 = vld [vmem:[#allocation4 + $0x400] sm:$0xff]
    %v1782 = vld [vmem:[#allocation4 + $0x408] sm:$0xff]
    %v1783 = vld [vmem:[#allocation4 + $0x410] sm:$0xff]
    %v1784 = vld [vmem:[#allocation4 + $0x418] sm:$0xff]
    %v1785 = vld [vmem:[#allocation4 + $0x420] sm:$0xff]
    %v1786 = vld [vmem:[#allocation4 + $0x428] sm:$0xff]
    %v1787 = vld [vmem:[#allocation4 + $0x430] sm:$0xff]
    %v1788 = vld [vmem:[#allocation4 + $0x438] sm:$0xff]
    %v1789 = vld [vmem:[#allocation4 + $0x440] sm:$0xff]
    %v1790 = vld [vmem:[#allocation4 + $0x448] sm:$0xff]
    %v1791 = vld [vmem:[#allocation4 + $0x450] sm:$0xff]
    %v1792 = vld [vmem:[#allocation4 + $0x458] sm:$0xff]
    %v1793 = vld [vmem:[#allocation4 + $0x460] sm:$0xff]
    %v1794 = vld [vmem:[#allocation4 + $0x468] sm:$0xff]
    %v1795 = vld [vmem:[#allocation4 + $0x470] sm:$0xff]
    %v1796 = vld [vmem:[#allocation4 + $0x478] sm:$0xff]
    %v1797 = vld [vmem:[#allocation4 + $0x480] sm:$0xff]
    %v1798 = vld [vmem:[#allocation4 + $0x488] sm:$0xff]
    %v1799 = vld [vmem:[#allocation4 + $0x490] sm:$0xff]
    %v1800 = vld [vmem:[#allocation4 + $0x498] sm:$0xff]
    %v1801 = vld [vmem:[#allocation4 + $0x4a0] sm:$0xff]
    %v1802 = vld [vmem:[#allocation4 + $0x4a8] sm:$0xff]
    %v1803 = vld [vmem:[#allocation4 + $0x4b0] sm:$0xff]
    %v1804 = vld [vmem:[#allocation4 + $0x4b8] sm:$0xff]
    %v1805 = vld [vmem:[#allocation4 + $0x4c0] sm:$0xff]
    %v1806 = vld [vmem:[#allocation4 + $0x4c8] sm:$0xff]
    %v1807 = vld [vmem:[#allocation4 + $0x4d0] sm:$0xff]
    %v1808 = vld [vmem:[#allocation4 + $0x4d8] sm:$0xff]
    %v1809 = vld [vmem:[#allocation4 + $0x4e0] sm:$0xff]
    %v1810 = vld [vmem:[#allocation4 + $0x4e8] sm:$0xff]
    %v1811 = vld [vmem:[#allocation4 + $0x4f0] sm:$0xff]
    %v1812 = vld [vmem:[#allocation4 + $0x4f8] sm:$0xff]
    %v1813 = vld [vmem:[#allocation4 + $0x500] sm:$0xff]
    %v1814 = vld [vmem:[#allocation4 + $0x508] sm:$0xff]
    %v1815 = vld [vmem:[#allocation4 + $0x510] sm:$0xff]
    %v1816 = vld [vmem:[#allocation4 + $0x518] sm:$0xff]
    %v1817 = vld [vmem:[#allocation4 + $0x520] sm:$0xff]
    %v1818 = vld [vmem:[#allocation4 + $0x528] sm:$0xff]
    %v1819 = vld [vmem:[#allocation4 + $0x530] sm:$0xff]
    %v1820 = vld [vmem:[#allocation4 + $0x538] sm:$0xff]
    %v1821 = vld [vmem:[#allocation4 + $0x540] sm:$0xff]
    %v1822 = vld [vmem:[#allocation4 + $0x548] sm:$0xff]
    %v1823 = vld [vmem:[#allocation4 + $0x550] sm:$0xff]
    %v1824 = vld [vmem:[#allocation4 + $0x558] sm:$0xff]
    %v1825 = vld [vmem:[#allocation4 + $0x560] sm:$0xff]
    %v1826 = vld [vmem:[#allocation4 + $0x568] sm:$0xff]
    %v1827 = vld [vmem:[#allocation4 + $0x570] sm:$0xff]
    %v1828 = vld [vmem:[#allocation4 + $0x578] sm:$0xff]
    %v1829 = vld [vmem:[#allocation4 + $0x580] sm:$0xff]
    %v1830 = vld [vmem:[#allocation4 + $0x588] sm:$0xff]
    %v1831 = vld [vmem:[#allocation4 + $0x590] sm:$0xff]
    %v1832 = vld [vmem:[#allocation4 + $0x598] sm:$0xff]
    %v1833 = vld [vmem:[#allocation4 + $0x5a0] sm:$0xff]
    %v1834 = vld [vmem:[#allocation4 + $0x5a8] sm:$0xff]
    %v1835 = vld [vmem:[#allocation4 + $0x5b0] sm:$0xff]
    %v1836 = vld [vmem:[#allocation4 + $0x5b8] sm:$0xff]
    %v1837 = vld [vmem:[#allocation4 + $0x5c0] sm:$0xff]
    %v1838 = vld [vmem:[#allocation4 + $0x5c8] sm:$0xff]
    %v1839 = vld [vmem:[#allocation4 + $0x5d0] sm:$0xff]
    %v1840 = vld [vmem:[#allocation4 + $0x5d8] sm:$0xff]
    %v1841 = vld [vmem:[#allocation4 + $0x5e0] sm:$0xff]
    %v1842 = vld [vmem:[#allocation4 + $0x5e8] sm:$0xff]
    %v1843 = vld [vmem:[#allocation4 + $0x5f0] sm:$0xff]
    %v1844 = vld [vmem:[#allocation4 + $0x5f8] sm:$0xff]
    %v1845 = vld [vmem:[#allocation4 + $0x600] sm:$0xff]
    %v1846 = vld [vmem:[#allocation4 + $0x608] sm:$0xff]
    %v1847 = vld [vmem:[#allocation4 + $0x610] sm:$0xff]
    %v1848 = vld [vmem:[#allocation4 + $0x618] sm:$0xff]
    %v1849 = vld [vmem:[#allocation4 + $0x620] sm:$0xff]
    %v1850 = vld [vmem:[#allocation4 + $0x628] sm:$0xff]
    %v1851 = vld [vmem:[#allocation4 + $0x630] sm:$0xff]
    %v1852 = vld [vmem:[#allocation4 + $0x638] sm:$0xff]
    %v1853 = vld [vmem:[#allocation4 + $0x640] sm:$0xff]
    %v1854 = vld [vmem:[#allocation4 + $0x648] sm:$0xff]
    %v1855 = vld [vmem:[#allocation4 + $0x650] sm:$0xff]
    %v1856 = vld [vmem:[#allocation4 + $0x658] sm:$0xff]
    %v1857 = vld [vmem:[#allocation4 + $0x660] sm:$0xff]
    %v1858 = vld [vmem:[#allocation4 + $0x668] sm:$0xff]
    %v1859 = vld [vmem:[#allocation4 + $0x670] sm:$0xff]
    %v1860 = vld [vmem:[#allocation4 + $0x678] sm:$0xff]
    %v1861 = vld [vmem:[#allocation4 + $0x680] sm:$0xff]
    %v1862 = vld [vmem:[#allocation4 + $0x688] sm:$0xff]
    %v1863 = vld [vmem:[#allocation4 + $0x690] sm:$0xff]
    %v1864 = vld [vmem:[#allocation4 + $0x698] sm:$0xff]
    %v1865 = vld [vmem:[#allocation4 + $0x6a0] sm:$0xff]
    %v1866 = vld [vmem:[#allocation4 + $0x6a8] sm:$0xff]
    %v1867 = vld [vmem:[#allocation4 + $0x6b0] sm:$0xff]
    %v1868 = vld [vmem:[#allocation4 + $0x6b8] sm:$0xff]
    %v1869 = vld [vmem:[#allocation4 + $0x6c0] sm:$0xff]
    %v1870 = vld [vmem:[#allocation4 + $0x6c8] sm:$0xff]
    %v1871 = vld [vmem:[#allocation4 + $0x6d0] sm:$0xff]
    %v1872 = vld [vmem:[#allocation4 + $0x6d8] sm:$0xff]
    %v1873 = vld [vmem:[#allocation4 + $0x6e0] sm:$0xff]
    %v1874 = vld [vmem:[#allocation4 + $0x6e8] sm:$0xff]
    %v1875 = vld [vmem:[#allocation4 + $0x6f0] sm:$0xff]
    %v1876 = vld [vmem:[#allocation4 + $0x6f8] sm:$0xff]
    %v1877 = vld [vmem:[#allocation4 + $0x700] sm:$0xff]
    %v1878 = vld [vmem:[#allocation4 + $0x708] sm:$0xff]
    %v1879 = vld [vmem:[#allocation4 + $0x710] sm:$0xff]
    %v1880 = vld [vmem:[#allocation4 + $0x718] sm:$0xff]
    %v1881 = vld [vmem:[#allocation4 + $0x720] sm:$0xff]
    %v1882 = vld [vmem:[#allocation4 + $0x728] sm:$0xff]
    %v1883 = vld [vmem:[#allocation4 + $0x730] sm:$0xff]
    %v1884 = vld [vmem:[#allocation4 + $0x738] sm:$0xff]
    %v1885 = vld [vmem:[#allocation4 + $0x740] sm:$0xff]
    %v1886 = vld [vmem:[#allocation4 + $0x748] sm:$0xff]
    %v1887 = vld [vmem:[#allocation4 + $0x750] sm:$0xff]
    %v1888 = vld [vmem:[#allocation4 + $0x758] sm:$0xff]
    %v1889 = vld [vmem:[#allocation4 + $0x760] sm:$0xff]
    %v1890 = vld [vmem:[#allocation4 + $0x768] sm:$0xff]
    %v1891 = vld [vmem:[#allocation4 + $0x770] sm:$0xff]
    %v1892 = vld [vmem:[#allocation4 + $0x778] sm:$0xff]
    %v1893 = vld [vmem:[#allocation4 + $0x780] sm:$0xff]
    %v1894 = vld [vmem:[#allocation4 + $0x788] sm:$0xff]
    %v1895 = vld [vmem:[#allocation4 + $0x790] sm:$0xff]
    %v1896 = vld [vmem:[#allocation4 + $0x798] sm:$0xff]
    %v1897 = vld [vmem:[#allocation4 + $0x7a0] sm:$0xff]
    %v1898 = vld [vmem:[#allocation4 + $0x7a8] sm:$0xff]
    %v1899 = vld [vmem:[#allocation4 + $0x7b0] sm:$0xff]
    %v1900 = vld [vmem:[#allocation4 + $0x7b8] sm:$0xff]
    %v1901 = vld [vmem:[#allocation4 + $0x7c0] sm:$0xff]
    %v1902 = vld [vmem:[#allocation4 + $0x7c8] sm:$0xff]
    %v1903 = vld [vmem:[#allocation4 + $0x7d0] sm:$0xff]
    %v1904 = vld [vmem:[#allocation4 + $0x7d8] sm:$0xff]
    %v1905 = vld [vmem:[#allocation4 + $0x7e0] sm:$0xff]
    %v1906 = vld [vmem:[#allocation4 + $0x7e8] sm:$0xff]
    %v1907 = vld [vmem:[#allocation4 + $0x7f0] sm:$0xff]
    %v1908 = vld [vmem:[#allocation4 + $0x7f8] sm:$0xff]
    %v1909 = vld [vmem:[%s8] sm:$0xf]
    %v1911 = vlaneseq
    %v1912 = vshrl.u32 %v1911, 7
    %v1913 = vsub.s32 0, %v1912
    %v1914 = vrot.slane %v1909, %v1913
    %v1915 = vlaneseq
    %v1916 = vshrl.u32 %v1915, 7
    %v1917 = vsub.s32 1, %v1916
    %v1918 = vrot.slane %v1909, %v1917
    %v1919 = vlaneseq
    %v1920 = vshrl.u32 %v1919, 7
    %v1921 = vsub.s32 2, %v1920
    %v1922 = vrot.slane %v1909, %v1921
    %v1923 = vlaneseq
    %v1924 = vshrl.u32 %v1923, 7
    %v1925 = vsub.s32 3, %v1924
    %v1926 = vrot.slane %v1909, %v1925
    %v1947 = vunpack.c.l.b16 %v1637
    %v1948 = vunpack.c.l.b16 %v1638
    %v1949 = vunpack.c.l.b16 %v1639
    %v1950 = vunpack.c.l.b16 %v1640
    %v1951 = vunpack.c.l.b16 %v1641
    %v1952 = vunpack.c.l.b16 %v1642
    %v1953 = vunpack.c.l.b16 %v1643
    %v1954 = vunpack.c.l.b16 %v1644
    %v1955 = vunpack.c.l.b16 %v1645
    %v1956 = vunpack.c.l.b16 %v1646
    %v1957 = vunpack.c.l.b16 %v1647
    %v1958 = vunpack.c.l.b16 %v1648
    %v1959 = vunpack.c.l.b16 %v1649
    %v1960 = vunpack.c.l.b16 %v1650
    %v1961 = vunpack.c.l.b16 %v1651
    %v1962 = vunpack.c.l.b16 %v1652
    %vm1963 = vcmask 1041409
    %v1964 = vsel %vm1963, %v1955, %v1947
    %v1965 = vsel %vm1963, %v1956, %v1948
    %v1966 = vsel %vm1963, %v1957, %v1949
    %v1967 = vsel %vm1963, %v1958, %v1950
    %v1968 = vsel %vm1963, %v1959, %v1951
    %v1969 = vsel %vm1963, %v1960, %v1952
    %v1970 = vsel %vm1963, %v1961, %v1953
    %v1971 = vsel %vm1963, %v1962, %v1954
    %v1972 = vpack.c.b16 %v1964, %v1964
    %v1973 = vpack.c.b16 %v1965, %v1965
    %v1974 = vpack.c.b16 %v1966, %v1966
    %v1975 = vpack.c.b16 %v1967, %v1967
    %v1976 = vpack.c.b16 %v1968, %v1968
    %v1977 = vpack.c.b16 %v1969, %v1969
    %v1978 = vpack.c.b16 %v1970, %v1970
    %v1979 = vpack.c.b16 %v1971, %v1971
    %v2244 = vunpack.c.l.b16 %v1653
    %v2245 = vunpack.c.h.b16 %v1653
    %v2246 = vunpack.c.l.b16 %v1654
    %v2247 = vunpack.c.h.b16 %v1654
    %v2248 = vunpack.c.l.b16 %v1655
    %v2249 = vunpack.c.h.b16 %v1655
    %v2250 = vunpack.c.l.b16 %v1656
    %v2251 = vunpack.c.h.b16 %v1656
    %v2252 = vunpack.c.l.b16 %v1657
    %v2253 = vunpack.c.h.b16 %v1657
    %v2254 = vunpack.c.l.b16 %v1658
    %v2255 = vunpack.c.h.b16 %v1658
    %v2256 = vunpack.c.l.b16 %v1659
    %v2257 = vunpack.c.h.b16 %v1659
    %v2258 = vunpack.c.l.b16 %v1660
    %v2259 = vunpack.c.h.b16 %v1660
    %v2260 = vunpack.c.l.b16 %v1661
    %v2261 = vunpack.c.h.b16 %v1661
    %v2262 = vunpack.c.l.b16 %v1662
    %v2263 = vunpack.c.h.b16 %v1662
    %v2264 = vunpack.c.l.b16 %v1663
    %v2265 = vunpack.c.h.b16 %v1663
    %v2266 = vunpack.c.l.b16 %v1664
    %v2267 = vunpack.c.h.b16 %v1664
    %v2268 = vunpack.c.l.b16 %v1665
    %v2269 = vunpack.c.h.b16 %v1665
    %v2270 = vunpack.c.l.b16 %v1666
    %v2271 = vunpack.c.h.b16 %v1666
    %v2272 = vunpack.c.l.b16 %v1667
    %v2273 = vunpack.c.h.b16 %v1667
    %v2274 = vunpack.c.l.b16 %v1668
    %v2275 = vunpack.c.h.b16 %v1668
    %v2276 = vunpack.c.l.b16 %v1669
    %v2277 = vunpack.c.h.b16 %v1669
    %v2278 = vunpack.c.l.b16 %v1670
    %v2279 = vunpack.c.h.b16 %v1670
    %v2280 = vunpack.c.l.b16 %v1671
    %v2281 = vunpack.c.h.b16 %v1671
    %v2282 = vunpack.c.l.b16 %v1672
    %v2283 = vunpack.c.h.b16 %v1672
    %v2284 = vunpack.c.l.b16 %v1673
    %v2285 = vunpack.c.h.b16 %v1673
    %v2286 = vunpack.c.l.b16 %v1674
    %v2287 = vunpack.c.h.b16 %v1674
    %v2288 = vunpack.c.l.b16 %v1675
    %v2289 = vunpack.c.h.b16 %v1675
    %v2290 = vunpack.c.l.b16 %v1676
    %v2291 = vunpack.c.h.b16 %v1676
    %v2292 = vunpack.c.l.b16 %v1677
    %v2293 = vunpack.c.h.b16 %v1677
    %v2294 = vunpack.c.l.b16 %v1678
    %v2295 = vunpack.c.h.b16 %v1678
    %v2296 = vunpack.c.l.b16 %v1679
    %v2297 = vunpack.c.h.b16 %v1679
    %v2298 = vunpack.c.l.b16 %v1680
    %v2299 = vunpack.c.h.b16 %v1680
    %v2300 = vunpack.c.l.b16 %v1681
    %v2301 = vunpack.c.h.b16 %v1681
    %v2302 = vunpack.c.l.b16 %v1682
    %v2303 = vunpack.c.h.b16 %v1682
    %v2304 = vunpack.c.l.b16 %v1683
    %v2305 = vunpack.c.h.b16 %v1683
    %v2306 = vunpack.c.l.b16 %v1684
    %v2307 = vunpack.c.h.b16 %v1684
    %v2308 = vunpack.c.l.b16 %v1685
    %v2309 = vunpack.c.h.b16 %v1685
    %v2310 = vunpack.c.l.b16 %v1686
    %v2311 = vunpack.c.h.b16 %v1686
    %v2312 = vunpack.c.l.b16 %v1687
    %v2313 = vunpack.c.h.b16 %v1687
    %v2314 = vunpack.c.l.b16 %v1688
    %v2315 = vunpack.c.h.b16 %v1688
    %v2316 = vunpack.c.l.b16 %v1689
    %v2317 = vunpack.c.h.b16 %v1689
    %v2318 = vunpack.c.l.b16 %v1690
    %v2319 = vunpack.c.h.b16 %v1690
    %v2320 = vunpack.c.l.b16 %v1691
    %v2321 = vunpack.c.h.b16 %v1691
    %v2322 = vunpack.c.l.b16 %v1692
    %v2323 = vunpack.c.h.b16 %v1692
    %v2324 = vunpack.c.l.b16 %v1693
    %v2325 = vunpack.c.h.b16 %v1693
    %v2326 = vunpack.c.l.b16 %v1694
    %v2327 = vunpack.c.h.b16 %v1694
    %v2328 = vunpack.c.l.b16 %v1695
    %v2329 = vunpack.c.h.b16 %v1695
    %v2330 = vunpack.c.l.b16 %v1696
    %v2331 = vunpack.c.h.b16 %v1696
    %v2332 = vunpack.c.l.b16 %v1697
    %v2333 = vunpack.c.h.b16 %v1697
    %v2334 = vunpack.c.l.b16 %v1698
    %v2335 = vunpack.c.h.b16 %v1698
    %v2336 = vunpack.c.l.b16 %v1699
    %v2337 = vunpack.c.h.b16 %v1699
    %v2338 = vunpack.c.l.b16 %v1700
    %v2339 = vunpack.c.h.b16 %v1700
    %v2340 = vunpack.c.l.b16 %v1701
    %v2341 = vunpack.c.h.b16 %v1701
    %v2342 = vunpack.c.l.b16 %v1702
    %v2343 = vunpack.c.h.b16 %v1702
    %v2344 = vunpack.c.l.b16 %v1703
    %v2345 = vunpack.c.h.b16 %v1703
    %v2346 = vunpack.c.l.b16 %v1704
    %v2347 = vunpack.c.h.b16 %v1704
    %v2348 = vunpack.c.l.b16 %v1705
    %v2349 = vunpack.c.h.b16 %v1705
    %v2350 = vunpack.c.l.b16 %v1706
    %v2351 = vunpack.c.h.b16 %v1706
    %v2352 = vunpack.c.l.b16 %v1707
    %v2353 = vunpack.c.h.b16 %v1707
    %v2354 = vunpack.c.l.b16 %v1708
    %v2355 = vunpack.c.h.b16 %v1708
    %v2356 = vunpack.c.l.b16 %v1709
    %v2357 = vunpack.c.h.b16 %v1709
    %v2358 = vunpack.c.l.b16 %v1710
    %v2359 = vunpack.c.h.b16 %v1710
    %v2360 = vunpack.c.l.b16 %v1711
    %v2361 = vunpack.c.h.b16 %v1711
    %v2362 = vunpack.c.l.b16 %v1712
    %v2363 = vunpack.c.h.b16 %v1712
    %v2364 = vunpack.c.l.b16 %v1713
    %v2365 = vunpack.c.h.b16 %v1713
    %v2366 = vunpack.c.l.b16 %v1714
    %v2367 = vunpack.c.h.b16 %v1714
    %v2368 = vunpack.c.l.b16 %v1715
    %v2369 = vunpack.c.h.b16 %v1715
    %v2370 = vunpack.c.l.b16 %v1716
    %v2371 = vunpack.c.h.b16 %v1716
    %v2372 = vunpack.c.l.b16 %v1717
    %v2373 = vunpack.c.h.b16 %v1717
    %v2374 = vunpack.c.l.b16 %v1718
    %v2375 = vunpack.c.h.b16 %v1718
    %v2376 = vunpack.c.l.b16 %v1719
    %v2377 = vunpack.c.h.b16 %v1719
    %v2378 = vunpack.c.l.b16 %v1720
    %v2379 = vunpack.c.h.b16 %v1720
    %v2380 = vunpack.c.l.b16 %v1721
    %v2381 = vunpack.c.h.b16 %v1721
    %v2382 = vunpack.c.l.b16 %v1722
    %v2383 = vunpack.c.h.b16 %v1722
    %v2384 = vunpack.c.l.b16 %v1723
    %v2385 = vunpack.c.h.b16 %v1723
    %v2386 = vunpack.c.l.b16 %v1724
    %v2387 = vunpack.c.h.b16 %v1724
    %v2388 = vunpack.c.l.b16 %v1725
    %v2389 = vunpack.c.h.b16 %v1725
    %v2390 = vunpack.c.l.b16 %v1726
    %v2391 = vunpack.c.h.b16 %v1726
    %v2392 = vunpack.c.l.b16 %v1727
    %v2393 = vunpack.c.h.b16 %v1727
    %v2394 = vunpack.c.l.b16 %v1728
    %v2395 = vunpack.c.h.b16 %v1728
    %v2396 = vunpack.c.l.b16 %v1729
    %v2397 = vunpack.c.h.b16 %v1729
    %v2398 = vunpack.c.l.b16 %v1730
    %v2399 = vunpack.c.h.b16 %v1730
    %v2400 = vunpack.c.l.b16 %v1731
    %v2401 = vunpack.c.h.b16 %v1731
    %v2402 = vunpack.c.l.b16 %v1732
    %v2403 = vunpack.c.h.b16 %v1732
    %v2404 = vunpack.c.l.b16 %v1733
    %v2405 = vunpack.c.h.b16 %v1733
    %v2406 = vunpack.c.l.b16 %v1734
    %v2407 = vunpack.c.h.b16 %v1734
    %v2408 = vunpack.c.l.b16 %v1735
    %v2409 = vunpack.c.h.b16 %v1735
    %v2410 = vunpack.c.l.b16 %v1736
    %v2411 = vunpack.c.h.b16 %v1736
    %v2412 = vunpack.c.l.b16 %v1737
    %v2413 = vunpack.c.h.b16 %v1737
    %v2414 = vunpack.c.l.b16 %v1738
    %v2415 = vunpack.c.h.b16 %v1738
    %v2416 = vunpack.c.l.b16 %v1739
    %v2417 = vunpack.c.h.b16 %v1739
    %v2418 = vunpack.c.l.b16 %v1740
    %v2419 = vunpack.c.h.b16 %v1740
    %v2420 = vunpack.c.l.b16 %v1741
    %v2421 = vunpack.c.h.b16 %v1741
    %v2422 = vunpack.c.l.b16 %v1742
    %v2423 = vunpack.c.h.b16 %v1742
    %v2424 = vunpack.c.l.b16 %v1743
    %v2425 = vunpack.c.h.b16 %v1743
    %v2426 = vunpack.c.l.b16 %v1744
    %v2427 = vunpack.c.h.b16 %v1744
    %v2428 = vunpack.c.l.b16 %v1745
    %v2429 = vunpack.c.h.b16 %v1745
    %v2430 = vunpack.c.l.b16 %v1746
    %v2431 = vunpack.c.h.b16 %v1746
    %v2432 = vunpack.c.l.b16 %v1747
    %v2433 = vunpack.c.h.b16 %v1747
    %v2434 = vunpack.c.l.b16 %v1748
    %v2435 = vunpack.c.h.b16 %v1748
    %v2436 = vunpack.c.l.b16 %v1749
    %v2437 = vunpack.c.h.b16 %v1749
    %v2438 = vunpack.c.l.b16 %v1750
    %v2439 = vunpack.c.h.b16 %v1750
    %v2440 = vunpack.c.l.b16 %v1751
    %v2441 = vunpack.c.h.b16 %v1751
    %v2442 = vunpack.c.l.b16 %v1752
    %v2443 = vunpack.c.h.b16 %v1752
    %v2444 = vunpack.c.l.b16 %v1753
    %v2445 = vunpack.c.h.b16 %v1753
    %v2446 = vunpack.c.l.b16 %v1754
    %v2447 = vunpack.c.h.b16 %v1754
    %v2448 = vunpack.c.l.b16 %v1755
    %v2449 = vunpack.c.h.b16 %v1755
    %v2450 = vunpack.c.l.b16 %v1756
    %v2451 = vunpack.c.h.b16 %v1756
    %v2452 = vunpack.c.l.b16 %v1757
    %v2453 = vunpack.c.h.b16 %v1757
    %v2454 = vunpack.c.l.b16 %v1758
    %v2455 = vunpack.c.h.b16 %v1758
    %v2456 = vunpack.c.l.b16 %v1759
    %v2457 = vunpack.c.h.b16 %v1759
    %v2458 = vunpack.c.l.b16 %v1760
    %v2459 = vunpack.c.h.b16 %v1760
    %v2460 = vunpack.c.l.b16 %v1761
    %v2461 = vunpack.c.h.b16 %v1761
    %v2462 = vunpack.c.l.b16 %v1762
    %v2463 = vunpack.c.h.b16 %v1762
    %v2464 = vunpack.c.l.b16 %v1763
    %v2465 = vunpack.c.h.b16 %v1763
    %v2466 = vunpack.c.l.b16 %v1764
    %v2467 = vunpack.c.h.b16 %v1764
    %v2468 = vunpack.c.l.b16 %v1765
    %v2469 = vunpack.c.h.b16 %v1765
    %v2470 = vunpack.c.l.b16 %v1766
    %v2471 = vunpack.c.h.b16 %v1766
    %v2472 = vunpack.c.l.b16 %v1767
    %v2473 = vunpack.c.h.b16 %v1767
    %v2474 = vunpack.c.l.b16 %v1768
    %v2475 = vunpack.c.h.b16 %v1768
    %v2476 = vunpack.c.l.b16 %v1769
    %v2477 = vunpack.c.h.b16 %v1769
    %v2478 = vunpack.c.l.b16 %v1770
    %v2479 = vunpack.c.h.b16 %v1770
    %v2480 = vunpack.c.l.b16 %v1771
    %v2481 = vunpack.c.h.b16 %v1771
    %v2482 = vunpack.c.l.b16 %v1772
    %v2483 = vunpack.c.h.b16 %v1772
    %v2484 = vunpack.c.l.b16 %v1773
    %v2485 = vunpack.c.h.b16 %v1773
    %v2486 = vunpack.c.l.b16 %v1774
    %v2487 = vunpack.c.h.b16 %v1774
    %v2488 = vunpack.c.l.b16 %v1775
    %v2489 = vunpack.c.h.b16 %v1775
    %v2490 = vunpack.c.l.b16 %v1776
    %v2491 = vunpack.c.h.b16 %v1776
    %v2492 = vunpack.c.l.b16 %v1777
    %v2493 = vunpack.c.h.b16 %v1777
    %v2494 = vunpack.c.l.b16 %v1778
    %v2495 = vunpack.c.h.b16 %v1778
    %v2496 = vunpack.c.l.b16 %v1779
    %v2497 = vunpack.c.h.b16 %v1779
    %v2498 = vunpack.c.l.b16 %v1780
    %v2499 = vunpack.c.h.b16 %v1780
    %v2500 = vunpack.c.l.b16 %v1781
    %v2501 = vunpack.c.h.b16 %v1781
    %v2502 = vunpack.c.l.b16 %v1782
    %v2503 = vunpack.c.h.b16 %v1782
    %v2504 = vunpack.c.l.b16 %v1783
    %v2505 = vunpack.c.h.b16 %v1783
    %v2506 = vunpack.c.l.b16 %v1784
    %v2507 = vunpack.c.h.b16 %v1784
    %v2508 = vunpack.c.l.b16 %v1785
    %v2509 = vunpack.c.h.b16 %v1785
    %v2510 = vunpack.c.l.b16 %v1786
    %v2511 = vunpack.c.h.b16 %v1786
    %v2512 = vunpack.c.l.b16 %v1787
    %v2513 = vunpack.c.h.b16 %v1787
    %v2514 = vunpack.c.l.b16 %v1788
    %v2515 = vunpack.c.h.b16 %v1788
    %v2516 = vunpack.c.l.b16 %v1789
    %v2517 = vunpack.c.h.b16 %v1789
    %v2518 = vunpack.c.l.b16 %v1790
    %v2519 = vunpack.c.h.b16 %v1790
    %v2520 = vunpack.c.l.b16 %v1791
    %v2521 = vunpack.c.h.b16 %v1791
    %v2522 = vunpack.c.l.b16 %v1792
    %v2523 = vunpack.c.h.b16 %v1792
    %v2524 = vunpack.c.l.b16 %v1793
    %v2525 = vunpack.c.h.b16 %v1793
    %v2526 = vunpack.c.l.b16 %v1794
    %v2527 = vunpack.c.h.b16 %v1794
    %v2528 = vunpack.c.l.b16 %v1795
    %v2529 = vunpack.c.h.b16 %v1795
    %v2530 = vunpack.c.l.b16 %v1796
    %v2531 = vunpack.c.h.b16 %v1796
    %v2532 = vunpack.c.l.b16 %v1797
    %v2533 = vunpack.c.h.b16 %v1797
    %v2534 = vunpack.c.l.b16 %v1798
    %v2535 = vunpack.c.h.b16 %v1798
    %v2536 = vunpack.c.l.b16 %v1799
    %v2537 = vunpack.c.h.b16 %v1799
    %v2538 = vunpack.c.l.b16 %v1800
    %v2539 = vunpack.c.h.b16 %v1800
    %v2540 = vunpack.c.l.b16 %v1801
    %v2541 = vunpack.c.h.b16 %v1801
    %v2542 = vunpack.c.l.b16 %v1802
    %v2543 = vunpack.c.h.b16 %v1802
    %v2544 = vunpack.c.l.b16 %v1803
    %v2545 = vunpack.c.h.b16 %v1803
    %v2546 = vunpack.c.l.b16 %v1804
    %v2547 = vunpack.c.h.b16 %v1804
    %v2548 = vunpack.c.l.b16 %v1805
    %v2549 = vunpack.c.h.b16 %v1805
    %v2550 = vunpack.c.l.b16 %v1806
    %v2551 = vunpack.c.h.b16 %v1806
    %v2552 = vunpack.c.l.b16 %v1807
    %v2553 = vunpack.c.h.b16 %v1807
    %v2554 = vunpack.c.l.b16 %v1808
    %v2555 = vunpack.c.h.b16 %v1808
    %v2556 = vunpack.c.l.b16 %v1809
    %v2557 = vunpack.c.h.b16 %v1809
    %v2558 = vunpack.c.l.b16 %v1810
    %v2559 = vunpack.c.h.b16 %v1810
    %v2560 = vunpack.c.l.b16 %v1811
    %v2561 = vunpack.c.h.b16 %v1811
    %v2562 = vunpack.c.l.b16 %v1812
    %v2563 = vunpack.c.h.b16 %v1812
    %v2564 = vunpack.c.l.b16 %v1813
    %v2565 = vunpack.c.h.b16 %v1813
    %v2566 = vunpack.c.l.b16 %v1814
    %v2567 = vunpack.c.h.b16 %v1814
    %v2568 = vunpack.c.l.b16 %v1815
    %v2569 = vunpack.c.h.b16 %v1815
    %v2570 = vunpack.c.l.b16 %v1816
    %v2571 = vunpack.c.h.b16 %v1816
    %v2572 = vunpack.c.l.b16 %v1817
    %v2573 = vunpack.c.h.b16 %v1817
    %v2574 = vunpack.c.l.b16 %v1818
    %v2575 = vunpack.c.h.b16 %v1818
    %v2576 = vunpack.c.l.b16 %v1819
    %v2577 = vunpack.c.h.b16 %v1819
    %v2578 = vunpack.c.l.b16 %v1820
    %v2579 = vunpack.c.h.b16 %v1820
    %v2580 = vunpack.c.l.b16 %v1821
    %v2581 = vunpack.c.h.b16 %v1821
    %v2582 = vunpack.c.l.b16 %v1822
    %v2583 = vunpack.c.h.b16 %v1822
    %v2584 = vunpack.c.l.b16 %v1823
    %v2585 = vunpack.c.h.b16 %v1823
    %v2586 = vunpack.c.l.b16 %v1824
    %v2587 = vunpack.c.h.b16 %v1824
    %v2588 = vunpack.c.l.b16 %v1825
    %v2589 = vunpack.c.h.b16 %v1825
    %v2590 = vunpack.c.l.b16 %v1826
    %v2591 = vunpack.c.h.b16 %v1826
    %v2592 = vunpack.c.l.b16 %v1827
    %v2593 = vunpack.c.h.b16 %v1827
    %v2594 = vunpack.c.l.b16 %v1828
    %v2595 = vunpack.c.h.b16 %v1828
    %v2596 = vunpack.c.l.b16 %v1829
    %v2597 = vunpack.c.h.b16 %v1829
    %v2598 = vunpack.c.l.b16 %v1830
    %v2599 = vunpack.c.h.b16 %v1830
    %v2600 = vunpack.c.l.b16 %v1831
    %v2601 = vunpack.c.h.b16 %v1831
    %v2602 = vunpack.c.l.b16 %v1832
    %v2603 = vunpack.c.h.b16 %v1832
    %v2604 = vunpack.c.l.b16 %v1833
    %v2605 = vunpack.c.h.b16 %v1833
    %v2606 = vunpack.c.l.b16 %v1834
    %v2607 = vunpack.c.h.b16 %v1834
    %v2608 = vunpack.c.l.b16 %v1835
    %v2609 = vunpack.c.h.b16 %v1835
    %v2610 = vunpack.c.l.b16 %v1836
    %v2611 = vunpack.c.h.b16 %v1836
    %v2612 = vunpack.c.l.b16 %v1837
    %v2613 = vunpack.c.h.b16 %v1837
    %v2614 = vunpack.c.l.b16 %v1838
    %v2615 = vunpack.c.h.b16 %v1838
    %v2616 = vunpack.c.l.b16 %v1839
    %v2617 = vunpack.c.h.b16 %v1839
    %v2618 = vunpack.c.l.b16 %v1840
    %v2619 = vunpack.c.h.b16 %v1840
    %v2620 = vunpack.c.l.b16 %v1841
    %v2621 = vunpack.c.h.b16 %v1841
    %v2622 = vunpack.c.l.b16 %v1842
    %v2623 = vunpack.c.h.b16 %v1842
    %v2624 = vunpack.c.l.b16 %v1843
    %v2625 = vunpack.c.h.b16 %v1843
    %v2626 = vunpack.c.l.b16 %v1844
    %v2627 = vunpack.c.h.b16 %v1844
    %v2628 = vunpack.c.l.b16 %v1845
    %v2629 = vunpack.c.h.b16 %v1845
    %v2630 = vunpack.c.l.b16 %v1846
    %v2631 = vunpack.c.h.b16 %v1846
    %v2632 = vunpack.c.l.b16 %v1847
    %v2633 = vunpack.c.h.b16 %v1847
    %v2634 = vunpack.c.l.b16 %v1848
    %v2635 = vunpack.c.h.b16 %v1848
    %v2636 = vunpack.c.l.b16 %v1849
    %v2637 = vunpack.c.h.b16 %v1849
    %v2638 = vunpack.c.l.b16 %v1850
    %v2639 = vunpack.c.h.b16 %v1850
    %v2640 = vunpack.c.l.b16 %v1851
    %v2641 = vunpack.c.h.b16 %v1851
    %v2642 = vunpack.c.l.b16 %v1852
    %v2643 = vunpack.c.h.b16 %v1852
    %v2644 = vunpack.c.l.b16 %v1853
    %v2645 = vunpack.c.h.b16 %v1853
    %v2646 = vunpack.c.l.b16 %v1854
    %v2647 = vunpack.c.h.b16 %v1854
    %v2648 = vunpack.c.l.b16 %v1855
    %v2649 = vunpack.c.h.b16 %v1855
    %v2650 = vunpack.c.l.b16 %v1856
    %v2651 = vunpack.c.h.b16 %v1856
    %v2652 = vunpack.c.l.b16 %v1857
    %v2653 = vunpack.c.h.b16 %v1857
    %v2654 = vunpack.c.l.b16 %v1858
    %v2655 = vunpack.c.h.b16 %v1858
    %v2656 = vunpack.c.l.b16 %v1859
    %v2657 = vunpack.c.h.b16 %v1859
    %v2658 = vunpack.c.l.b16 %v1860
    %v2659 = vunpack.c.h.b16 %v1860
    %v2660 = vunpack.c.l.b16 %v1861
    %v2661 = vunpack.c.h.b16 %v1861
    %v2662 = vunpack.c.l.b16 %v1862
    %v2663 = vunpack.c.h.b16 %v1862
    %v2664 = vunpack.c.l.b16 %v1863
    %v2665 = vunpack.c.h.b16 %v1863
    %v2666 = vunpack.c.l.b16 %v1864
    %v2667 = vunpack.c.h.b16 %v1864
    %v2668 = vunpack.c.l.b16 %v1865
    %v2669 = vunpack.c.h.b16 %v1865
    %v2670 = vunpack.c.l.b16 %v1866
    %v2671 = vunpack.c.h.b16 %v1866
    %v2672 = vunpack.c.l.b16 %v1867
    %v2673 = vunpack.c.h.b16 %v1867
    %v2674 = vunpack.c.l.b16 %v1868
    %v2675 = vunpack.c.h.b16 %v1868
    %v2676 = vunpack.c.l.b16 %v1869
    %v2677 = vunpack.c.h.b16 %v1869
    %v2678 = vunpack.c.l.b16 %v1870
    %v2679 = vunpack.c.h.b16 %v1870
    %v2680 = vunpack.c.l.b16 %v1871
    %v2681 = vunpack.c.h.b16 %v1871
    %v2682 = vunpack.c.l.b16 %v1872
    %v2683 = vunpack.c.h.b16 %v1872
    %v2684 = vunpack.c.l.b16 %v1873
    %v2685 = vunpack.c.h.b16 %v1873
    %v2686 = vunpack.c.l.b16 %v1874
    %v2687 = vunpack.c.h.b16 %v1874
    %v2688 = vunpack.c.l.b16 %v1875
    %v2689 = vunpack.c.h.b16 %v1875
    %v2690 = vunpack.c.l.b16 %v1876
    %v2691 = vunpack.c.h.b16 %v1876
    %v2692 = vunpack.c.l.b16 %v1877
    %v2693 = vunpack.c.h.b16 %v1877
    %v2694 = vunpack.c.l.b16 %v1878
    %v2695 = vunpack.c.h.b16 %v1878
    %v2696 = vunpack.c.l.b16 %v1879
    %v2697 = vunpack.c.h.b16 %v1879
    %v2698 = vunpack.c.l.b16 %v1880
    %v2699 = vunpack.c.h.b16 %v1880
    %v2700 = vunpack.c.l.b16 %v1881
    %v2701 = vunpack.c.h.b16 %v1881
    %v2702 = vunpack.c.l.b16 %v1882
    %v2703 = vunpack.c.h.b16 %v1882
    %v2704 = vunpack.c.l.b16 %v1883
    %v2705 = vunpack.c.h.b16 %v1883
    %v2706 = vunpack.c.l.b16 %v1884
    %v2707 = vunpack.c.h.b16 %v1884
    %v2708 = vunpack.c.l.b16 %v1885
    %v2709 = vunpack.c.h.b16 %v1885
    %v2710 = vunpack.c.l.b16 %v1886
    %v2711 = vunpack.c.h.b16 %v1886
    %v2712 = vunpack.c.l.b16 %v1887
    %v2713 = vunpack.c.h.b16 %v1887
    %v2714 = vunpack.c.l.b16 %v1888
    %v2715 = vunpack.c.h.b16 %v1888
    %v2716 = vunpack.c.l.b16 %v1889
    %v2717 = vunpack.c.h.b16 %v1889
    %v2718 = vunpack.c.l.b16 %v1890
    %v2719 = vunpack.c.h.b16 %v1890
    %v2720 = vunpack.c.l.b16 %v1891
    %v2721 = vunpack.c.h.b16 %v1891
    %v2722 = vunpack.c.l.b16 %v1892
    %v2723 = vunpack.c.h.b16 %v1892
    %v2724 = vunpack.c.l.b16 %v1893
    %v2725 = vunpack.c.h.b16 %v1893
    %v2726 = vunpack.c.l.b16 %v1894
    %v2727 = vunpack.c.h.b16 %v1894
    %v2728 = vunpack.c.l.b16 %v1895
    %v2729 = vunpack.c.h.b16 %v1895
    %v2730 = vunpack.c.l.b16 %v1896
    %v2731 = vunpack.c.h.b16 %v1896
    %v2732 = vunpack.c.l.b16 %v1897
    %v2733 = vunpack.c.h.b16 %v1897
    %v2734 = vunpack.c.l.b16 %v1898
    %v2735 = vunpack.c.h.b16 %v1898
    %v2736 = vunpack.c.l.b16 %v1899
    %v2737 = vunpack.c.h.b16 %v1899
    %v2738 = vunpack.c.l.b16 %v1900
    %v2739 = vunpack.c.h.b16 %v1900
    %v2740 = vunpack.c.l.b16 %v1901
    %v2741 = vunpack.c.h.b16 %v1901
    %v2742 = vunpack.c.l.b16 %v1902
    %v2743 = vunpack.c.h.b16 %v1902
    %v2744 = vunpack.c.l.b16 %v1903
    %v2745 = vunpack.c.h.b16 %v1903
    %v2746 = vunpack.c.l.b16 %v1904
    %v2747 = vunpack.c.h.b16 %v1904
    %v2748 = vunpack.c.l.b16 %v1905
    %v2749 = vunpack.c.h.b16 %v1905
    %v2750 = vunpack.c.l.b16 %v1906
    %v2751 = vunpack.c.h.b16 %v1906
    %v2752 = vunpack.c.l.b16 %v1907
    %v2753 = vunpack.c.h.b16 %v1907
    %v2754 = vunpack.c.l.b16 %v1908
    %v2755 = vunpack.c.h.b16 %v1908
    %v2756 = vpack.c.b16 %v2248, %v2244
    %v2757 = vpack.c.b16 %v2249, %v2245
    %v2758 = vpack.c.b16 %v2250, %v2246
    %v2759 = vpack.c.b16 %v2251, %v2247
    %v2760 = vpack.c.b16 %v2256, %v2252
    %v2761 = vpack.c.b16 %v2257, %v2253
    %v2762 = vpack.c.b16 %v2258, %v2254
    %v2763 = vpack.c.b16 %v2259, %v2255
    %v2764 = vpack.c.b16 %v2264, %v2260
    %v2765 = vpack.c.b16 %v2265, %v2261
    %v2766 = vpack.c.b16 %v2266, %v2262
    %v2767 = vpack.c.b16 %v2267, %v2263
    %v2768 = vpack.c.b16 %v2272, %v2268
    %v2769 = vpack.c.b16 %v2273, %v2269
    %v2770 = vpack.c.b16 %v2274, %v2270
    %v2771 = vpack.c.b16 %v2275, %v2271
    %v2772 = vpack.c.b16 %v2280, %v2276
    %v2773 = vpack.c.b16 %v2281, %v2277
    %v2774 = vpack.c.b16 %v2282, %v2278
    %v2775 = vpack.c.b16 %v2283, %v2279
    %v2776 = vpack.c.b16 %v2288, %v2284
    %v2777 = vpack.c.b16 %v2289, %v2285
    %v2778 = vpack.c.b16 %v2290, %v2286
    %v2779 = vpack.c.b16 %v2291, %v2287
    %v2780 = vpack.c.b16 %v2296, %v2292
    %v2781 = vpack.c.b16 %v2297, %v2293
    %v2782 = vpack.c.b16 %v2298, %v2294
    %v2783 = vpack.c.b16 %v2299, %v2295
    %v2784 = vpack.c.b16 %v2304, %v2300
    %v2785 = vpack.c.b16 %v2305, %v2301
    %v2786 = vpack.c.b16 %v2306, %v2302
    %v2787 = vpack.c.b16 %v2307, %v2303
    %v2788 = vpack.c.b16 %v2312, %v2308
    %v2789 = vpack.c.b16 %v2313, %v2309
    %v2790 = vpack.c.b16 %v2314, %v2310
    %v2791 = vpack.c.b16 %v2315, %v2311
    %v2792 = vpack.c.b16 %v2320, %v2316
    %v2793 = vpack.c.b16 %v2321, %v2317
    %v2794 = vpack.c.b16 %v2322, %v2318
    %v2795 = vpack.c.b16 %v2323, %v2319
    %v2796 = vpack.c.b16 %v2328, %v2324
    %v2797 = vpack.c.b16 %v2329, %v2325
    %v2798 = vpack.c.b16 %v2330, %v2326
    %v2799 = vpack.c.b16 %v2331, %v2327
    %v2800 = vpack.c.b16 %v2336, %v2332
    %v2801 = vpack.c.b16 %v2337, %v2333
    %v2802 = vpack.c.b16 %v2338, %v2334
    %v2803 = vpack.c.b16 %v2339, %v2335
    %v2804 = vpack.c.b16 %v2344, %v2340
    %v2805 = vpack.c.b16 %v2345, %v2341
    %v2806 = vpack.c.b16 %v2346, %v2342
    %v2807 = vpack.c.b16 %v2347, %v2343
    %v2808 = vpack.c.b16 %v2352, %v2348
    %v2809 = vpack.c.b16 %v2353, %v2349
    %v2810 = vpack.c.b16 %v2354, %v2350
    %v2811 = vpack.c.b16 %v2355, %v2351
    %v2812 = vpack.c.b16 %v2360, %v2356
    %v2813 = vpack.c.b16 %v2361, %v2357
    %v2814 = vpack.c.b16 %v2362, %v2358
    %v2815 = vpack.c.b16 %v2363, %v2359
    %v2816 = vpack.c.b16 %v2368, %v2364
    %v2817 = vpack.c.b16 %v2369, %v2365
    %v2818 = vpack.c.b16 %v2370, %v2366
    %v2819 = vpack.c.b16 %v2371, %v2367
    %v2820 = vpack.c.b16 %v2376, %v2372
    %v2821 = vpack.c.b16 %v2377, %v2373
    %v2822 = vpack.c.b16 %v2378, %v2374
    %v2823 = vpack.c.b16 %v2379, %v2375
    %v2824 = vpack.c.b16 %v2384, %v2380
    %v2825 = vpack.c.b16 %v2385, %v2381
    %v2826 = vpack.c.b16 %v2386, %v2382
    %v2827 = vpack.c.b16 %v2387, %v2383
    %v2828 = vpack.c.b16 %v2392, %v2388
    %v2829 = vpack.c.b16 %v2393, %v2389
    %v2830 = vpack.c.b16 %v2394, %v2390
    %v2831 = vpack.c.b16 %v2395, %v2391
    %v2832 = vpack.c.b16 %v2400, %v2396
    %v2833 = vpack.c.b16 %v2401, %v2397
    %v2834 = vpack.c.b16 %v2402, %v2398
    %v2835 = vpack.c.b16 %v2403, %v2399
    %v2836 = vpack.c.b16 %v2408, %v2404
    %v2837 = vpack.c.b16 %v2409, %v2405
    %v2838 = vpack.c.b16 %v2410, %v2406
    %v2839 = vpack.c.b16 %v2411, %v2407
    %v2840 = vpack.c.b16 %v2416, %v2412
    %v2841 = vpack.c.b16 %v2417, %v2413
    %v2842 = vpack.c.b16 %v2418, %v2414
    %v2843 = vpack.c.b16 %v2419, %v2415
    %v2844 = vpack.c.b16 %v2424, %v2420
    %v2845 = vpack.c.b16 %v2425, %v2421
    %v2846 = vpack.c.b16 %v2426, %v2422
    %v2847 = vpack.c.b16 %v2427, %v2423
    %v2848 = vpack.c.b16 %v2432, %v2428
    %v2849 = vpack.c.b16 %v2433, %v2429
    %v2850 = vpack.c.b16 %v2434, %v2430
    %v2851 = vpack.c.b16 %v2435, %v2431
    %v2852 = vpack.c.b16 %v2440, %v2436
    %v2853 = vpack.c.b16 %v2441, %v2437
    %v2854 = vpack.c.b16 %v2442, %v2438
    %v2855 = vpack.c.b16 %v2443, %v2439
    %v2856 = vpack.c.b16 %v2448, %v2444
    %v2857 = vpack.c.b16 %v2449, %v2445
    %v2858 = vpack.c.b16 %v2450, %v2446
    %v2859 = vpack.c.b16 %v2451, %v2447
    %v2860 = vpack.c.b16 %v2456, %v2452
    %v2861 = vpack.c.b16 %v2457, %v2453
    %v2862 = vpack.c.b16 %v2458, %v2454
    %v2863 = vpack.c.b16 %v2459, %v2455
    %v2864 = vpack.c.b16 %v2464, %v2460
    %v2865 = vpack.c.b16 %v2465, %v2461
    %v2866 = vpack.c.b16 %v2466, %v2462
    %v2867 = vpack.c.b16 %v2467, %v2463
    %v2868 = vpack.c.b16 %v2472, %v2468
    %v2869 = vpack.c.b16 %v2473, %v2469
    %v2870 = vpack.c.b16 %v2474, %v2470
    %v2871 = vpack.c.b16 %v2475, %v2471
    %v2872 = vpack.c.b16 %v2480, %v2476
    %v2873 = vpack.c.b16 %v2481, %v2477
    %v2874 = vpack.c.b16 %v2482, %v2478
    %v2875 = vpack.c.b16 %v2483, %v2479
    %v2876 = vpack.c.b16 %v2488, %v2484
    %v2877 = vpack.c.b16 %v2489, %v2485
    %v2878 = vpack.c.b16 %v2490, %v2486
    %v2879 = vpack.c.b16 %v2491, %v2487
    %v2880 = vpack.c.b16 %v2496, %v2492
    %v2881 = vpack.c.b16 %v2497, %v2493
    %v2882 = vpack.c.b16 %v2498, %v2494
    %v2883 = vpack.c.b16 %v2499, %v2495
    %v2884 = vpack.c.b16 %v2504, %v2500
    %v2885 = vpack.c.b16 %v2505, %v2501
    %v2886 = vpack.c.b16 %v2506, %v2502
    %v2887 = vpack.c.b16 %v2507, %v2503
    %v2888 = vpack.c.b16 %v2512, %v2508
    %v2889 = vpack.c.b16 %v2513, %v2509
    %v2890 = vpack.c.b16 %v2514, %v2510
    %v2891 = vpack.c.b16 %v2515, %v2511
    %v2892 = vpack.c.b16 %v2520, %v2516
    %v2893 = vpack.c.b16 %v2521, %v2517
    %v2894 = vpack.c.b16 %v2522, %v2518
    %v2895 = vpack.c.b16 %v2523, %v2519
    %v2896 = vpack.c.b16 %v2528, %v2524
    %v2897 = vpack.c.b16 %v2529, %v2525
    %v2898 = vpack.c.b16 %v2530, %v2526
    %v2899 = vpack.c.b16 %v2531, %v2527
    %v2900 = vpack.c.b16 %v2536, %v2532
    %v2901 = vpack.c.b16 %v2537, %v2533
    %v2902 = vpack.c.b16 %v2538, %v2534
    %v2903 = vpack.c.b16 %v2539, %v2535
    %v2904 = vpack.c.b16 %v2544, %v2540
    %v2905 = vpack.c.b16 %v2545, %v2541
    %v2906 = vpack.c.b16 %v2546, %v2542
    %v2907 = vpack.c.b16 %v2547, %v2543
    %v2908 = vpack.c.b16 %v2552, %v2548
    %v2909 = vpack.c.b16 %v2553, %v2549
    %v2910 = vpack.c.b16 %v2554, %v2550
    %v2911 = vpack.c.b16 %v2555, %v2551
    %v2912 = vpack.c.b16 %v2560, %v2556
    %v2913 = vpack.c.b16 %v2561, %v2557
    %v2914 = vpack.c.b16 %v2562, %v2558
    %v2915 = vpack.c.b16 %v2563, %v2559
    %v2916 = vpack.c.b16 %v2568, %v2564
    %v2917 = vpack.c.b16 %v2569, %v2565
    %v2918 = vpack.c.b16 %v2570, %v2566
    %v2919 = vpack.c.b16 %v2571, %v2567
    %v2920 = vpack.c.b16 %v2576, %v2572
    %v2921 = vpack.c.b16 %v2577, %v2573
    %v2922 = vpack.c.b16 %v2578, %v2574
    %v2923 = vpack.c.b16 %v2579, %v2575
    %v2924 = vpack.c.b16 %v2584, %v2580
    %v2925 = vpack.c.b16 %v2585, %v2581
    %v2926 = vpack.c.b16 %v2586, %v2582
    %v2927 = vpack.c.b16 %v2587, %v2583
    %v2928 = vpack.c.b16 %v2592, %v2588
    %v2929 = vpack.c.b16 %v2593, %v2589
    %v2930 = vpack.c.b16 %v2594, %v2590
    %v2931 = vpack.c.b16 %v2595, %v2591
    %v2932 = vpack.c.b16 %v2600, %v2596
    %v2933 = vpack.c.b16 %v2601, %v2597
    %v2934 = vpack.c.b16 %v2602, %v2598
    %v2935 = vpack.c.b16 %v2603, %v2599
    %v2936 = vpack.c.b16 %v2608, %v2604
    %v2937 = vpack.c.b16 %v2609, %v2605
    %v2938 = vpack.c.b16 %v2610, %v2606
    %v2939 = vpack.c.b16 %v2611, %v2607
    %v2940 = vpack.c.b16 %v2616, %v2612
    %v2941 = vpack.c.b16 %v2617, %v2613
    %v2942 = vpack.c.b16 %v2618, %v2614
    %v2943 = vpack.c.b16 %v2619, %v2615
    %v2944 = vpack.c.b16 %v2624, %v2620
    %v2945 = vpack.c.b16 %v2625, %v2621
    %v2946 = vpack.c.b16 %v2626, %v2622
    %v2947 = vpack.c.b16 %v2627, %v2623
    %v2948 = vpack.c.b16 %v2632, %v2628
    %v2949 = vpack.c.b16 %v2633, %v2629
    %v2950 = vpack.c.b16 %v2634, %v2630
    %v2951 = vpack.c.b16 %v2635, %v2631
    %v2952 = vpack.c.b16 %v2640, %v2636
    %v2953 = vpack.c.b16 %v2641, %v2637
    %v2954 = vpack.c.b16 %v2642, %v2638
    %v2955 = vpack.c.b16 %v2643, %v2639
    %v2956 = vpack.c.b16 %v2648, %v2644
    %v2957 = vpack.c.b16 %v2649, %v2645
    %v2958 = vpack.c.b16 %v2650, %v2646
    %v2959 = vpack.c.b16 %v2651, %v2647
    %v2960 = vpack.c.b16 %v2656, %v2652
    %v2961 = vpack.c.b16 %v2657, %v2653
    %v2962 = vpack.c.b16 %v2658, %v2654
    %v2963 = vpack.c.b16 %v2659, %v2655
    %v2964 = vpack.c.b16 %v2664, %v2660
    %v2965 = vpack.c.b16 %v2665, %v2661
    %v2966 = vpack.c.b16 %v2666, %v2662
    %v2967 = vpack.c.b16 %v2667, %v2663
    %v2968 = vpack.c.b16 %v2672, %v2668
    %v2969 = vpack.c.b16 %v2673, %v2669
    %v2970 = vpack.c.b16 %v2674, %v2670
    %v2971 = vpack.c.b16 %v2675, %v2671
    %v2972 = vpack.c.b16 %v2680, %v2676
    %v2973 = vpack.c.b16 %v2681, %v2677
    %v2974 = vpack.c.b16 %v2682, %v2678
    %v2975 = vpack.c.b16 %v2683, %v2679
    %v2976 = vpack.c.b16 %v2688, %v2684
    %v2977 = vpack.c.b16 %v2689, %v2685
    %v2978 = vpack.c.b16 %v2690, %v2686
    %v2979 = vpack.c.b16 %v2691, %v2687
    %v2980 = vpack.c.b16 %v2696, %v2692
    %v2981 = vpack.c.b16 %v2697, %v2693
    %v2982 = vpack.c.b16 %v2698, %v2694
    %v2983 = vpack.c.b16 %v2699, %v2695
    %v2984 = vpack.c.b16 %v2704, %v2700
    %v2985 = vpack.c.b16 %v2705, %v2701
    %v2986 = vpack.c.b16 %v2706, %v2702
    %v2987 = vpack.c.b16 %v2707, %v2703
    %v2988 = vpack.c.b16 %v2712, %v2708
    %v2989 = vpack.c.b16 %v2713, %v2709
    %v2990 = vpack.c.b16 %v2714, %v2710
    %v2991 = vpack.c.b16 %v2715, %v2711
    %v2992 = vpack.c.b16 %v2720, %v2716
    %v2993 = vpack.c.b16 %v2721, %v2717
    %v2994 = vpack.c.b16 %v2722, %v2718
    %v2995 = vpack.c.b16 %v2723, %v2719
    %v2996 = vpack.c.b16 %v2728, %v2724
    %v2997 = vpack.c.b16 %v2729, %v2725
    %v2998 = vpack.c.b16 %v2730, %v2726
    %v2999 = vpack.c.b16 %v2731, %v2727
    %v3000 = vpack.c.b16 %v2736, %v2732
    %v3001 = vpack.c.b16 %v2737, %v2733
    %v3002 = vpack.c.b16 %v2738, %v2734
    %v3003 = vpack.c.b16 %v2739, %v2735
    %v3004 = vpack.c.b16 %v2744, %v2740
    %v3005 = vpack.c.b16 %v2745, %v2741
    %v3006 = vpack.c.b16 %v2746, %v2742
    %v3007 = vpack.c.b16 %v2747, %v2743
    %v3008 = vpack.c.b16 %v2752, %v2748
    %v3009 = vpack.c.b16 %v2753, %v2749
    %v3010 = vpack.c.b16 %v2754, %v2750
    %v3011 = vpack.c.b16 %v2755, %v2751
    %3268 = vmatprep.subr.bf16.mxu0 %v2757
    %3269 = vmatpush1.bf16.msra.mxu0 %v2756
    %3270 = vmatprep.subr.bf16.mxu0 %v2761
    %3271 = vmatpush1.bf16.msra.mxu0 %v2760
    %3272 = vmatprep.subr.bf16.mxu0 %v2765
    %3273 = vmatpush1.bf16.msra.mxu0 %v2764
    %3274 = vmatprep.subr.bf16.mxu0 %v2769
    %3275 = vmatpush1.bf16.msra.mxu0 %v2768
    %3276 = vmatprep.subr.bf16.mxu0 %v2773
    %3277 = vmatpush1.bf16.msra.mxu0 %v2772
    %3278 = vmatprep.subr.bf16.mxu0 %v2777
    %3279 = vmatpush1.bf16.msra.mxu0 %v2776
    %3280 = vmatprep.subr.bf16.mxu0 %v2781
    %3281 = vmatpush1.bf16.msra.mxu0 %v2780
    %3282 = vmatprep.subr.bf16.mxu0 %v2785
    %3283 = vmatpush1.bf16.msra.mxu0 %v2784
    %3284 = vmatprep.subr.bf16.mxu0 %v2789
    %3285 = vmatpush1.bf16.msra.mxu0 %v2788
    %3286 = vmatprep.subr.bf16.mxu0 %v2793
    %3287 = vmatpush1.bf16.msra.mxu0 %v2792
    %3288 = vmatprep.subr.bf16.mxu0 %v2797
    %3289 = vmatpush1.bf16.msra.mxu0 %v2796
    %3290 = vmatprep.subr.bf16.mxu0 %v2801
    %3291 = vmatpush1.bf16.msra.mxu0 %v2800
    %3292 = vmatprep.subr.bf16.mxu0 %v2805
    %3293 = vmatpush1.bf16.msra.mxu0 %v2804
    %3294 = vmatprep.subr.bf16.mxu0 %v2809
    %3295 = vmatpush1.bf16.msra.mxu0 %v2808
    %3296 = vmatprep.subr.bf16.mxu0 %v2813
    %3297 = vmatpush1.bf16.msra.mxu0 %v2812
    %3298 = vmatprep.subr.bf16.mxu0 %v2817
    %3299 = vmatpush1.bf16.msra.mxu0 %v2816
    %3300 = vmatprep.mubr.bf16.mxu0 %v1973
    %3301 = vmatmul.mubr.bf16.gmra.mrb[0].mxu0 %v1972
    %v3302 = vpop.f32.mrb[0].mxu0
    %v3303 = vadd.f32 %v1914, %v3302
    %v3304 = vpop.f32.mrb[0].mxu0
    %v3305 = vadd.f32 %v1918, %v3304
    %v3306 = vpop.f32.mrb[0].mxu0
    %v3307 = vpop.f32.mrb[0].mxu0
    %3308 = vdwg.mxu0
    %3309 = vmatprep.subr.bf16.mxu0 %v2821
    %3310 = vmatpush1.bf16.msra.mxu0 %v2820
    %3311 = vmatprep.subr.bf16.mxu0 %v2825
    %3312 = vmatpush1.bf16.msra.mxu0 %v2824
    %3313 = vmatprep.subr.bf16.mxu0 %v2829
    %3314 = vmatpush1.bf16.msra.mxu0 %v2828
    %3315 = vmatprep.subr.bf16.mxu0 %v2833
    %3316 = vmatpush1.bf16.msra.mxu0 %v2832
    %3317 = vmatprep.subr.bf16.mxu0 %v2837
    %3318 = vmatpush1.bf16.msra.mxu0 %v2836
    %3319 = vmatprep.subr.bf16.mxu0 %v2841
    %3320 = vmatpush1.bf16.msra.mxu0 %v2840
    %3321 = vmatprep.subr.bf16.mxu0 %v2845
    %3322 = vmatpush1.bf16.msra.mxu0 %v2844
    %3323 = vmatprep.subr.bf16.mxu0 %v2849
    %3324 = vmatpush1.bf16.msra.mxu0 %v2848
    %3325 = vmatprep.subr.bf16.mxu0 %v2853
    %3326 = vmatpush1.bf16.msra.mxu0 %v2852
    %3327 = vmatprep.subr.bf16.mxu0 %v2857
    %3328 = vmatpush1.bf16.msra.mxu0 %v2856
    %3329 = vmatprep.subr.bf16.mxu0 %v2861
    %3330 = vmatpush1.bf16.msra.mxu0 %v2860
    %3331 = vmatprep.subr.bf16.mxu0 %v2865
    %3332 = vmatpush1.bf16.msra.mxu0 %v2864
    %3333 = vmatprep.subr.bf16.mxu0 %v2869
    %3334 = vmatpush1.bf16.msra.mxu0 %v2868
    %3335 = vmatprep.subr.bf16.mxu0 %v2873
    %3336 = vmatpush1.bf16.msra.mxu0 %v2872
    %3337 = vmatprep.subr.bf16.mxu0 %v2877
    %3338 = vmatpush1.bf16.msra.mxu0 %v2876
    %3339 = vmatprep.subr.bf16.mxu0 %v2881
    %3340 = vmatpush1.bf16.msra.mxu0 %v2880
    %3341 = vmatprep.mubr.bf16.mxu0 %v1975
    %3342 = vmatmul.mubr.bf16.gmra.mrb[0].mxu0 %v1974
    %v3343 = vpop.f32.mrb[0].mxu0
    %v3344 = vadd.f32 %v3303, %v3343
    %v3345 = vpop.f32.mrb[0].mxu0
    %v3346 = vadd.f32 %v3305, %v3345
    %v3347 = vpop.f32.mrb[0].mxu0
    %v3348 = vpop.f32.mrb[0].mxu0
    %3349 = vdwg.mxu0
    %3350 = vmatprep.subr.bf16.mxu0 %v2885
    %3351 = vmatpush1.bf16.msra.mxu0 %v2884
    %3352 = vmatprep.subr.bf16.mxu0 %v2889
    %3353 = vmatpush1.bf16.msra.mxu0 %v2888
    %3354 = vmatprep.subr.bf16.mxu0 %v2893
    %3355 = vmatpush1.bf16.msra.mxu0 %v2892
    %3356 = vmatprep.subr.bf16.mxu0 %v2897
    %3357 = vmatpush1.bf16.msra.mxu0 %v2896
    %3358 = vmatprep.subr.bf16.mxu0 %v2901
    %3359 = vmatpush1.bf16.msra.mxu0 %v2900
    %3360 = vmatprep.subr.bf16.mxu0 %v2905
    %3361 = vmatpush1.bf16.msra.mxu0 %v2904
    %3362 = vmatprep.subr.bf16.mxu0 %v2909
    %3363 = vmatpush1.bf16.msra.mxu0 %v2908
    %3364 = vmatprep.subr.bf16.mxu0 %v2913
    %3365 = vmatpush1.bf16.msra.mxu0 %v2912
    %3366 = vmatprep.subr.bf16.mxu0 %v2917
    %3367 = vmatpush1.bf16.msra.mxu0 %v2916
    %3368 = vmatprep.subr.bf16.mxu0 %v2921
    %3369 = vmatpush1.bf16.msra.mxu0 %v2920
    %3370 = vmatprep.subr.bf16.mxu0 %v2925
    %3371 = vmatpush1.bf16.msra.mxu0 %v2924
    %3372 = vmatprep.subr.bf16.mxu0 %v2929
    %3373 = vmatpush1.bf16.msra.mxu0 %v2928
    %3374 = vmatprep.subr.bf16.mxu0 %v2933
    %3375 = vmatpush1.bf16.msra.mxu0 %v2932
    %3376 = vmatprep.subr.bf16.mxu0 %v2937
    %3377 = vmatpush1.bf16.msra.mxu0 %v2936
    %3378 = vmatprep.subr.bf16.mxu0 %v2941
    %3379 = vmatpush1.bf16.msra.mxu0 %v2940
    %3380 = vmatprep.subr.bf16.mxu0 %v2945
    %3381 = vmatpush1.bf16.msra.mxu0 %v2944
    %3382 = vmatprep.mubr.bf16.mxu0 %v1977
    %3383 = vmatmul.mubr.bf16.gmra.mrb[0].mxu0 %v1976
    %v3384 = vpop.f32.mrb[0].mxu0
    %v3385 = vadd.f32 %v3344, %v3384
    %v3386 = vpop.f32.mrb[0].mxu0
    %v3387 = vadd.f32 %v3346, %v3386
    %v3388 = vpop.f32.mrb[0].mxu0
    %v3389 = vpop.f32.mrb[0].mxu0
    %3390 = vdwg.mxu0
    %3391 = vmatprep.subr.bf16.mxu0 %v2949
    %3392 = vmatpush1.bf16.msra.mxu0 %v2948
    %3393 = vmatprep.subr.bf16.mxu0 %v2953
    %3394 = vmatpush1.bf16.msra.mxu0 %v2952
    %3395 = vmatprep.subr.bf16.mxu0 %v2957
    %3396 = vmatpush1.bf16.msra.mxu0 %v2956
    %3397 = vmatprep.subr.bf16.mxu0 %v2961
    %3398 = vmatpush1.bf16.msra.mxu0 %v2960
    %3399 = vmatprep.subr.bf16.mxu0 %v2965
    %3400 = vmatpush1.bf16.msra.mxu0 %v2964
    %3401 = vmatprep.subr.bf16.mxu0 %v2969
    %3402 = vmatpush1.bf16.msra.mxu0 %v2968
    %3403 = vmatprep.subr.bf16.mxu0 %v2973
    %3404 = vmatpush1.bf16.msra.mxu0 %v2972
    %3405 = vmatprep.subr.bf16.mxu0 %v2977
    %3406 = vmatpush1.bf16.msra.mxu0 %v2976
    %3407 = vmatprep.subr.bf16.mxu0 %v2981
    %3408 = vmatpush1.bf16.msra.mxu0 %v2980
    %3409 = vmatprep.subr.bf16.mxu0 %v2985
    %3410 = vmatpush1.bf16.msra.mxu0 %v2984
    %3411 = vmatprep.subr.bf16.mxu0 %v2989
    %3412 = vmatpush1.bf16.msra.mxu0 %v2988
    %3413 = vmatprep.subr.bf16.mxu0 %v2993
    %3414 = vmatpush1.bf16.msra.mxu0 %v2992
    %3415 = vmatprep.subr.bf16.mxu0 %v2997
    %3416 = vmatpush1.bf16.msra.mxu0 %v2996
    %3417 = vmatprep.subr.bf16.mxu0 %v3001
    %3418 = vmatpush1.bf16.msra.mxu0 %v3000
    %3419 = vmatprep.subr.bf16.mxu0 %v3005
    %3420 = vmatpush1.bf16.msra.mxu0 %v3004
    %3421 = vmatprep.subr.bf16.mxu0 %v3009
    %3422 = vmatpush1.bf16.msra.mxu0 %v3008
    %3423 = vmatprep.mubr.bf16.mxu0 %v1979
    %3424 = vmatmul.mubr.bf16.gmra.mrb[0].mxu0 %v1978
    %v3425 = vpop.f32.mrb[0].mxu0
    %v3426 = vadd.f32 %v3385, %v3425
    %v3427 = vpop.f32.mrb[0].mxu0
    %v3428 = vadd.f32 %v3387, %v3427
    %v3429 = vpop.f32.mrb[0].mxu0
    %v3430 = vpop.f32.mrb[0].mxu0
    %3431 = vdwg.mxu0
    %3432 = vmatprep.subr.bf16.mxu0 %v2759
    %3433 = vmatpush1.bf16.msra.mxu0 %v2758
    %3434 = vmatprep.subr.bf16.mxu0 %v2763
    %3435 = vmatpush1.bf16.msra.mxu0 %v2762
    %3436 = vmatprep.subr.bf16.mxu0 %v2767
    %3437 = vmatpush1.bf16.msra.mxu0 %v2766
    %3438 = vmatprep.subr.bf16.mxu0 %v2771
    %3439 = vmatpush1.bf16.msra.mxu0 %v2770
    %3440 = vmatprep.subr.bf16.mxu0 %v2775
    %3441 = vmatpush1.bf16.msra.mxu0 %v2774
    %3442 = vmatprep.subr.bf16.mxu0 %v2779
    %3443 = vmatpush1.bf16.msra.mxu0 %v2778
    %3444 = vmatprep.subr.bf16.mxu0 %v2783
    %3445 = vmatpush1.bf16.msra.mxu0 %v2782
    %3446 = vmatprep.subr.bf16.mxu0 %v2787
    %3447 = vmatpush1.bf16.msra.mxu0 %v2786
    %3448 = vmatprep.subr.bf16.mxu0 %v2791
    %3449 = vmatpush1.bf16.msra.mxu0 %v2790
    %3450 = vmatprep.subr.bf16.mxu0 %v2795
    %3451 = vmatpush1.bf16.msra.mxu0 %v2794
    %3452 = vmatprep.subr.bf16.mxu0 %v2799
    %3453 = vmatpush1.bf16.msra.mxu0 %v2798
    %3454 = vmatprep.subr.bf16.mxu0 %v2803
    %3455 = vmatpush1.bf16.msra.mxu0 %v2802
    %3456 = vmatprep.subr.bf16.mxu0 %v2807
    %3457 = vmatpush1.bf16.msra.mxu0 %v2806
    %3458 = vmatprep.subr.bf16.mxu0 %v2811
    %3459 = vmatpush1.bf16.msra.mxu0 %v2810
    %3460 = vmatprep.subr.bf16.mxu0 %v2815
    %3461 = vmatpush1.bf16.msra.mxu0 %v2814
    %3462 = vmatprep.subr.bf16.mxu0 %v2819
    %3463 = vmatpush1.bf16.msra.mxu0 %v2818
    %3464 = vmatprep.mubr.bf16.mxu0 %v1973
    %3465 = vmatmul.mubr.bf16.gmra.mrb[0].mxu0 %v1972
    %v3466 = vpop.f32.mrb[0].mxu0
    %v3467 = vadd.f32 %v1922, %v3466
    %v3468 = vpop.f32.mrb[0].mxu0
    %v3469 = vadd.f32 %v1926, %v3468
    %v3470 = vpop.f32.mrb[0].mxu0
    %v3471 = vpop.f32.mrb[0].mxu0
    %3472 = vdwg.mxu0
    %3473 = vmatprep.subr.bf16.mxu0 %v2823
    %3474 = vmatpush1.bf16.msra.mxu0 %v2822
    %3475 = vmatprep.subr.bf16.mxu0 %v2827
    %3476 = vmatpush1.bf16.msra.mxu0 %v2826
    %3477 = vmatprep.subr.bf16.mxu0 %v2831
    %3478 = vmatpush1.bf16.msra.mxu0 %v2830
    %3479 = vmatprep.subr.bf16.mxu0 %v2835
    %3480 = vmatpush1.bf16.msra.mxu0 %v2834
    %3481 = vmatprep.subr.bf16.mxu0 %v2839
    %3482 = vmatpush1.bf16.msra.mxu0 %v2838
    %3483 = vmatprep.subr.bf16.mxu0 %v2843
    %3484 = vmatpush1.bf16.msra.mxu0 %v2842
    %3485 = vmatprep.subr.bf16.mxu0 %v2847
    %3486 = vmatpush1.bf16.msra.mxu0 %v2846
    %3487 = vmatprep.subr.bf16.mxu0 %v2851
    %3488 = vmatpush1.bf16.msra.mxu0 %v2850
    %3489 = vmatprep.subr.bf16.mxu0 %v2855
    %3490 = vmatpush1.bf16.msra.mxu0 %v2854
    %3491 = vmatprep.subr.bf16.mxu0 %v2859
    %3492 = vmatpush1.bf16.msra.mxu0 %v2858
    %3493 = vmatprep.subr.bf16.mxu0 %v2863
    %3494 = vmatpush1.bf16.msra.mxu0 %v2862
    %3495 = vmatprep.subr.bf16.mxu0 %v2867
    %3496 = vmatpush1.bf16.msra.mxu0 %v2866
    %3497 = vmatprep.subr.bf16.mxu0 %v2871
    %3498 = vmatpush1.bf16.msra.mxu0 %v2870
    %3499 = vmatprep.subr.bf16.mxu0 %v2875
    %3500 = vmatpush1.bf16.msra.mxu0 %v2874
    %3501 = vmatprep.subr.bf16.mxu0 %v2879
    %3502 = vmatpush1.bf16.msra.mxu0 %v2878
    %3503 = vmatprep.subr.bf16.mxu0 %v2883
    %3504 = vmatpush1.bf16.msra.mxu0 %v2882
    %3505 = vmatprep.mubr.bf16.mxu0 %v1975
    %3506 = vmatmul.mubr.bf16.gmra.mrb[0].mxu0 %v1974
    %v3507 = vpop.f32.mrb[0].mxu0
    %v3508 = vadd.f32 %v3467, %v3507
    %v3509 = vpop.f32.mrb[0].mxu0
    %v3510 = vadd.f32 %v3469, %v3509
    %v3511 = vpop.f32.mrb[0].mxu0
    %v3512 = vpop.f32.mrb[0].mxu0
    %3513 = vdwg.mxu0
    %3514 = vmatprep.subr.bf16.mxu0 %v2887
    %3515 = vmatpush1.bf16.msra.mxu0 %v2886
    %3516 = vmatprep.subr.bf16.mxu0 %v2891
    %3517 = vmatpush1.bf16.msra.mxu0 %v2890
    %3518 = vmatprep.subr.bf16.mxu0 %v2895
    %3519 = vmatpush1.bf16.msra.mxu0 %v2894
    %3520 = vmatprep.subr.bf16.mxu0 %v2899
    %3521 = vmatpush1.bf16.msra.mxu0 %v2898
    %3522 = vmatprep.subr.bf16.mxu0 %v2903
    %3523 = vmatpush1.bf16.msra.mxu0 %v2902
    %3524 = vmatprep.subr.bf16.mxu0 %v2907
    %3525 = vmatpush1.bf16.msra.mxu0 %v2906
    %3526 = vmatprep.subr.bf16.mxu0 %v2911
    %3527 = vmatpush1.bf16.msra.mxu0 %v2910
    %3528 = vmatprep.subr.bf16.mxu0 %v2915
    %3529 = vmatpush1.bf16.msra.mxu0 %v2914
    %3530 = vmatprep.subr.bf16.mxu0 %v2919
    %3531 = vmatpush1.bf16.msra.mxu0 %v2918
    %3532 = vmatprep.subr.bf16.mxu0 %v2923
    %3533 = vmatpush1.bf16.msra.mxu0 %v2922
    %3534 = vmatprep.subr.bf16.mxu0 %v2927
    %3535 = vmatpush1.bf16.msra.mxu0 %v2926
    %3536 = vmatprep.subr.bf16.mxu0 %v2931
    %3537 = vmatpush1.bf16.msra.mxu0 %v2930
    %3538 = vmatprep.subr.bf16.mxu0 %v2935
    %3539 = vmatpush1.bf16.msra.mxu0 %v2934
    %3540 = vmatprep.subr.bf16.mxu0 %v2939
    %3541 = vmatpush1.bf16.msra.mxu0 %v2938
    %3542 = vmatprep.subr.bf16.mxu0 %v2943
    %3543 = vmatpush1.bf16.msra.mxu0 %v2942
    %3544 = vmatprep.subr.bf16.mxu0 %v2947
    %3545 = vmatpush1.bf16.msra.mxu0 %v2946
    %3546 = vmatprep.mubr.bf16.mxu0 %v1977
    %3547 = vmatmul.mubr.bf16.gmra.mrb[0].mxu0 %v1976
    %v3548 = vpop.f32.mrb[0].mxu0
    %v3549 = vadd.f32 %v3508, %v3548
    %v3550 = vpop.f32.mrb[0].mxu0
    %v3551 = vadd.f32 %v3510, %v3550
    %v3552 = vpop.f32.mrb[0].mxu0
    %v3553 = vpop.f32.mrb[0].mxu0
    %3554 = vdwg.mxu0
    %3555 = vmatprep.subr.bf16.mxu0 %v2951
    %3556 = vmatpush1.bf16.msra.mxu0 %v2950
    %3557 = vmatprep.subr.bf16.mxu0 %v2955
    %3558 = vmatpush1.bf16.msra.mxu0 %v2954
    %3559 = vmatprep.subr.bf16.mxu0 %v2959
    %3560 = vmatpush1.bf16.msra.mxu0 %v2958
    %3561 = vmatprep.subr.bf16.mxu0 %v2963
    %3562 = vmatpush1.bf16.msra.mxu0 %v2962
    %3563 = vmatprep.subr.bf16.mxu0 %v2967
    %3564 = vmatpush1.bf16.msra.mxu0 %v2966
    %3565 = vmatprep.subr.bf16.mxu0 %v2971
    %3566 = vmatpush1.bf16.msra.mxu0 %v2970
    %3567 = vmatprep.subr.bf16.mxu0 %v2975
    %3568 = vmatpush1.bf16.msra.mxu0 %v2974
    %3569 = vmatprep.subr.bf16.mxu0 %v2979
    %3570 = vmatpush1.bf16.msra.mxu0 %v2978
    %3571 = vmatprep.subr.bf16.mxu0 %v2983
    %3572 = vmatpush1.bf16.msra.mxu0 %v2982
    %3573 = vmatprep.subr.bf16.mxu0 %v2987
    %3574 = vmatpush1.bf16.msra.mxu0 %v2986
    %3575 = vmatprep.subr.bf16.mxu0 %v2991
    %3576 = vmatpush1.bf16.msra.mxu0 %v2990
    %3577 = vmatprep.subr.bf16.mxu0 %v2995
    %3578 = vmatpush1.bf16.msra.mxu0 %v2994
    %3579 = vmatprep.subr.bf16.mxu0 %v2999
    %3580 = vmatpush1.bf16.msra.mxu0 %v2998
    %3581 = vmatprep.subr.bf16.mxu0 %v3003
    %3582 = vmatpush1.bf16.msra.mxu0 %v3002
    %3583 = vmatprep.subr.bf16.mxu0 %v3007
    %3584 = vmatpush1.bf16.msra.mxu0 %v3006
    %3585 = vmatprep.subr.bf16.mxu0 %v3011
    %3586 = vmatpush1.bf16.msra.mxu0 %v3010
    %3587 = vmatprep.mubr.bf16.mxu0 %v1979
    %3588 = vmatmul.mubr.bf16.gmra.mrb[0].mxu0 %v1978
    %v3589 = vpop.f32.mrb[0].mxu0
    %v3590 = vadd.f32 %v3549, %v3589
    %v3591 = vpop.f32.mrb[0].mxu0
    %v3592 = vadd.f32 %v3551, %v3591
    %v3593 = vpop.f32.mrb[0].mxu0
    %v3594 = vpop.f32.mrb[0].mxu0
    %3595 = vdwg.mxu0
    %vm3596 = vcmask 1041408
    %v3597 = vsel %vm3596, %v3426, 0.0
    %v3598 = vsel %vm3596, %v3428, 0.0
    %v3599 = vadd.f32 %v3597, %v3598
    %v3600 = vsel %vm3596, %v3590, 0.0
    %v3601 = vadd.f32 %v3599, %v3600
    %v3602 = vsel %vm3596, %v3592, 0.0
    %v3603 = vadd.f32 %v3601, %v3602
    %3604 = vadd.xlane.f32.xlu0 %v3603
    %v3605 = vpop.xlane.xlu0 %3604
    %v3606 = vmul.f32 %v3426, %v3426
    %v3607 = vmul.f32 %v3428, %v3428
    %v3608 = vmul.f32 %v3590, %v3590
    %v3609 = vmul.f32 %v3592, %v3592
    %v3610 = vsel %vm3596, %v3606, 0.0
    %v3611 = vsel %vm3596, %v3607, 0.0
    %v3612 = vadd.f32 %v3610, %v3611
    %v3613 = vsel %vm3596, %v3608, 0.0
    %v3614 = vadd.f32 %v3612, %v3613
    %v3615 = vsel %vm3596, %v3609, 0.0
    %v3616 = vadd.f32 %v3614, %v3615
    %3617 = vadd.xlane.f32.xlu0 %v3616
    %v3618 = vpop.xlane.xlu0 %3617
    %v3619 = vmul.f32 %v3605, 0.001953125
    %v3620 = vmul.f32 %v3618, 0.001953125
    %v3621 = vmul.f32 %v3619, %v3619
    %v3622 = vsub.f32 %v3620, %v3621
    %v3623 = vmax.f32 %v3622, 0.0
    %v3624 = vsub.f32 %v3426, %v3619
    %v3625 = vsub.f32 %v3428, %v3619
    %v3626 = vsub.f32 %v3590, %v3619
    %v3627 = vsub.f32 %v3592, %v3619
    %v3628 = vadd.f32 %v3623, 1e-05
    %v3629 = vrsqrt.pop %v3628
    %v3630 = vmul.f32 %v3624, %v3629
    %v3631 = vmul.f32 %v3625, %v3629
    %v3632 = vmul.f32 %v3626, %v3629
    %v3633 = vmul.f32 %v3627, %v3629
    %v3634 = vmax.f32 %v3630, 0.0
    %v3635 = vmax.f32 %v3631, 0.0
    %v3636 = vmax.f32 %v3632, 0.0
    %v3637 = vmax.f32 %v3633, 0.0
    %v3638 = vpack.c.bf16 %v3634, %v3634
    %v3639 = vpack.c.bf16 %v3635, %v3635
    %v3640 = vpack.c.bf16 %v3636, %v3636
    %v3641 = vpack.c.bf16 %v3637, %v3637
    %v3642 = vld [vmem:[#allocation6] sm:$0xff]
    %v3643 = vld [vmem:[#allocation6 + $0x8] sm:$0xff]
    %v3644 = vld [vmem:[#allocation6 + $0x10] sm:$0xff]
    %v3645 = vld [vmem:[#allocation6 + $0x18] sm:$0xff]
    %v3646 = vld [vmem:[#allocation6 + $0x20] sm:$0xff]
    %v3647 = vld [vmem:[#allocation6 + $0x28] sm:$0xff]
    %v3648 = vld [vmem:[#allocation6 + $0x30] sm:$0xff]
    %v3649 = vld [vmem:[#allocation6 + $0x38] sm:$0xff]
    %v3650 = vld [vmem:[#allocation6 + $0x40] sm:$0xff]
    %v3651 = vld [vmem:[#allocation6 + $0x48] sm:$0xff]
    %v3652 = vld [vmem:[#allocation6 + $0x50] sm:$0xff]
    %v3653 = vld [vmem:[#allocation6 + $0x58] sm:$0xff]
    %v3654 = vld [vmem:[#allocation6 + $0x60] sm:$0xff]
    %v3655 = vld [vmem:[#allocation6 + $0x68] sm:$0xff]
    %v3656 = vld [vmem:[#allocation6 + $0x70] sm:$0xff]
    %v3657 = vld [vmem:[#allocation6 + $0x78] sm:$0xff]
    %v3658 = vld [vmem:[#allocation6 + $0x80] sm:$0xff]
    %v3659 = vld [vmem:[#allocation6 + $0x88] sm:$0xff]
    %v3660 = vld [vmem:[#allocation6 + $0x90] sm:$0xff]
    %v3661 = vld [vmem:[#allocation6 + $0x98] sm:$0xff]
    %v3662 = vld [vmem:[#allocation6 + $0xa0] sm:$0xff]
    %v3663 = vld [vmem:[#allocation6 + $0xa8] sm:$0xff]
    %v3664 = vld [vmem:[#allocation6 + $0xb0] sm:$0xff]
    %v3665 = vld [vmem:[#allocation6 + $0xb8] sm:$0xff]
    %v3666 = vld [vmem:[#allocation6 + $0xc0] sm:$0xff]
    %v3667 = vld [vmem:[#allocation6 + $0xc8] sm:$0xff]
    %v3668 = vld [vmem:[#allocation6 + $0xd0] sm:$0xff]
    %v3669 = vld [vmem:[#allocation6 + $0xd8] sm:$0xff]
    %v3670 = vld [vmem:[#allocation6 + $0xe0] sm:$0xff]
    %v3671 = vld [vmem:[#allocation6 + $0xe8] sm:$0xff]
    %v3672 = vld [vmem:[#allocation6 + $0xf0] sm:$0xff]
    %v3673 = vld [vmem:[#allocation6 + $0xf8] sm:$0xff]
    %v3674 = vld [vmem:[#allocation6 + $0x100] sm:$0xff]
    %v3675 = vld [vmem:[#allocation6 + $0x108] sm:$0xff]
    %v3676 = vld [vmem:[#allocation6 + $0x110] sm:$0xff]
    %v3677 = vld [vmem:[#allocation6 + $0x118] sm:$0xff]
    %v3678 = vld [vmem:[#allocation6 + $0x120] sm:$0xff]
    %v3679 = vld [vmem:[#allocation6 + $0x128] sm:$0xff]
    %v3680 = vld [vmem:[#allocation6 + $0x130] sm:$0xff]
    %v3681 = vld [vmem:[#allocation6 + $0x138] sm:$0xff]
    %v3682 = vld [vmem:[#allocation6 + $0x140] sm:$0xff]
    %v3683 = vld [vmem:[#allocation6 + $0x148] sm:$0xff]
    %v3684 = vld [vmem:[#allocation6 + $0x150] sm:$0xff]
    %v3685 = vld [vmem:[#allocation6 + $0x158] sm:$0xff]
    %v3686 = vld [vmem:[#allocation6 + $0x160] sm:$0xff]
    %v3687 = vld [vmem:[#allocation6 + $0x168] sm:$0xff]
    %v3688 = vld [vmem:[#allocation6 + $0x170] sm:$0xff]
    %v3689 = vld [vmem:[#allocation6 + $0x178] sm:$0xff]
    %v3690 = vld [vmem:[#allocation6 + $0x180] sm:$0xff]
    %v3691 = vld [vmem:[#allocation6 + $0x188] sm:$0xff]
    %v3692 = vld [vmem:[#allocation6 + $0x190] sm:$0xff]
    %v3693 = vld [vmem:[#allocation6 + $0x198] sm:$0xff]
    %v3694 = vld [vmem:[#allocation6 + $0x1a0] sm:$0xff]
    %v3695 = vld [vmem:[#allocation6 + $0x1a8] sm:$0xff]
    %v3696 = vld [vmem:[#allocation6 + $0x1b0] sm:$0xff]
    %v3697 = vld [vmem:[#allocation6 + $0x1b8] sm:$0xff]
    %v3698 = vld [vmem:[#allocation6 + $0x1c0] sm:$0xff]
    %v3699 = vld [vmem:[#allocation6 + $0x1c8] sm:$0xff]
    %v3700 = vld [vmem:[#allocation6 + $0x1d0] sm:$0xff]
    %v3701 = vld [vmem:[#allocation6 + $0x1d8] sm:$0xff]
    %v3702 = vld [vmem:[#allocation6 + $0x1e0] sm:$0xff]
    %v3703 = vld [vmem:[#allocation6 + $0x1e8] sm:$0xff]
    %v3704 = vld [vmem:[#allocation6 + $0x1f0] sm:$0xff]
    %v3705 = vld [vmem:[#allocation6 + $0x1f8] sm:$0xff]
    %v3706 = vld [vmem:[%s10] sm:$0x3]
    %v3708 = vlaneseq
    %v3709 = vshrl.u32 %v3708, 7
    %v3710 = vsub.s32 0, %v3709
    %v3711 = vrot.slane %v3706, %v3710
    %v3712 = vlaneseq
    %v3713 = vshrl.u32 %v3712, 7
    %v3714 = vsub.s32 1, %v3713
    %v3715 = vrot.slane %v3706, %v3714
    %v3782 = vunpack.c.l.b16 %v3642
    %v3783 = vunpack.c.h.b16 %v3642
    %v3784 = vunpack.c.l.b16 %v3643
    %v3785 = vunpack.c.h.b16 %v3643
    %v3786 = vunpack.c.l.b16 %v3644
    %v3787 = vunpack.c.h.b16 %v3644
    %v3788 = vunpack.c.l.b16 %v3645
    %v3789 = vunpack.c.h.b16 %v3645
    %v3790 = vunpack.c.l.b16 %v3646
    %v3791 = vunpack.c.h.b16 %v3646
    %v3792 = vunpack.c.l.b16 %v3647
    %v3793 = vunpack.c.h.b16 %v3647
    %v3794 = vunpack.c.l.b16 %v3648
    %v3795 = vunpack.c.h.b16 %v3648
    %v3796 = vunpack.c.l.b16 %v3649
    %v3797 = vunpack.c.h.b16 %v3649
    %v3798 = vunpack.c.l.b16 %v3650
    %v3799 = vunpack.c.h.b16 %v3650
    %v3800 = vunpack.c.l.b16 %v3651
    %v3801 = vunpack.c.h.b16 %v3651
    %v3802 = vunpack.c.l.b16 %v3652
    %v3803 = vunpack.c.h.b16 %v3652
    %v3804 = vunpack.c.l.b16 %v3653
    %v3805 = vunpack.c.h.b16 %v3653
    %v3806 = vunpack.c.l.b16 %v3654
    %v3807 = vunpack.c.h.b16 %v3654
    %v3808 = vunpack.c.l.b16 %v3655
    %v3809 = vunpack.c.h.b16 %v3655
    %v3810 = vunpack.c.l.b16 %v3656
    %v3811 = vunpack.c.h.b16 %v3656
    %v3812 = vunpack.c.l.b16 %v3657
    %v3813 = vunpack.c.h.b16 %v3657
    %v3814 = vunpack.c.l.b16 %v3658
    %v3815 = vunpack.c.h.b16 %v3658
    %v3816 = vunpack.c.l.b16 %v3659
    %v3817 = vunpack.c.h.b16 %v3659
    %v3818 = vunpack.c.l.b16 %v3660
    %v3819 = vunpack.c.h.b16 %v3660
    %v3820 = vunpack.c.l.b16 %v3661
    %v3821 = vunpack.c.h.b16 %v3661
    %v3822 = vunpack.c.l.b16 %v3662
    %v3823 = vunpack.c.h.b16 %v3662
    %v3824 = vunpack.c.l.b16 %v3663
    %v3825 = vunpack.c.h.b16 %v3663
    %v3826 = vunpack.c.l.b16 %v3664
    %v3827 = vunpack.c.h.b16 %v3664
    %v3828 = vunpack.c.l.b16 %v3665
    %v3829 = vunpack.c.h.b16 %v3665
    %v3830 = vunpack.c.l.b16 %v3666
    %v3831 = vunpack.c.h.b16 %v3666
    %v3832 = vunpack.c.l.b16 %v3667
    %v3833 = vunpack.c.h.b16 %v3667
    %v3834 = vunpack.c.l.b16 %v3668
    %v3835 = vunpack.c.h.b16 %v3668
    %v3836 = vunpack.c.l.b16 %v3669
    %v3837 = vunpack.c.h.b16 %v3669
    %v3838 = vunpack.c.l.b16 %v3670
    %v3839 = vunpack.c.h.b16 %v3670
    %v3840 = vunpack.c.l.b16 %v3671
    %v3841 = vunpack.c.h.b16 %v3671
    %v3842 = vunpack.c.l.b16 %v3672
    %v3843 = vunpack.c.h.b16 %v3672
    %v3844 = vunpack.c.l.b16 %v3673
    %v3845 = vunpack.c.h.b16 %v3673
    %v3846 = vunpack.c.l.b16 %v3674
    %v3847 = vunpack.c.h.b16 %v3674
    %v3848 = vunpack.c.l.b16 %v3675
    %v3849 = vunpack.c.h.b16 %v3675
    %v3850 = vunpack.c.l.b16 %v3676
    %v3851 = vunpack.c.h.b16 %v3676
    %v3852 = vunpack.c.l.b16 %v3677
    %v3853 = vunpack.c.h.b16 %v3677
    %v3854 = vunpack.c.l.b16 %v3678
    %v3855 = vunpack.c.h.b16 %v3678
    %v3856 = vunpack.c.l.b16 %v3679
    %v3857 = vunpack.c.h.b16 %v3679
    %v3858 = vunpack.c.l.b16 %v3680
    %v3859 = vunpack.c.h.b16 %v3680
    %v3860 = vunpack.c.l.b16 %v3681
    %v3861 = vunpack.c.h.b16 %v3681
    %v3862 = vunpack.c.l.b16 %v3682
    %v3863 = vunpack.c.h.b16 %v3682
    %v3864 = vunpack.c.l.b16 %v3683
    %v3865 = vunpack.c.h.b16 %v3683
    %v3866 = vunpack.c.l.b16 %v3684
    %v3867 = vunpack.c.h.b16 %v3684
    %v3868 = vunpack.c.l.b16 %v3685
    %v3869 = vunpack.c.h.b16 %v3685
    %v3870 = vunpack.c.l.b16 %v3686
    %v3871 = vunpack.c.h.b16 %v3686
    %v3872 = vunpack.c.l.b16 %v3687
    %v3873 = vunpack.c.h.b16 %v3687
    %v3874 = vunpack.c.l.b16 %v3688
    %v3875 = vunpack.c.h.b16 %v3688
    %v3876 = vunpack.c.l.b16 %v3689
    %v3877 = vunpack.c.h.b16 %v3689
    %v3878 = vunpack.c.l.b16 %v3690
    %v3879 = vunpack.c.h.b16 %v3690
    %v3880 = vunpack.c.l.b16 %v3691
    %v3881 = vunpack.c.h.b16 %v3691
    %v3882 = vunpack.c.l.b16 %v3692
    %v3883 = vunpack.c.h.b16 %v3692
    %v3884 = vunpack.c.l.b16 %v3693
    %v3885 = vunpack.c.h.b16 %v3693
    %v3886 = vunpack.c.l.b16 %v3694
    %v3887 = vunpack.c.h.b16 %v3694
    %v3888 = vunpack.c.l.b16 %v3695
    %v3889 = vunpack.c.h.b16 %v3695
    %v3890 = vunpack.c.l.b16 %v3696
    %v3891 = vunpack.c.h.b16 %v3696
    %v3892 = vunpack.c.l.b16 %v3697
    %v3893 = vunpack.c.h.b16 %v3697
    %v3894 = vunpack.c.l.b16 %v3698
    %v3895 = vunpack.c.h.b16 %v3698
    %v3896 = vunpack.c.l.b16 %v3699
    %v3897 = vunpack.c.h.b16 %v3699
    %v3898 = vunpack.c.l.b16 %v3700
    %v3899 = vunpack.c.h.b16 %v3700
    %v3900 = vunpack.c.l.b16 %v3701
    %v3901 = vunpack.c.h.b16 %v3701
    %v3902 = vunpack.c.l.b16 %v3702
    %v3903 = vunpack.c.h.b16 %v3702
    %v3904 = vunpack.c.l.b16 %v3703
    %v3905 = vunpack.c.h.b16 %v3703
    %v3906 = vunpack.c.l.b16 %v3704
    %v3907 = vunpack.c.h.b16 %v3704
    %v3908 = vunpack.c.l.b16 %v3705
    %v3909 = vunpack.c.h.b16 %v3705
    %v3910 = vpack.c.b16 %v3784, %v3782
    %v3911 = vpack.c.b16 %v3785, %v3783
    %v3912 = vpack.c.b16 %v3788, %v3786
    %v3913 = vpack.c.b16 %v3789, %v3787
    %v3914 = vpack.c.b16 %v3792, %v3790
    %v3915 = vpack.c.b16 %v3793, %v3791
    %v3916 = vpack.c.b16 %v3796, %v3794
    %v3917 = vpack.c.b16 %v3797, %v3795
    %v3918 = vpack.c.b16 %v3800, %v3798
    %v3919 = vpack.c.b16 %v3801, %v3799
    %v3920 = vpack.c.b16 %v3804, %v3802
    %v3921 = vpack.c.b16 %v3805, %v3803
    %v3922 = vpack.c.b16 %v3808, %v3806
    %v3923 = vpack.c.b16 %v3809, %v3807
    %v3924 = vpack.c.b16 %v3812, %v3810
    %v3925 = vpack.c.b16 %v3813, %v3811
    %v3926 = vpack.c.b16 %v3816, %v3814
    %v3927 = vpack.c.b16 %v3817, %v3815
    %v3928 = vpack.c.b16 %v3820, %v3818
    %v3929 = vpack.c.b16 %v3821, %v3819
    %v3930 = vpack.c.b16 %v3824, %v3822
    %v3931 = vpack.c.b16 %v3825, %v3823
    %v3932 = vpack.c.b16 %v3828, %v3826
    %v3933 = vpack.c.b16 %v3829, %v3827
    %v3934 = vpack.c.b16 %v3832, %v3830
    %v3935 = vpack.c.b16 %v3833, %v3831
    %v3936 = vpack.c.b16 %v3836, %v3834
    %v3937 = vpack.c.b16 %v3837, %v3835
    %v3938 = vpack.c.b16 %v3840, %v3838
    %v3939 = vpack.c.b16 %v3841, %v3839
    %v3940 = vpack.c.b16 %v3844, %v3842
    %v3941 = vpack.c.b16 %v3845, %v3843
    %v3942 = vpack.c.b16 %v3848, %v3846
    %v3943 = vpack.c.b16 %v3849, %v3847
    %v3944 = vpack.c.b16 %v3852, %v3850
    %v3945 = vpack.c.b16 %v3853, %v3851
    %v3946 = vpack.c.b16 %v3856, %v3854
    %v3947 = vpack.c.b16 %v3857, %v3855
    %v3948 = vpack.c.b16 %v3860, %v3858
    %v3949 = vpack.c.b16 %v3861, %v3859
    %v3950 = vpack.c.b16 %v3864, %v3862
    %v3951 = vpack.c.b16 %v3865, %v3863
    %v3952 = vpack.c.b16 %v3868, %v3866
    %v3953 = vpack.c.b16 %v3869, %v3867
    %v3954 = vpack.c.b16 %v3872, %v3870
    %v3955 = vpack.c.b16 %v3873, %v3871
    %v3956 = vpack.c.b16 %v3876, %v3874
    %v3957 = vpack.c.b16 %v3877, %v3875
    %v3958 = vpack.c.b16 %v3880, %v3878
    %v3959 = vpack.c.b16 %v3881, %v3879
    %v3960 = vpack.c.b16 %v3884, %v3882
    %v3961 = vpack.c.b16 %v3885, %v3883
    %v3962 = vpack.c.b16 %v3888, %v3886
    %v3963 = vpack.c.b16 %v3889, %v3887
    %v3964 = vpack.c.b16 %v3892, %v3890
    %v3965 = vpack.c.b16 %v3893, %v3891
    %v3966 = vpack.c.b16 %v3896, %v3894
    %v3967 = vpack.c.b16 %v3897, %v3895
    %v3968 = vpack.c.b16 %v3900, %v3898
    %v3969 = vpack.c.b16 %v3901, %v3899
    %v3970 = vpack.c.b16 %v3904, %v3902
    %v3971 = vpack.c.b16 %v3905, %v3903
    %v3972 = vpack.c.b16 %v3908, %v3906
    %v3973 = vpack.c.b16 %v3909, %v3907
    %4038 = vmatprep.subr.bf16.mxu0 %v3911
    %4039 = vmatpush1.bf16.msra.mxu0 %v3910
    %4040 = vmatprep.subr.bf16.mxu0 %v3913
    %4041 = vmatpush1.bf16.msra.mxu0 %v3912
    %4042 = vmatprep.subr.bf16.mxu0 %v3915
    %4043 = vmatpush1.bf16.msra.mxu0 %v3914
    %4044 = vmatprep.subr.bf16.mxu0 %v3917
    %4045 = vmatpush1.bf16.msra.mxu0 %v3916
    %4046 = vmatprep.subr.bf16.mxu0 %v3919
    %4047 = vmatpush1.bf16.msra.mxu0 %v3918
    %4048 = vmatprep.subr.bf16.mxu0 %v3921
    %4049 = vmatpush1.bf16.msra.mxu0 %v3920
    %4050 = vmatprep.subr.bf16.mxu0 %v3923
    %4051 = vmatpush1.bf16.msra.mxu0 %v3922
    %4052 = vmatprep.subr.bf16.mxu0 %v3925
    %4053 = vmatpush1.bf16.msra.mxu0 %v3924
    %4054 = vmatprep.subr.bf16.mxu0 %v3927
    %4055 = vmatpush1.bf16.msra.mxu0 %v3926
    %4056 = vmatprep.subr.bf16.mxu0 %v3929
    %4057 = vmatpush1.bf16.msra.mxu0 %v3928
    %4058 = vmatprep.subr.bf16.mxu0 %v3931
    %4059 = vmatpush1.bf16.msra.mxu0 %v3930
    %4060 = vmatprep.subr.bf16.mxu0 %v3933
    %4061 = vmatpush1.bf16.msra.mxu0 %v3932
    %4062 = vmatprep.subr.bf16.mxu0 %v3935
    %4063 = vmatpush1.bf16.msra.mxu0 %v3934
    %4064 = vmatprep.subr.bf16.mxu0 %v3937
    %4065 = vmatpush1.bf16.msra.mxu0 %v3936
    %4066 = vmatprep.subr.bf16.mxu0 %v3939
    %4067 = vmatpush1.bf16.msra.mxu0 %v3938
    %4068 = vmatprep.subr.bf16.mxu0 %v3941
    %4069 = vmatpush1.bf16.msra.mxu0 %v3940
    %4070 = vmatprep.mubr.bf16.mxu0 %v3639
    %4071 = vmatmul.mubr.bf16.gmra.mrb[0].mxu0 %v3638
    %v4072 = vpop.f32.mrb[0].mxu0
    %v4073 = vadd.f32 %v3711, %v4072
    %v4074 = vpop.f32.mrb[0].mxu0
    %v4075 = vadd.f32 %v3715, %v4074
    %v4076 = vpop.f32.mrb[0].mxu0
    %v4077 = vpop.f32.mrb[0].mxu0
    %4078 = vdwg.mxu0
    %4079 = vmatprep.subr.bf16.mxu0 %v3943
    %4080 = vmatpush1.bf16.msra.mxu0 %v3942
    %4081 = vmatprep.subr.bf16.mxu0 %v3945
    %4082 = vmatpush1.bf16.msra.mxu0 %v3944
    %4083 = vmatprep.subr.bf16.mxu0 %v3947
    %4084 = vmatpush1.bf16.msra.mxu0 %v3946
    %4085 = vmatprep.subr.bf16.mxu0 %v3949
    %4086 = vmatpush1.bf16.msra.mxu0 %v3948
    %4087 = vmatprep.subr.bf16.mxu0 %v3951
    %4088 = vmatpush1.bf16.msra.mxu0 %v3950
    %4089 = vmatprep.subr.bf16.mxu0 %v3953
    %4090 = vmatpush1.bf16.msra.mxu0 %v3952
    %4091 = vmatprep.subr.bf16.mxu0 %v3955
    %4092 = vmatpush1.bf16.msra.mxu0 %v3954
    %4093 = vmatprep.subr.bf16.mxu0 %v3957
    %4094 = vmatpush1.bf16.msra.mxu0 %v3956
    %4095 = vmatprep.subr.bf16.mxu0 %v3959
    %4096 = vmatpush1.bf16.msra.mxu0 %v3958
    %4097 = vmatprep.subr.bf16.mxu0 %v3961
    %4098 = vmatpush1.bf16.msra.mxu0 %v3960
    %4099 = vmatprep.subr.bf16.mxu0 %v3963
    %4100 = vmatpush1.bf16.msra.mxu0 %v3962
    %4101 = vmatprep.subr.bf16.mxu0 %v3965
    %4102 = vmatpush1.bf16.msra.mxu0 %v3964
    %4103 = vmatprep.subr.bf16.mxu0 %v3967
    %4104 = vmatpush1.bf16.msra.mxu0 %v3966
    %4105 = vmatprep.subr.bf16.mxu0 %v3969
    %4106 = vmatpush1.bf16.msra.mxu0 %v3968
    %4107 = vmatprep.subr.bf16.mxu0 %v3971
    %4108 = vmatpush1.bf16.msra.mxu0 %v3970
    %4109 = vmatprep.subr.bf16.mxu0 %v3973
    %4110 = vmatpush1.bf16.msra.mxu0 %v3972
    %4111 = vmatprep.mubr.bf16.mxu0 %v3641
    %4112 = vmatmul.mubr.bf16.gmra.mrb[0].mxu0 %v3640
    %v4113 = vpop.f32.mrb[0].mxu0
    %v4114 = vadd.f32 %v4073, %v4113
    %v4115 = vpop.f32.mrb[0].mxu0
    %v4116 = vadd.f32 %v4075, %v4115
    %v4117 = vpop.f32.mrb[0].mxu0
    %v4118 = vpop.f32.mrb[0].mxu0
    %4119 = vdwg.mxu0
    %v4120 = vsel %vm3596, %v4114, 0.0
    %v4121 = vsel %vm3596, %v4116, 0.0
    %v4122 = vadd.f32 %v4120, %v4121
    %4123 = vadd.xlane.f32.xlu0 %v4122
    %v4124 = vpop.xlane.xlu0 %4123
    %v4125 = vmul.f32 %v4114, %v4114
    %v4126 = vmul.f32 %v4116, %v4116
    %v4127 = vsel %vm3596, %v4125, 0.0
    %v4128 = vsel %vm3596, %v4126, 0.0
    %v4129 = vadd.f32 %v4127, %v4128
    %4130 = vadd.xlane.f32.xlu0 %v4129
    %v4131 = vpop.xlane.xlu0 %4130
    %v4132 = vmul.f32 %v4124, 0.00390625
    %v4133 = vmul.f32 %v4131, 0.00390625
    %v4134 = vmul.f32 %v4132, %v4132
    %v4135 = vsub.f32 %v4133, %v4134
    %v4136 = vmax.f32 %v4135, 0.0
    %v4137 = vsub.f32 %v4114, %v4132
    %v4138 = vsub.f32 %v4116, %v4132
    %v4139 = vadd.f32 %v4136, 1e-05
    %v4140 = vrsqrt.pop %v4139
    %v4141 = vmul.f32 %v4137, %v4140
    %v4142 = vmul.f32 %v4138, %v4140
    %v4143 = vmax.f32 %v4141, 0.0
    %v4144 = vmax.f32 %v4142, 0.0
    %v4145 = vpack.c.bf16 %v4143, %v4143
    %v4146 = vpack.c.bf16 %v4144, %v4144
    %v4147 = vld [vmem:[#allocation7] sm:$0xf]
    %v4148 = vld [vmem:[#allocation7 + $0x4] sm:$0xf]
    %v4149 = vld [vmem:[#allocation7 + $0x8] sm:$0xf]
    %v4150 = vld [vmem:[#allocation7 + $0xc] sm:$0xf]
    %v4151 = vld [vmem:[#allocation7 + $0x10] sm:$0xf]
    %v4152 = vld [vmem:[#allocation7 + $0x14] sm:$0xf]
    %v4153 = vld [vmem:[#allocation7 + $0x18] sm:$0xf]
    %v4154 = vld [vmem:[#allocation7 + $0x1c] sm:$0xf]
    %v4155 = vld [vmem:[#allocation7 + $0x20] sm:$0xf]
    %v4156 = vld [vmem:[#allocation7 + $0x24] sm:$0xf]
    %v4157 = vld [vmem:[#allocation7 + $0x28] sm:$0xf]
    %v4158 = vld [vmem:[#allocation7 + $0x2c] sm:$0xf]
    %v4159 = vld [vmem:[#allocation7 + $0x30] sm:$0xf]
    %v4160 = vld [vmem:[#allocation7 + $0x34] sm:$0xf]
    %v4161 = vld [vmem:[#allocation7 + $0x38] sm:$0xf]
    %v4162 = vld [vmem:[#allocation7 + $0x3c] sm:$0xf]
    %v4163 = vld [vmem:[#allocation7 + $0x40] sm:$0xf]
    %v4164 = vld [vmem:[#allocation7 + $0x44] sm:$0xf]
    %v4165 = vld [vmem:[#allocation7 + $0x48] sm:$0xf]
    %v4166 = vld [vmem:[#allocation7 + $0x4c] sm:$0xf]
    %v4167 = vld [vmem:[#allocation7 + $0x50] sm:$0xf]
    %v4168 = vld [vmem:[#allocation7 + $0x54] sm:$0xf]
    %v4169 = vld [vmem:[#allocation7 + $0x58] sm:$0xf]
    %v4170 = vld [vmem:[#allocation7 + $0x5c] sm:$0xf]
    %v4171 = vld [vmem:[#allocation7 + $0x60] sm:$0xf]
    %v4172 = vld [vmem:[#allocation7 + $0x64] sm:$0xf]
    %v4173 = vld [vmem:[#allocation7 + $0x68] sm:$0xf]
    %v4174 = vld [vmem:[#allocation7 + $0x6c] sm:$0xf]
    %v4175 = vld [vmem:[#allocation7 + $0x70] sm:$0xf]
    %v4176 = vld [vmem:[#allocation7 + $0x74] sm:$0xf]
    %v4177 = vld [vmem:[#allocation7 + $0x78] sm:$0xf]
    %v4178 = vld [vmem:[#allocation7 + $0x7c] sm:$0xf]
    %v4179 = vld [vmem:[%s12] sm:$0x1]
    %v4181 = vlaneseq
    %v4182 = vshrl.u32 %v4181, 7
    %v4183 = vsub.s32 0, %v4182
    %v4184 = vrot.slane %v4179, %v4183
    %v4218 = vunpack.c.l.b16 %v4147
    %v4219 = vunpack.c.l.b16 %v4148
    %v4220 = vunpack.c.l.b16 %v4149
    %v4221 = vunpack.c.l.b16 %v4150
    %v4222 = vunpack.c.l.b16 %v4151
    %v4223 = vunpack.c.l.b16 %v4152
    %v4224 = vunpack.c.l.b16 %v4153
    %v4225 = vunpack.c.l.b16 %v4154
    %v4226 = vunpack.c.l.b16 %v4155
    %v4227 = vunpack.c.l.b16 %v4156
    %v4228 = vunpack.c.l.b16 %v4157
    %v4229 = vunpack.c.l.b16 %v4158
    %v4230 = vunpack.c.l.b16 %v4159
    %v4231 = vunpack.c.l.b16 %v4160
    %v4232 = vunpack.c.l.b16 %v4161
    %v4233 = vunpack.c.l.b16 %v4162
    %v4234 = vunpack.c.l.b16 %v4163
    %v4235 = vunpack.c.l.b16 %v4164
    %v4236 = vunpack.c.l.b16 %v4165
    %v4237 = vunpack.c.l.b16 %v4166
    %v4238 = vunpack.c.l.b16 %v4167
    %v4239 = vunpack.c.l.b16 %v4168
    %v4240 = vunpack.c.l.b16 %v4169
    %v4241 = vunpack.c.l.b16 %v4170
    %v4242 = vunpack.c.l.b16 %v4171
    %v4243 = vunpack.c.l.b16 %v4172
    %v4244 = vunpack.c.l.b16 %v4173
    %v4245 = vunpack.c.l.b16 %v4174
    %v4246 = vunpack.c.l.b16 %v4175
    %v4247 = vunpack.c.l.b16 %v4176
    %v4248 = vunpack.c.l.b16 %v4177
    %v4249 = vunpack.c.l.b16 %v4178
    %v4250 = vpack.c.b16 %v4219, %v4218
    %v4251 = vpack.c.b16 %v4221, %v4220
    %v4252 = vpack.c.b16 %v4223, %v4222
    %v4253 = vpack.c.b16 %v4225, %v4224
    %v4254 = vpack.c.b16 %v4227, %v4226
    %v4255 = vpack.c.b16 %v4229, %v4228
    %v4256 = vpack.c.b16 %v4231, %v4230
    %v4257 = vpack.c.b16 %v4233, %v4232
    %v4258 = vpack.c.b16 %v4235, %v4234
    %v4259 = vpack.c.b16 %v4237, %v4236
    %v4260 = vpack.c.b16 %v4239, %v4238
    %v4261 = vpack.c.b16 %v4241, %v4240
    %v4262 = vpack.c.b16 %v4243, %v4242
    %v4263 = vpack.c.b16 %v4245, %v4244
    %v4264 = vpack.c.b16 %v4247, %v4246
    %v4265 = vpack.c.b16 %v4249, %v4248
    %4282 = vmatprep.subr.bf16.mxu0 0
    %4283 = vmatpush1.bf16.msra.mxu0 %v4250
    %4284 = vmatprep.subr.bf16.mxu0 0
    %4285 = vmatpush1.bf16.msra.mxu0 %v4251
    %4286 = vmatprep.subr.bf16.mxu0 0
    %4287 = vmatpush1.bf16.msra.mxu0 %v4252
    %4288 = vmatprep.subr.bf16.mxu0 0
    %4289 = vmatpush1.bf16.msra.mxu0 %v4253
    %4290 = vmatprep.subr.bf16.mxu0 0
    %4291 = vmatpush1.bf16.msra.mxu0 %v4254
    %4292 = vmatprep.subr.bf16.mxu0 0
    %4293 = vmatpush1.bf16.msra.mxu0 %v4255
    %4294 = vmatprep.subr.bf16.mxu0 0
    %4295 = vmatpush1.bf16.msra.mxu0 %v4256
    %4296 = vmatprep.subr.bf16.mxu0 0
    %4297 = vmatpush1.bf16.msra.mxu0 %v4257
    %4298 = vmatprep.subr.bf16.mxu0 0
    %4299 = vmatpush1.bf16.msra.mxu0 %v4258
    %4300 = vmatprep.subr.bf16.mxu0 0
    %4301 = vmatpush1.bf16.msra.mxu0 %v4259
    %4302 = vmatprep.subr.bf16.mxu0 0
    %4303 = vmatpush1.bf16.msra.mxu0 %v4260
    %4304 = vmatprep.subr.bf16.mxu0 0
    %4305 = vmatpush1.bf16.msra.mxu0 %v4261
    %4306 = vmatprep.subr.bf16.mxu0 0
    %4307 = vmatpush1.bf16.msra.mxu0 %v4262
    %4308 = vmatprep.subr.bf16.mxu0 0
    %4309 = vmatpush1.bf16.msra.mxu0 %v4263
    %4310 = vmatprep.subr.bf16.mxu0 0
    %4311 = vmatpush1.bf16.msra.mxu0 %v4264
    %4312 = vmatprep.subr.bf16.mxu0 0
    %4313 = vmatpush1.bf16.msra.mxu0 %v4265
    %4314 = vmatprep.mubr.bf16.mxu0 %v4146
    %4315 = vmatmul.mubr.bf16.gmra.mrb[0].mxu0 %v4145
    %v4316 = vpop.f32.mrb[0].mxu0
    %v4317 = vadd.f32 %v4184, %v4316
    %v4318 = vpop.f32.mrb[0].mxu0
    %v4319 = vpop.f32.mrb[0].mxu0
    %v4320 = vpop.f32.mrb[0].mxu0
    %4321 = vdwg.mxu0
    %v4322 = vlaneseq
    %v4323 = vand.u32 %v4322, 127
    %vm4324 = vcmp.lt.s32.totalorder %v4323, 9
    %vm4325 = vcmp.lt.s32.totalorder %v4323, 0
    %v4326 = vsub.s32 0, %v4323
    %v4327 = vsel %vm4325, %v4326, %v4323
    %v4328 = vshrl.u32 %v4327, 2
    %v4329 = vand.u32 %v4327, 3
    %v4330 = vsub.s32 0, %v4329
    %v4331 = vsel %vm4325, %v4330, %v4329
    %vm4332 = vcmp.ne.s32.totalorder %v4331, 0
    %vm4333 = vcmp.lt.s32.totalorder %v4331, 0
    %vm4334 = vmand %vm4333, %vm4332
    %v4335 = vadd.s32 %v4331, 4
    %v4336 = vsel %vm4334, %v4335, %v4331
    %vm4337 = vcmp.eq.s32.totalorder %v4336, 0
    %vm4338 = vmand %vm4324, %vm4337
    %v4339 = vsel %vm4338, 1.0, 0.0
    %v4340 = vadd.f32 %v4317, %v4339
    %4341 = vst [vmem:[%s13] sm:$0x3] %v4340
    // Predicated region
    $region70: #{_stn3d_call.1} parent=1 // pred_check
      _
    $region71: #{_stn3d_call.1} parent=1 // pred_check_branch
      %4343 = sbr.rel (0) target = $region73
    $region72: #{_stn3d_call.1} parent=1 // pred_region
      _
    $region73: #{_stn3d_call.1} parent=1 // pred_fallthru
      _
    // Predicated region
    $region74: #{_stn3d_call.1} parent=1 // pred_check
      _
    $region75: #{_stn3d_call.1} parent=1 // pred_check_branch
      %4345 = sbr.rel (0) target = $region77
    $region76: #{_stn3d_call.1} parent=1 // pred_region
      _
    $region77: #{_stn3d_call.1} parent=1 // pred_fallthru
      _
    %4346 = vsyncpa [#allocation3], 1
    %4347 = vsyncpa [#allocation5], 1
    %4348 = vsyncpa [#allocation8], 1

</llo_original>
